<compile_context>
chip_gen: v7x
topology: tpu7x:2x2x1
jax: 0.10.0
libtpu: 0.0.40
codegen_flags: <defaults>
</compile_context>

<pallas_src>
import jax
import jax.numpy as jnp
from jax.experimental import pallas as pl
from jax.experimental.pallas import tpu as pltpu

EPS = 1e-5


def _round_up(v, m):
    return (v + m - 1) // m * m


# --- Small bf16 weights ([in, out] layout), packed into one buffer ----------
SMALL_WEIGHTS = [
    # name,     din, dout, fan_in (for PyTorch-like init bound)
    ("s1_l1",     4,   64,    4),
    ("s1_l2",    64,   64,   64),
    ("s1_l3",    64,  128,   64),
    ("s2_l1",   128,  256,  128),
    ("att_l2",  128,   32,  128),
    ("att_l3",   32,    1,   32),
    ("s3_wx1",  128,  256, 1152),   # x1 half of seq3's Linear(1152, 256)
    ("s3_l2",   256,  128,  256),
    ("s3_l3",   128,   32,  128),
    ("s3_l4",    32,    3,   32),
]
SMALL_W_LANES = 256
SMALL_W_OFF = {}
_r = 0
for _name, _din, _dout, _ in SMALL_WEIGHTS:
    SMALL_W_OFF[_name] = _r
    _r += _round_up(_din, 16)        # keep row offsets bf16-sublane-tile aligned
SMALL_W_ROWS = _round_up(_r, 16)
SMALL_W_SHAPE = {n: (d, o) for n, d, o, _ in SMALL_WEIGHTS}

# --- Small f32 per-channel params (BN gamma/beta + surviving biases) --------
F32_PARAMS = [
    ("bn1_g", 64), ("bn1_b", 64),
    ("bn2_g", 64), ("bn2_b", 64),
    ("bn3_g", 128), ("bn3_b", 128),
    ("bn4_g", 256), ("bn4_b", 256),
    ("bn5_g", 512), ("bn5_b", 512),
    ("b_s2_l3", 1024),               # Linear(512, 1024) bias (no BN after it)
    ("bn_a1_g", 128), ("bn_a1_b", 128),
    ("bn_a2_g", 32), ("bn_a2_b", 32),
    ("b_att3", 1),                   # Linear(32, 1) bias
    ("bn_s31_g", 256), ("bn_s31_b", 256),
    ("bn_s32_g", 128), ("bn_s32_b", 128),
    ("bn_s33_g", 32), ("bn_s33_b", 32),
    ("b_s3_l4", 3),                  # Linear(32, 3) bias
]
F32_LANES = 1024
F32_ROW = {n: i for i, (n, _) in enumerate(F32_PARAMS)}
F32_WIDTH = dict(F32_PARAMS)
F32_ROWS = len(F32_PARAMS)

# --- Big bf16 weights, kept in HBM and DMA'd manually (overlap w/ compute) --
BIG_WEIGHTS = [
    # name,     din,  dout, fan_in
    ("s2_l2",   256,  512,  256),
    ("s2_l3",   512, 1024,  512),
    ("att_l1", 1024,  128, 1024),
    ("s3_wgf", 1024,  256, 1152),    # gf half of seq3's Linear(1152, 256)
]


def pointcolorer_kernel(x_ref, batch_ref, wsmall_ref, fbuf_ref,
                        w_s2l2_hbm, w_s2l3_hbm, w_att1_hbm, w_s3gf_hbm,
                        out_ref,
                        w_s2l2, w_s2l3, w_att1, w_s3gf, dma_sem):
    # Kick off all big-weight DMAs up front (in consumption order); each is
    # waited on immediately before its consumer, so the ~2 MB of weight
    # traffic hides behind the earlier small layers.
    cps = [
        pltpu.make_async_copy(w_s2l2_hbm, w_s2l2, dma_sem.at[0]),
        pltpu.make_async_copy(w_s2l3_hbm, w_s2l3, dma_sem.at[1]),
        pltpu.make_async_copy(w_att1_hbm, w_att1, dma_sem.at[2]),
        pltpu.make_async_copy(w_s3gf_hbm, w_s3gf, dma_sem.at[3]),
    ]
    for cp in cps:
        cp.start()

    def sw(name):
        din, dout = SMALL_W_SHAPE[name]
        r = SMALL_W_OFF[name]
        return wsmall_ref[r:r + din, 0:dout]          # bf16 [din, dout]

    def fp(name):
        r = F32_ROW[name]
        c = F32_WIDTH[name]
        return fbuf_ref[r:r + 1, 0:c]                 # f32 [1, c]

    def lin(h, w, bias=None):
        out = jnp.dot(h.astype(jnp.bfloat16), w,
                      preferred_element_type=jnp.float32)
        return out if bias is None else out + fp(bias)

    def bn_relu(h, name):
        # Training-mode BatchNorm1d over axis 0 (biased variance) + ReLU.
        # Centered two-pass variance: no E[x^2]-mean^2 cancellation risk.
        mean = jnp.mean(h, axis=0, keepdims=True)
        d = h - mean
        var = jnp.mean(d * d, axis=0, keepdims=True)
        scale = fp(name + "_g") * jax.lax.rsqrt(var + EPS)
        return jnp.maximum(d * scale + fp(name + "_b"), 0.0)

    x = x_ref[...]                                    # [N, 4] f32
    n = x_ref.shape[0]

    # ---- seq1 ---------------------------------------------------------------
    h = bn_relu(lin(x, sw("s1_l1")), "bn1")           # [N, 64]
    h = bn_relu(lin(h, sw("s1_l2")), "bn2")           # [N, 64]
    x1 = bn_relu(lin(h, sw("s1_l3")), "bn3")          # [N, 128]

    # ---- seq2 ---------------------------------------------------------------
    h = bn_relu(lin(x1, sw("s2_l1")), "bn4")          # [N, 256]
    cps[0].wait()
    h = bn_relu(lin(h, w_s2l2[...]), "bn5")           # [N, 512]
    cps[1].wait()
    x2 = lin(h, w_s2l3[...], bias="b_s2_l3")          # [N, 1024]

    # ---- attention over points (softmax along dim 0) ------------------------
    cps[2].wait()
    a = bn_relu(lin(x2, w_att1[...]), "bn_a1")        # [N, 128]
    a = bn_relu(lin(a, sw("att_l2")), "bn_a2")        # [N, 32]
    aw = lin(a, sw("att_l3"), bias="b_att3")          # [N, 1]
    aw = aw - jnp.max(aw, axis=0, keepdims=True)
    e = jnp.exp(aw)
    inv_den = pl.reciprocal(jnp.sum(e, axis=0, keepdims=True), approx=True)
    gf = x2 * (e * inv_den)                           # [N, 1024]

    # ---- seq3 first Linear, reassociated with the gf[batch] gather ----------
    # concat([gf[batch], x1]) @ W == onehot @ (gf @ W_gf) + x1 @ W_x1, so the
    # K=1024 matmul runs on gf directly and the one-hot gather only touches
    # the [N, 256] result (exact f32 row selection, no gf_b bf16 rounding).
    cps[3].wait()
    h_gf = lin(gf, w_s3gf[...])                       # [N, 256]
    ids = batch_ref[...]                              # [N, 1] int32
    cols = jax.lax.broadcasted_iota(jnp.int32, (n, n), 1)
    onehot = (cols == ids).astype(jnp.float32)        # [N, N]
    h_g = jnp.dot(onehot, h_gf, preferred_element_type=jnp.float32)
    h = bn_relu(h_g + lin(x1, sw("s3_wx1")), "bn_s31")   # [N, 256]
    h = bn_relu(lin(h, sw("s3_l2")), "bn_s32")        # [N, 128]
    h = bn_relu(lin(h, sw("s3_l3")), "bn_s33")        # [N, 32]
    h = lin(h, sw("s3_l4"), bias="b_s3_l4")           # [N, 3]
    out_ref[...] = jax.nn.sigmoid(h)


def init_params(key):
    """Deterministic parameters.

    Returns (wsmall[bf16], fbuf[f32], w_s2l2, w_s2l3, w_att1, w_s3gf) with all
    Linear weights in [in, out] layout (transpose of torch) and PyTorch-like
    uniform init.  Biases of Linears followed by BN are omitted (they cancel
    under training-mode BatchNorm)."""
    wsmall = jnp.zeros((SMALL_W_ROWS, SMALL_W_LANES), jnp.float32)
    for name, din, dout, fan_in in SMALL_WEIGHTS:
        key, kw = jax.random.split(key)
        bound = 1.0 / (fan_in ** 0.5)
        w = jax.random.uniform(kw, (din, dout), jnp.float32, -bound, bound)
        r = SMALL_W_OFF[name]
        wsmall = wsmall.at[r:r + din, 0:dout].set(w)
    wsmall = wsmall.astype(jnp.bfloat16)

    bias_fan_in = {"b_s2_l3": 512, "b_att3": 32, "b_s3_l4": 32}
    fbuf = jnp.zeros((F32_ROWS, F32_LANES), jnp.float32)
    for i, (name, c) in enumerate(F32_PARAMS):
        key, kp = jax.random.split(key)
        if name.startswith("b_"):
            bound = 1.0 / (bias_fan_in[name] ** 0.5)
            v = jax.random.uniform(kp, (c,), jnp.float32, -bound, bound)
        elif name.endswith("_g"):
            v = 1.0 + 0.1 * jax.random.normal(kp, (c,), jnp.float32)
        else:
            v = 0.1 * jax.random.normal(kp, (c,), jnp.float32)
        fbuf = fbuf.at[i, 0:c].set(v)

    big = []
    for name, din, dout, fan_in in BIG_WEIGHTS:
        key, kw = jax.random.split(key)
        bound = 1.0 / (fan_in ** 0.5)
        w = jax.random.uniform(kw, (din, dout), jnp.float32, -bound, bound)
        big.append(w.astype(jnp.bfloat16))

    return (wsmall, fbuf, *big)


def pointcolorer_forward(x, batch, params):
    n = x.shape[0]
    batch2 = batch.reshape(n, 1).astype(jnp.int32)
    wsmall, fbuf, w_s2l2, w_s2l3, w_att1, w_s3gf = params
    vmem = pl.BlockSpec(memory_space=pltpu.MemorySpace.VMEM)
    hbm = pl.BlockSpec(memory_space=pl.ANY)   # raw ref, DMA'd manually in-kernel
    return pl.pallas_call(
        pointcolorer_kernel,
        out_shape=jax.ShapeDtypeStruct((n, 3), jnp.float32),
        in_specs=[vmem, vmem, vmem, vmem, hbm, hbm, hbm, hbm],
        out_specs=vmem,
        scratch_shapes=[
            pltpu.VMEM((256, 512), jnp.bfloat16),
            pltpu.VMEM((512, 1024), jnp.bfloat16),
            pltpu.VMEM((1024, 128), jnp.bfloat16),
            pltpu.VMEM((1024, 256), jnp.bfloat16),
            pltpu.SemaphoreType.DMA((4,)),
        ],
        compiler_params=pltpu.CompilerParams(vmem_limit_bytes=32 * 1024 * 1024),
    )(x, batch2, wsmall, fbuf, w_s2l2, w_s2l3, w_att1, w_s3gf)


if __name__ == "__main__":
    key = jax.random.PRNGKey(0)
    kx, kb, kp = jax.random.split(key, 3)

    N = 64                                             # number of points
    NUM_CLOUDS = 4
    x = jax.random.normal(kx, (N, 4), jnp.float32)     # [N, 4] per-point features
    batch = jax.random.randint(kb, (N,), 0, NUM_CLOUDS, jnp.int32)
    params = init_params(kp)

    out = pointcolorer_forward(x, batch, params)
    out = jax.block_until_ready(out)
    assert out.shape == (N, 3) and out.dtype == jnp.float32
    assert bool(jnp.all(jnp.isfinite(out)))
    assert bool(jnp.all((out >= 0.0) & (out <= 1.0)))  # sigmoid range
    print("KERNEL_OK")
</pallas_src>

<mosaic_0001>
module attributes {stable_mosaic.version = 11 : i64} {
  func.func @pointcolorer_kernel(%arg0: memref<64x4xf32, #tpu.memory_space<vmem>>, %arg1: memref<64x1xi32, #tpu.memory_space<vmem>>, %arg2: memref<976x256xbf16, #tpu.memory_space<vmem>>, %arg3: memref<23x1024xf32, #tpu.memory_space<vmem>>, %arg4: memref<256x512xbf16, #tpu.memory_space<any>>, %arg5: memref<512x1024xbf16, #tpu.memory_space<any>>, %arg6: memref<1024x128xbf16, #tpu.memory_space<any>>, %arg7: memref<1024x256xbf16, #tpu.memory_space<any>>, %arg8: memref<64x3xf32, #tpu.memory_space<vmem>>, %arg9: memref<256x512xbf16, #tpu.memory_space<vmem>>, %arg10: memref<512x1024xbf16, #tpu.memory_space<vmem>>, %arg11: memref<1024x128xbf16, #tpu.memory_space<vmem>>, %arg12: memref<1024x256xbf16, #tpu.memory_space<vmem>>, %arg13: memref<4x!tpu.dma_semaphore, #tpu.memory_space<semaphore_mem>>) attributes {dimension_semantics = [], scalar_prefetch = 0 : i64, scratch_operands = 5 : i64, tpu.core_type = #tpu.core_type<tc>} {
    %c0_i32 = arith.constant 0 : i32
    %0 = tpu.memref_slice %arg13[%c0_i32] : memref<4x!tpu.dma_semaphore, #tpu.memory_space<semaphore_mem>> -> memref<1x!tpu.dma_semaphore, #tpu.memory_space<semaphore_mem>>
    %1 = tpu.memref_squeeze %0 : memref<1x!tpu.dma_semaphore, #tpu.memory_space<semaphore_mem>> -> memref<!tpu.dma_semaphore, #tpu.memory_space<semaphore_mem>>
    tpu.enqueue_dma source(%arg4 : memref<256x512xbf16, #tpu.memory_space<any>>) target(%arg9 : memref<256x512xbf16, #tpu.memory_space<vmem>>) target_semaphore(%1 : memref<!tpu.dma_semaphore, #tpu.memory_space<semaphore_mem>>)
    %c1_i32 = arith.constant 1 : i32
    %2 = tpu.memref_slice %arg13[%c1_i32] : memref<4x!tpu.dma_semaphore, #tpu.memory_space<semaphore_mem>> -> memref<1x!tpu.dma_semaphore, #tpu.memory_space<semaphore_mem>>
    %3 = tpu.memref_squeeze %2 : memref<1x!tpu.dma_semaphore, #tpu.memory_space<semaphore_mem>> -> memref<!tpu.dma_semaphore, #tpu.memory_space<semaphore_mem>>
    tpu.enqueue_dma source(%arg5 : memref<512x1024xbf16, #tpu.memory_space<any>>) target(%arg10 : memref<512x1024xbf16, #tpu.memory_space<vmem>>) target_semaphore(%3 : memref<!tpu.dma_semaphore, #tpu.memory_space<semaphore_mem>>)
    %c2_i32 = arith.constant 2 : i32
    %4 = tpu.memref_slice %arg13[%c2_i32] : memref<4x!tpu.dma_semaphore, #tpu.memory_space<semaphore_mem>> -> memref<1x!tpu.dma_semaphore, #tpu.memory_space<semaphore_mem>>
    %5 = tpu.memref_squeeze %4 : memref<1x!tpu.dma_semaphore, #tpu.memory_space<semaphore_mem>> -> memref<!tpu.dma_semaphore, #tpu.memory_space<semaphore_mem>>
    tpu.enqueue_dma source(%arg6 : memref<1024x128xbf16, #tpu.memory_space<any>>) target(%arg11 : memref<1024x128xbf16, #tpu.memory_space<vmem>>) target_semaphore(%5 : memref<!tpu.dma_semaphore, #tpu.memory_space<semaphore_mem>>)
    %c3_i32 = arith.constant 3 : i32
    %6 = tpu.memref_slice %arg13[%c3_i32] : memref<4x!tpu.dma_semaphore, #tpu.memory_space<semaphore_mem>> -> memref<1x!tpu.dma_semaphore, #tpu.memory_space<semaphore_mem>>
    %7 = tpu.memref_squeeze %6 : memref<1x!tpu.dma_semaphore, #tpu.memory_space<semaphore_mem>> -> memref<!tpu.dma_semaphore, #tpu.memory_space<semaphore_mem>>
    tpu.enqueue_dma source(%arg7 : memref<1024x256xbf16, #tpu.memory_space<any>>) target(%arg12 : memref<1024x256xbf16, #tpu.memory_space<vmem>>) target_semaphore(%7 : memref<!tpu.dma_semaphore, #tpu.memory_space<semaphore_mem>>)
    %c0 = arith.constant 0 : index
    %c0_0 = arith.constant 0 : index
    %8 = vector.load %arg0[%c0, %c0_0] : memref<64x4xf32, #tpu.memory_space<vmem>>, vector<64x4xf32>
    %c0_1 = arith.constant 0 : index
    %c0_2 = arith.constant 0 : index
    %9 = vector.load %arg2[%c0_1, %c0_2] : memref<976x256xbf16, #tpu.memory_space<vmem>>, vector<4x64xbf16>
    %10 = arith.truncf %8 : vector<64x4xf32> to vector<64x4xbf16>
    %cst = arith.constant dense<0.000000e+00> : vector<64x64xf32>
    %11 = tpu.matmul %10, %9, %cst {dimension_numbers = #tpu.dot_dimension_numbers<[1], [0], [0], [1], [0, 0, 1, 1], [], []>} : vector<64x4xbf16>, vector<4x64xbf16>, vector<64x64xf32> -> vector<64x64xf32>
    %cst_3 = arith.constant dense<0.000000e+00> : vector<64xf32>
    %12 = vector.multi_reduction <add>, %11, %cst_3 [0] : vector<64x64xf32> to vector<64xf32>
    %13 = vector.shape_cast %12 : vector<64xf32> to vector<1x64xf32>
    %cst_4 = arith.constant 6.400000e+01 : f32
    %14 = vector.broadcast %cst_4 : f32 to vector<1x64xf32>
    %15 = arith.divf %13, %14 : vector<1x64xf32>
    %16 = vector.broadcast %15 : vector<1x64xf32> to vector<64x64xf32>
    %17 = arith.subf %11, %16 : vector<64x64xf32>
    %18 = arith.mulf %17, %17 : vector<64x64xf32>
    %cst_5 = arith.constant dense<0.000000e+00> : vector<64xf32>
    %19 = vector.multi_reduction <add>, %18, %cst_5 [0] : vector<64x64xf32> to vector<64xf32>
    %20 = vector.shape_cast %19 : vector<64xf32> to vector<1x64xf32>
    %cst_6 = arith.constant 6.400000e+01 : f32
    %21 = vector.broadcast %cst_6 : f32 to vector<1x64xf32>
    %22 = arith.divf %20, %21 : vector<1x64xf32>
    %c0_7 = arith.constant 0 : index
    %c0_8 = arith.constant 0 : index
    %23 = vector.load %arg3[%c0_7, %c0_8] : memref<23x1024xf32, #tpu.memory_space<vmem>>, vector<1x64xf32>
    %cst_9 = arith.constant 9.99999974E-6 : f32
    %24 = vector.broadcast %cst_9 : f32 to vector<1x64xf32>
    %25 = arith.addf %22, %24 : vector<1x64xf32>
    %26 = math.rsqrt %25 : vector<1x64xf32>
    %27 = arith.mulf %23, %26 : vector<1x64xf32>
    %28 = vector.broadcast %27 : vector<1x64xf32> to vector<64x64xf32>
    %29 = arith.mulf %17, %28 : vector<64x64xf32>
    %c1 = arith.constant 1 : index
    %c0_10 = arith.constant 0 : index
    %30 = vector.load %arg3[%c1, %c0_10] : memref<23x1024xf32, #tpu.memory_space<vmem>>, vector<1x64xf32>
    %31 = vector.broadcast %30 : vector<1x64xf32> to vector<64x64xf32>
    %32 = arith.addf %29, %31 : vector<64x64xf32>
    %cst_11 = arith.constant 0.000000e+00 : f32
    %33 = vector.broadcast %cst_11 : f32 to vector<64x64xf32>
    %34 = arith.maximumf %32, %33 : vector<64x64xf32>
    %c16 = arith.constant 16 : index
    %c0_12 = arith.constant 0 : index
    %35 = vector.load %arg2[%c16, %c0_12] : memref<976x256xbf16, #tpu.memory_space<vmem>>, vector<64x64xbf16>
    %36 = arith.truncf %34 : vector<64x64xf32> to vector<64x64xbf16>
    %cst_13 = arith.constant dense<0.000000e+00> : vector<64x64xf32>
    %37 = tpu.matmul %36, %35, %cst_13 {dimension_numbers = #tpu.dot_dimension_numbers<[1], [0], [0], [1], [0, 0, 1, 1], [], []>} : vector<64x64xbf16>, vector<64x64xbf16>, vector<64x64xf32> -> vector<64x64xf32>
    %cst_14 = arith.constant dense<0.000000e+00> : vector<64xf32>
    %38 = vector.multi_reduction <add>, %37, %cst_14 [0] : vector<64x64xf32> to vector<64xf32>
    %39 = vector.shape_cast %38 : vector<64xf32> to vector<1x64xf32>
    %cst_15 = arith.constant 6.400000e+01 : f32
    %40 = vector.broadcast %cst_15 : f32 to vector<1x64xf32>
    %41 = arith.divf %39, %40 : vector<1x64xf32>
    %42 = vector.broadcast %41 : vector<1x64xf32> to vector<64x64xf32>
    %43 = arith.subf %37, %42 : vector<64x64xf32>
    %44 = arith.mulf %43, %43 : vector<64x64xf32>
    %cst_16 = arith.constant dense<0.000000e+00> : vector<64xf32>
    %45 = vector.multi_reduction <add>, %44, %cst_16 [0] : vector<64x64xf32> to vector<64xf32>
    %46 = vector.shape_cast %45 : vector<64xf32> to vector<1x64xf32>
    %cst_17 = arith.constant 6.400000e+01 : f32
    %47 = vector.broadcast %cst_17 : f32 to vector<1x64xf32>
    %48 = arith.divf %46, %47 : vector<1x64xf32>
    %c2 = arith.constant 2 : index
    %c0_18 = arith.constant 0 : index
    %49 = vector.load %arg3[%c2, %c0_18] : memref<23x1024xf32, #tpu.memory_space<vmem>>, vector<1x64xf32>
    %cst_19 = arith.constant 9.99999974E-6 : f32
    %50 = vector.broadcast %cst_19 : f32 to vector<1x64xf32>
    %51 = arith.addf %48, %50 : vector<1x64xf32>
    %52 = math.rsqrt %51 : vector<1x64xf32>
    %53 = arith.mulf %49, %52 : vector<1x64xf32>
    %54 = vector.broadcast %53 : vector<1x64xf32> to vector<64x64xf32>
    %55 = arith.mulf %43, %54 : vector<64x64xf32>
    %c3 = arith.constant 3 : index
    %c0_20 = arith.constant 0 : index
    %56 = vector.load %arg3[%c3, %c0_20] : memref<23x1024xf32, #tpu.memory_space<vmem>>, vector<1x64xf32>
    %57 = vector.broadcast %56 : vector<1x64xf32> to vector<64x64xf32>
    %58 = arith.addf %55, %57 : vector<64x64xf32>
    %cst_21 = arith.constant 0.000000e+00 : f32
    %59 = vector.broadcast %cst_21 : f32 to vector<64x64xf32>
    %60 = arith.maximumf %58, %59 : vector<64x64xf32>
    %c80 = arith.constant 80 : index
    %c0_22 = arith.constant 0 : index
    %61 = vector.load %arg2[%c80, %c0_22] : memref<976x256xbf16, #tpu.memory_space<vmem>>, vector<64x128xbf16>
    %62 = arith.truncf %60 : vector<64x64xf32> to vector<64x64xbf16>
    %cst_23 = arith.constant dense<0.000000e+00> : vector<64x128xf32>
    %63 = tpu.matmul %62, %61, %cst_23 {dimension_numbers = #tpu.dot_dimension_numbers<[1], [0], [0], [1], [0, 0, 1, 1], [], []>} : vector<64x64xbf16>, vector<64x128xbf16>, vector<64x128xf32> -> vector<64x128xf32>
    %cst_24 = arith.constant dense<0.000000e+00> : vector<128xf32>
    %64 = vector.multi_reduction <add>, %63, %cst_24 [0] : vector<64x128xf32> to vector<128xf32>
    %65 = vector.shape_cast %64 : vector<128xf32> to vector<1x128xf32>
    %cst_25 = arith.constant 6.400000e+01 : f32
    %66 = vector.broadcast %cst_25 : f32 to vector<1x128xf32>
    %67 = arith.divf %65, %66 : vector<1x128xf32>
    %68 = vector.broadcast %67 : vector<1x128xf32> to vector<64x128xf32>
    %69 = arith.subf %63, %68 : vector<64x128xf32>
    %70 = arith.mulf %69, %69 : vector<64x128xf32>
    %cst_26 = arith.constant dense<0.000000e+00> : vector<128xf32>
    %71 = vector.multi_reduction <add>, %70, %cst_26 [0] : vector<64x128xf32> to vector<128xf32>
    %72 = vector.shape_cast %71 : vector<128xf32> to vector<1x128xf32>
    %cst_27 = arith.constant 6.400000e+01 : f32
    %73 = vector.broadcast %cst_27 : f32 to vector<1x128xf32>
    %74 = arith.divf %72, %73 : vector<1x128xf32>
    %c4 = arith.constant 4 : index
    %c0_28 = arith.constant 0 : index
    %75 = vector.load %arg3[%c4, %c0_28] : memref<23x1024xf32, #tpu.memory_space<vmem>>, vector<1x128xf32>
    %cst_29 = arith.constant 9.99999974E-6 : f32
    %76 = vector.broadcast %cst_29 : f32 to vector<1x128xf32>
    %77 = arith.addf %74, %76 : vector<1x128xf32>
    %78 = math.rsqrt %77 : vector<1x128xf32>
    %79 = arith.mulf %75, %78 : vector<1x128xf32>
    %80 = vector.broadcast %79 : vector<1x128xf32> to vector<64x128xf32>
    %81 = arith.mulf %69, %80 : vector<64x128xf32>
    %c5 = arith.constant 5 : index
    %c0_30 = arith.constant 0 : index
    %82 = vector.load %arg3[%c5, %c0_30] : memref<23x1024xf32, #tpu.memory_space<vmem>>, vector<1x128xf32>
    %83 = vector.broadcast %82 : vector<1x128xf32> to vector<64x128xf32>
    %84 = arith.addf %81, %83 : vector<64x128xf32>
    %cst_31 = arith.constant 0.000000e+00 : f32
    %85 = vector.broadcast %cst_31 : f32 to vector<64x128xf32>
    %86 = arith.maximumf %84, %85 : vector<64x128xf32>
    %c144 = arith.constant 144 : index
    %c0_32 = arith.constant 0 : index
    %87 = vector.load %arg2[%c144, %c0_32] : memref<976x256xbf16, #tpu.memory_space<vmem>>, vector<128x256xbf16>
    %88 = arith.truncf %86 : vector<64x128xf32> to vector<64x128xbf16>
    %cst_33 = arith.constant dense<0.000000e+00> : vector<64x256xf32>
    %89 = tpu.matmul %88, %87, %cst_33 {dimension_numbers = #tpu.dot_dimension_numbers<[1], [0], [0], [1], [0, 0, 1, 1], [], []>} : vector<64x128xbf16>, vector<128x256xbf16>, vector<64x256xf32> -> vector<64x256xf32>
    %cst_34 = arith.constant dense<0.000000e+00> : vector<256xf32>
    %90 = vector.multi_reduction <add>, %89, %cst_34 [0] : vector<64x256xf32> to vector<256xf32>
    %91 = vector.shape_cast %90 : vector<256xf32> to vector<1x256xf32>
    %cst_35 = arith.constant 6.400000e+01 : f32
    %92 = vector.broadcast %cst_35 : f32 to vector<1x256xf32>
    %93 = arith.divf %91, %92 : vector<1x256xf32>
    %94 = vector.broadcast %93 : vector<1x256xf32> to vector<64x256xf32>
    %95 = arith.subf %89, %94 : vector<64x256xf32>
    %96 = arith.mulf %95, %95 : vector<64x256xf32>
    %cst_36 = arith.constant dense<0.000000e+00> : vector<256xf32>
    %97 = vector.multi_reduction <add>, %96, %cst_36 [0] : vector<64x256xf32> to vector<256xf32>
    %98 = vector.shape_cast %97 : vector<256xf32> to vector<1x256xf32>
    %cst_37 = arith.constant 6.400000e+01 : f32
    %99 = vector.broadcast %cst_37 : f32 to vector<1x256xf32>
    %100 = arith.divf %98, %99 : vector<1x256xf32>
    %c6 = arith.constant 6 : index
    %c0_38 = arith.constant 0 : index
    %101 = vector.load %arg3[%c6, %c0_38] : memref<23x1024xf32, #tpu.memory_space<vmem>>, vector<1x256xf32>
    %cst_39 = arith.constant 9.99999974E-6 : f32
    %102 = vector.broadcast %cst_39 : f32 to vector<1x256xf32>
    %103 = arith.addf %100, %102 : vector<1x256xf32>
    %104 = math.rsqrt %103 : vector<1x256xf32>
    %105 = arith.mulf %101, %104 : vector<1x256xf32>
    %106 = vector.broadcast %105 : vector<1x256xf32> to vector<64x256xf32>
    %107 = arith.mulf %95, %106 : vector<64x256xf32>
    %c7 = arith.constant 7 : index
    %c0_40 = arith.constant 0 : index
    %108 = vector.load %arg3[%c7, %c0_40] : memref<23x1024xf32, #tpu.memory_space<vmem>>, vector<1x256xf32>
    %109 = vector.broadcast %108 : vector<1x256xf32> to vector<64x256xf32>
    %110 = arith.addf %107, %109 : vector<64x256xf32>
    %cst_41 = arith.constant 0.000000e+00 : f32
    %111 = vector.broadcast %cst_41 : f32 to vector<64x256xf32>
    %112 = arith.maximumf %110, %111 : vector<64x256xf32>
    %c0_i32_42 = arith.constant 0 : i32
    %113 = tpu.memref_slice %arg13[%c0_i32_42] : memref<4x!tpu.dma_semaphore, #tpu.memory_space<semaphore_mem>> -> memref<1x!tpu.dma_semaphore, #tpu.memory_space<semaphore_mem>>
    %114 = tpu.memref_squeeze %113 : memref<1x!tpu.dma_semaphore, #tpu.memory_space<semaphore_mem>> -> memref<!tpu.dma_semaphore, #tpu.memory_space<semaphore_mem>>
    tpu.wait_dma2 semaphore(%114 : memref<!tpu.dma_semaphore, #tpu.memory_space<semaphore_mem>>) src(%arg4 : memref<256x512xbf16, #tpu.memory_space<any>>) dst(%arg9 : memref<256x512xbf16, #tpu.memory_space<vmem>>)
    %c0_43 = arith.constant 0 : index
    %c0_44 = arith.constant 0 : index
    %115 = vector.load %arg9[%c0_43, %c0_44] : memref<256x512xbf16, #tpu.memory_space<vmem>>, vector<256x512xbf16>
    %116 = arith.truncf %112 : vector<64x256xf32> to vector<64x256xbf16>
    %cst_45 = arith.constant dense<0.000000e+00> : vector<64x512xf32>
    %117 = tpu.matmul %116, %115, %cst_45 {dimension_numbers = #tpu.dot_dimension_numbers<[1], [0], [0], [1], [0, 0, 1, 1], [], []>} : vector<64x256xbf16>, vector<256x512xbf16>, vector<64x512xf32> -> vector<64x512xf32>
    %cst_46 = arith.constant dense<0.000000e+00> : vector<512xf32>
    %118 = vector.multi_reduction <add>, %117, %cst_46 [0] : vector<64x512xf32> to vector<512xf32>
    %119 = vector.shape_cast %118 : vector<512xf32> to vector<1x512xf32>
    %cst_47 = arith.constant 6.400000e+01 : f32
    %120 = vector.broadcast %cst_47 : f32 to vector<1x512xf32>
    %121 = arith.divf %119, %120 : vector<1x512xf32>
    %122 = vector.broadcast %121 : vector<1x512xf32> to vector<64x512xf32>
    %123 = arith.subf %117, %122 : vector<64x512xf32>
    %124 = arith.mulf %123, %123 : vector<64x512xf32>
    %cst_48 = arith.constant dense<0.000000e+00> : vector<512xf32>
    %125 = vector.multi_reduction <add>, %124, %cst_48 [0] : vector<64x512xf32> to vector<512xf32>
    %126 = vector.shape_cast %125 : vector<512xf32> to vector<1x512xf32>
    %cst_49 = arith.constant 6.400000e+01 : f32
    %127 = vector.broadcast %cst_49 : f32 to vector<1x512xf32>
    %128 = arith.divf %126, %127 : vector<1x512xf32>
    %c8 = arith.constant 8 : index
    %c0_50 = arith.constant 0 : index
    %129 = vector.load %arg3[%c8, %c0_50] : memref<23x1024xf32, #tpu.memory_space<vmem>>, vector<1x512xf32>
    %cst_51 = arith.constant 9.99999974E-6 : f32
    %130 = vector.broadcast %cst_51 : f32 to vector<1x512xf32>
    %131 = arith.addf %128, %130 : vector<1x512xf32>
    %132 = math.rsqrt %131 : vector<1x512xf32>
    %133 = arith.mulf %129, %132 : vector<1x512xf32>
    %134 = vector.broadcast %133 : vector<1x512xf32> to vector<64x512xf32>
    %135 = arith.mulf %123, %134 : vector<64x512xf32>
    %c9 = arith.constant 9 : index
    %c0_52 = arith.constant 0 : index
    %136 = vector.load %arg3[%c9, %c0_52] : memref<23x1024xf32, #tpu.memory_space<vmem>>, vector<1x512xf32>
    %137 = vector.broadcast %136 : vector<1x512xf32> to vector<64x512xf32>
    %138 = arith.addf %135, %137 : vector<64x512xf32>
    %cst_53 = arith.constant 0.000000e+00 : f32
    %139 = vector.broadcast %cst_53 : f32 to vector<64x512xf32>
    %140 = arith.maximumf %138, %139 : vector<64x512xf32>
    %c1_i32_54 = arith.constant 1 : i32
    %141 = tpu.memref_slice %arg13[%c1_i32_54] : memref<4x!tpu.dma_semaphore, #tpu.memory_space<semaphore_mem>> -> memref<1x!tpu.dma_semaphore, #tpu.memory_space<semaphore_mem>>
    %142 = tpu.memref_squeeze %141 : memref<1x!tpu.dma_semaphore, #tpu.memory_space<semaphore_mem>> -> memref<!tpu.dma_semaphore, #tpu.memory_space<semaphore_mem>>
    tpu.wait_dma2 semaphore(%142 : memref<!tpu.dma_semaphore, #tpu.memory_space<semaphore_mem>>) src(%arg5 : memref<512x1024xbf16, #tpu.memory_space<any>>) dst(%arg10 : memref<512x1024xbf16, #tpu.memory_space<vmem>>)
    %c0_55 = arith.constant 0 : index
    %c0_56 = arith.constant 0 : index
    %143 = vector.load %arg10[%c0_55, %c0_56] : memref<512x1024xbf16, #tpu.memory_space<vmem>>, vector<512x1024xbf16>
    %144 = arith.truncf %140 : vector<64x512xf32> to vector<64x512xbf16>
    %cst_57 = arith.constant dense<0.000000e+00> : vector<64x1024xf32>
    %145 = tpu.matmul %144, %143, %cst_57 {dimension_numbers = #tpu.dot_dimension_numbers<[1], [0], [0], [1], [0, 0, 1, 1], [], []>} : vector<64x512xbf16>, vector<512x1024xbf16>, vector<64x1024xf32> -> vector<64x1024xf32>
    %c10 = arith.constant 10 : index
    %c0_58 = arith.constant 0 : index
    %146 = vector.load %arg3[%c10, %c0_58] : memref<23x1024xf32, #tpu.memory_space<vmem>>, vector<1x1024xf32>
    %147 = vector.broadcast %146 : vector<1x1024xf32> to vector<64x1024xf32>
    %148 = arith.addf %145, %147 : vector<64x1024xf32>
    %c2_i32_59 = arith.constant 2 : i32
    %149 = tpu.memref_slice %arg13[%c2_i32_59] : memref<4x!tpu.dma_semaphore, #tpu.memory_space<semaphore_mem>> -> memref<1x!tpu.dma_semaphore, #tpu.memory_space<semaphore_mem>>
    %150 = tpu.memref_squeeze %149 : memref<1x!tpu.dma_semaphore, #tpu.memory_space<semaphore_mem>> -> memref<!tpu.dma_semaphore, #tpu.memory_space<semaphore_mem>>
    tpu.wait_dma2 semaphore(%150 : memref<!tpu.dma_semaphore, #tpu.memory_space<semaphore_mem>>) src(%arg6 : memref<1024x128xbf16, #tpu.memory_space<any>>) dst(%arg11 : memref<1024x128xbf16, #tpu.memory_space<vmem>>)
    %c0_60 = arith.constant 0 : index
    %c0_61 = arith.constant 0 : index
    %151 = vector.load %arg11[%c0_60, %c0_61] : memref<1024x128xbf16, #tpu.memory_space<vmem>>, vector<1024x128xbf16>
    %152 = arith.truncf %148 : vector<64x1024xf32> to vector<64x1024xbf16>
    %cst_62 = arith.constant dense<0.000000e+00> : vector<64x128xf32>
    %153 = tpu.matmul %152, %151, %cst_62 {dimension_numbers = #tpu.dot_dimension_numbers<[1], [0], [0], [1], [0, 0, 1, 1], [], []>} : vector<64x1024xbf16>, vector<1024x128xbf16>, vector<64x128xf32> -> vector<64x128xf32>
    %cst_63 = arith.constant dense<0.000000e+00> : vector<128xf32>
    %154 = vector.multi_reduction <add>, %153, %cst_63 [0] : vector<64x128xf32> to vector<128xf32>
    %155 = vector.shape_cast %154 : vector<128xf32> to vector<1x128xf32>
    %cst_64 = arith.constant 6.400000e+01 : f32
    %156 = vector.broadcast %cst_64 : f32 to vector<1x128xf32>
    %157 = arith.divf %155, %156 : vector<1x128xf32>
    %158 = vector.broadcast %157 : vector<1x128xf32> to vector<64x128xf32>
    %159 = arith.subf %153, %158 : vector<64x128xf32>
    %160 = arith.mulf %159, %159 : vector<64x128xf32>
    %cst_65 = arith.constant dense<0.000000e+00> : vector<128xf32>
    %161 = vector.multi_reduction <add>, %160, %cst_65 [0] : vector<64x128xf32> to vector<128xf32>
    %162 = vector.shape_cast %161 : vector<128xf32> to vector<1x128xf32>
    %cst_66 = arith.constant 6.400000e+01 : f32
    %163 = vector.broadcast %cst_66 : f32 to vector<1x128xf32>
    %164 = arith.divf %162, %163 : vector<1x128xf32>
    %c11 = arith.constant 11 : index
    %c0_67 = arith.constant 0 : index
    %165 = vector.load %arg3[%c11, %c0_67] : memref<23x1024xf32, #tpu.memory_space<vmem>>, vector<1x128xf32>
    %cst_68 = arith.constant 9.99999974E-6 : f32
    %166 = vector.broadcast %cst_68 : f32 to vector<1x128xf32>
    %167 = arith.addf %164, %166 : vector<1x128xf32>
    %168 = math.rsqrt %167 : vector<1x128xf32>
    %169 = arith.mulf %165, %168 : vector<1x128xf32>
    %170 = vector.broadcast %169 : vector<1x128xf32> to vector<64x128xf32>
    %171 = arith.mulf %159, %170 : vector<64x128xf32>
    %c12 = arith.constant 12 : index
    %c0_69 = arith.constant 0 : index
    %172 = vector.load %arg3[%c12, %c0_69] : memref<23x1024xf32, #tpu.memory_space<vmem>>, vector<1x128xf32>
    %173 = vector.broadcast %172 : vector<1x128xf32> to vector<64x128xf32>
    %174 = arith.addf %171, %173 : vector<64x128xf32>
    %cst_70 = arith.constant 0.000000e+00 : f32
    %175 = vector.broadcast %cst_70 : f32 to vector<64x128xf32>
    %176 = arith.maximumf %174, %175 : vector<64x128xf32>
    %c272 = arith.constant 272 : index
    %c0_71 = arith.constant 0 : index
    %177 = vector.load %arg2[%c272, %c0_71] : memref<976x256xbf16, #tpu.memory_space<vmem>>, vector<128x32xbf16>
    %178 = arith.truncf %176 : vector<64x128xf32> to vector<64x128xbf16>
    %cst_72 = arith.constant dense<0.000000e+00> : vector<64x32xf32>
    %179 = tpu.matmul %178, %177, %cst_72 {dimension_numbers = #tpu.dot_dimension_numbers<[1], [0], [0], [1], [0, 0, 1, 1], [], []>} : vector<64x128xbf16>, vector<128x32xbf16>, vector<64x32xf32> -> vector<64x32xf32>
    %cst_73 = arith.constant dense<0.000000e+00> : vector<32xf32>
    %180 = vector.multi_reduction <add>, %179, %cst_73 [0] : vector<64x32xf32> to vector<32xf32>
    %181 = vector.shape_cast %180 : vector<32xf32> to vector<1x32xf32>
    %cst_74 = arith.constant 6.400000e+01 : f32
    %182 = vector.broadcast %cst_74 : f32 to vector<1x32xf32>
    %183 = arith.divf %181, %182 : vector<1x32xf32>
    %184 = vector.broadcast %183 : vector<1x32xf32> to vector<64x32xf32>
    %185 = arith.subf %179, %184 : vector<64x32xf32>
    %186 = arith.mulf %185, %185 : vector<64x32xf32>
    %cst_75 = arith.constant dense<0.000000e+00> : vector<32xf32>
    %187 = vector.multi_reduction <add>, %186, %cst_75 [0] : vector<64x32xf32> to vector<32xf32>
    %188 = vector.shape_cast %187 : vector<32xf32> to vector<1x32xf32>
    %cst_76 = arith.constant 6.400000e+01 : f32
    %189 = vector.broadcast %cst_76 : f32 to vector<1x32xf32>
    %190 = arith.divf %188, %189 : vector<1x32xf32>
    %c13 = arith.constant 13 : index
    %c0_77 = arith.constant 0 : index
    %191 = vector.load %arg3[%c13, %c0_77] : memref<23x1024xf32, #tpu.memory_space<vmem>>, vector<1x32xf32>
    %cst_78 = arith.constant 9.99999974E-6 : f32
    %192 = vector.broadcast %cst_78 : f32 to vector<1x32xf32>
    %193 = arith.addf %190, %192 : vector<1x32xf32>
    %194 = math.rsqrt %193 : vector<1x32xf32>
    %195 = arith.mulf %191, %194 : vector<1x32xf32>
    %196 = vector.broadcast %195 : vector<1x32xf32> to vector<64x32xf32>
    %197 = arith.mulf %185, %196 : vector<64x32xf32>
    %c14 = arith.constant 14 : index
    %c0_79 = arith.constant 0 : index
    %198 = vector.load %arg3[%c14, %c0_79] : memref<23x1024xf32, #tpu.memory_space<vmem>>, vector<1x32xf32>
    %199 = vector.broadcast %198 : vector<1x32xf32> to vector<64x32xf32>
    %200 = arith.addf %197, %199 : vector<64x32xf32>
    %cst_80 = arith.constant 0.000000e+00 : f32
    %201 = vector.broadcast %cst_80 : f32 to vector<64x32xf32>
    %202 = arith.maximumf %200, %201 : vector<64x32xf32>
    %c400 = arith.constant 400 : index
    %c0_81 = arith.constant 0 : index
    %203 = vector.load %arg2[%c400, %c0_81] : memref<976x256xbf16, #tpu.memory_space<vmem>>, vector<32x1xbf16>
    %204 = arith.truncf %202 : vector<64x32xf32> to vector<64x32xbf16>
    %cst_82 = arith.constant dense<0.000000e+00> : vector<64x1xf32>
    %205 = tpu.matmul %204, %203, %cst_82 {dimension_numbers = #tpu.dot_dimension_numbers<[1], [0], [0], [1], [0, 0, 1, 1], [], []>} : vector<64x32xbf16>, vector<32x1xbf16>, vector<64x1xf32> -> vector<64x1xf32>
    %c15 = arith.constant 15 : index
    %c0_83 = arith.constant 0 : index
    %206 = vector.load %arg3[%c15, %c0_83] : memref<23x1024xf32, #tpu.memory_space<vmem>>, vector<1x1xf32>
    %207 = vector.broadcast %206 : vector<1x1xf32> to vector<64x1xf32>
    %208 = arith.addf %205, %207 : vector<64x1xf32>
    %cst_84 = arith.constant dense<0xFF800000> : vector<1xf32>
    %209 = vector.multi_reduction <maximumf>, %208, %cst_84 [0] : vector<64x1xf32> to vector<1xf32>
    %210 = vector.shape_cast %209 : vector<1xf32> to vector<1x1xf32>
    %211 = vector.broadcast %210 : vector<1x1xf32> to vector<64x1xf32>
    %212 = arith.subf %208, %211 : vector<64x1xf32>
    %213 = math.exp %212 : vector<64x1xf32>
    %cst_85 = arith.constant dense<0.000000e+00> : vector<1xf32>
    %214 = vector.multi_reduction <add>, %213, %cst_85 [0] : vector<64x1xf32> to vector<1xf32>
    %215 = vector.shape_cast %214 : vector<1xf32> to vector<1x1xf32>
    %216 = tpu.reciprocal %215 {approx = true} : vector<1x1xf32> -> vector<1x1xf32>
    %217 = vector.broadcast %216 : vector<1x1xf32> to vector<64x1xf32>
    %218 = arith.mulf %213, %217 : vector<64x1xf32>
    %219 = vector.broadcast %218 : vector<64x1xf32> to vector<64x1024xf32>
    %220 = arith.mulf %148, %219 : vector<64x1024xf32>
    %c3_i32_86 = arith.constant 3 : i32
    %221 = tpu.memref_slice %arg13[%c3_i32_86] : memref<4x!tpu.dma_semaphore, #tpu.memory_space<semaphore_mem>> -> memref<1x!tpu.dma_semaphore, #tpu.memory_space<semaphore_mem>>
    %222 = tpu.memref_squeeze %221 : memref<1x!tpu.dma_semaphore, #tpu.memory_space<semaphore_mem>> -> memref<!tpu.dma_semaphore, #tpu.memory_space<semaphore_mem>>
    tpu.wait_dma2 semaphore(%222 : memref<!tpu.dma_semaphore, #tpu.memory_space<semaphore_mem>>) src(%arg7 : memref<1024x256xbf16, #tpu.memory_space<any>>) dst(%arg12 : memref<1024x256xbf16, #tpu.memory_space<vmem>>)
    %c0_87 = arith.constant 0 : index
    %c0_88 = arith.constant 0 : index
    %223 = vector.load %arg12[%c0_87, %c0_88] : memref<1024x256xbf16, #tpu.memory_space<vmem>>, vector<1024x256xbf16>
    %224 = arith.truncf %220 : vector<64x1024xf32> to vector<64x1024xbf16>
    %cst_89 = arith.constant dense<0.000000e+00> : vector<64x256xf32>
    %225 = tpu.matmul %224, %223, %cst_89 {dimension_numbers = #tpu.dot_dimension_numbers<[1], [0], [0], [1], [0, 0, 1, 1], [], []>} : vector<64x1024xbf16>, vector<1024x256xbf16>, vector<64x256xf32> -> vector<64x256xf32>
    %c0_90 = arith.constant 0 : index
    %c0_91 = arith.constant 0 : index
    %226 = vector.load %arg1[%c0_90, %c0_91] : memref<64x1xi32, #tpu.memory_space<vmem>>, vector<64x1xi32>
    %227 = tpu.iota {dimensions = array<i32: 1>} : vector<64x64xi32>
    %228 = vector.broadcast %226 : vector<64x1xi32> to vector<64x64xi32>
    %229 = arith.cmpi eq, %227, %228 : vector<64x64xi32>
    %230 = arith.extui %229 : vector<64x64xi1> to vector<64x64xi32>
    %231 = arith.sitofp %230 : vector<64x64xi32> to vector<64x64xf32>
    %cst_92 = arith.constant dense<0.000000e+00> : vector<64x256xf32>
    %232 = tpu.matmul %231, %225, %cst_92 {dimension_numbers = #tpu.dot_dimension_numbers<[1], [0], [0], [1], [0, 0, 1, 1], [], []>} : vector<64x64xf32>, vector<64x256xf32>, vector<64x256xf32> -> vector<64x256xf32>
    %c432 = arith.constant 432 : index
    %c0_93 = arith.constant 0 : index
    %233 = vector.load %arg2[%c432, %c0_93] : memref<976x256xbf16, #tpu.memory_space<vmem>>, vector<128x256xbf16>
    %234 = arith.truncf %86 : vector<64x128xf32> to vector<64x128xbf16>
    %cst_94 = arith.constant dense<0.000000e+00> : vector<64x256xf32>
    %235 = tpu.matmul %234, %233, %cst_94 {dimension_numbers = #tpu.dot_dimension_numbers<[1], [0], [0], [1], [0, 0, 1, 1], [], []>} : vector<64x128xbf16>, vector<128x256xbf16>, vector<64x256xf32> -> vector<64x256xf32>
    %236 = arith.addf %232, %235 : vector<64x256xf32>
    %cst_95 = arith.constant dense<0.000000e+00> : vector<256xf32>
    %237 = vector.multi_reduction <add>, %236, %cst_95 [0] : vector<64x256xf32> to vector<256xf32>
    %238 = vector.shape_cast %237 : vector<256xf32> to vector<1x256xf32>
    %cst_96 = arith.constant 6.400000e+01 : f32
    %239 = vector.broadcast %cst_96 : f32 to vector<1x256xf32>
    %240 = arith.divf %238, %239 : vector<1x256xf32>
    %241 = vector.broadcast %240 : vector<1x256xf32> to vector<64x256xf32>
    %242 = arith.subf %236, %241 : vector<64x256xf32>
    %243 = arith.mulf %242, %242 : vector<64x256xf32>
    %cst_97 = arith.constant dense<0.000000e+00> : vector<256xf32>
    %244 = vector.multi_reduction <add>, %243, %cst_97 [0] : vector<64x256xf32> to vector<256xf32>
    %245 = vector.shape_cast %244 : vector<256xf32> to vector<1x256xf32>
    %cst_98 = arith.constant 6.400000e+01 : f32
    %246 = vector.broadcast %cst_98 : f32 to vector<1x256xf32>
    %247 = arith.divf %245, %246 : vector<1x256xf32>
    %c16_99 = arith.constant 16 : index
    %c0_100 = arith.constant 0 : index
    %248 = vector.load %arg3[%c16_99, %c0_100] : memref<23x1024xf32, #tpu.memory_space<vmem>>, vector<1x256xf32>
    %cst_101 = arith.constant 9.99999974E-6 : f32
    %249 = vector.broadcast %cst_101 : f32 to vector<1x256xf32>
    %250 = arith.addf %247, %249 : vector<1x256xf32>
    %251 = math.rsqrt %250 : vector<1x256xf32>
    %252 = arith.mulf %248, %251 : vector<1x256xf32>
    %253 = vector.broadcast %252 : vector<1x256xf32> to vector<64x256xf32>
    %254 = arith.mulf %242, %253 : vector<64x256xf32>
    %c17 = arith.constant 17 : index
    %c0_102 = arith.constant 0 : index
    %255 = vector.load %arg3[%c17, %c0_102] : memref<23x1024xf32, #tpu.memory_space<vmem>>, vector<1x256xf32>
    %256 = vector.broadcast %255 : vector<1x256xf32> to vector<64x256xf32>
    %257 = arith.addf %254, %256 : vector<64x256xf32>
    %cst_103 = arith.constant 0.000000e+00 : f32
    %258 = vector.broadcast %cst_103 : f32 to vector<64x256xf32>
    %259 = arith.maximumf %257, %258 : vector<64x256xf32>
    %c560 = arith.constant 560 : index
    %c0_104 = arith.constant 0 : index
    %260 = vector.load %arg2[%c560, %c0_104] : memref<976x256xbf16, #tpu.memory_space<vmem>>, vector<256x128xbf16>
    %261 = arith.truncf %259 : vector<64x256xf32> to vector<64x256xbf16>
    %cst_105 = arith.constant dense<0.000000e+00> : vector<64x128xf32>
    %262 = tpu.matmul %261, %260, %cst_105 {dimension_numbers = #tpu.dot_dimension_numbers<[1], [0], [0], [1], [0, 0, 1, 1], [], []>} : vector<64x256xbf16>, vector<256x128xbf16>, vector<64x128xf32> -> vector<64x128xf32>
    %cst_106 = arith.constant dense<0.000000e+00> : vector<128xf32>
    %263 = vector.multi_reduction <add>, %262, %cst_106 [0] : vector<64x128xf32> to vector<128xf32>
    %264 = vector.shape_cast %263 : vector<128xf32> to vector<1x128xf32>
    %cst_107 = arith.constant 6.400000e+01 : f32
    %265 = vector.broadcast %cst_107 : f32 to vector<1x128xf32>
    %266 = arith.divf %264, %265 : vector<1x128xf32>
    %267 = vector.broadcast %266 : vector<1x128xf32> to vector<64x128xf32>
    %268 = arith.subf %262, %267 : vector<64x128xf32>
    %269 = arith.mulf %268, %268 : vector<64x128xf32>
    %cst_108 = arith.constant dense<0.000000e+00> : vector<128xf32>
    %270 = vector.multi_reduction <add>, %269, %cst_108 [0] : vector<64x128xf32> to vector<128xf32>
    %271 = vector.shape_cast %270 : vector<128xf32> to vector<1x128xf32>
    %cst_109 = arith.constant 6.400000e+01 : f32
    %272 = vector.broadcast %cst_109 : f32 to vector<1x128xf32>
    %273 = arith.divf %271, %272 : vector<1x128xf32>
    %c18 = arith.constant 18 : index
    %c0_110 = arith.constant 0 : index
    %274 = vector.load %arg3[%c18, %c0_110] : memref<23x1024xf32, #tpu.memory_space<vmem>>, vector<1x128xf32>
    %cst_111 = arith.constant 9.99999974E-6 : f32
    %275 = vector.broadcast %cst_111 : f32 to vector<1x128xf32>
    %276 = arith.addf %273, %275 : vector<1x128xf32>
    %277 = math.rsqrt %276 : vector<1x128xf32>
    %278 = arith.mulf %274, %277 : vector<1x128xf32>
    %279 = vector.broadcast %278 : vector<1x128xf32> to vector<64x128xf32>
    %280 = arith.mulf %268, %279 : vector<64x128xf32>
    %c19 = arith.constant 19 : index
    %c0_112 = arith.constant 0 : index
    %281 = vector.load %arg3[%c19, %c0_112] : memref<23x1024xf32, #tpu.memory_space<vmem>>, vector<1x128xf32>
    %282 = vector.broadcast %281 : vector<1x128xf32> to vector<64x128xf32>
    %283 = arith.addf %280, %282 : vector<64x128xf32>
    %cst_113 = arith.constant 0.000000e+00 : f32
    %284 = vector.broadcast %cst_113 : f32 to vector<64x128xf32>
    %285 = arith.maximumf %283, %284 : vector<64x128xf32>
    %c816 = arith.constant 816 : index
    %c0_114 = arith.constant 0 : index
    %286 = vector.load %arg2[%c816, %c0_114] : memref<976x256xbf16, #tpu.memory_space<vmem>>, vector<128x32xbf16>
    %287 = arith.truncf %285 : vector<64x128xf32> to vector<64x128xbf16>
    %cst_115 = arith.constant dense<0.000000e+00> : vector<64x32xf32>
    %288 = tpu.matmul %287, %286, %cst_115 {dimension_numbers = #tpu.dot_dimension_numbers<[1], [0], [0], [1], [0, 0, 1, 1], [], []>} : vector<64x128xbf16>, vector<128x32xbf16>, vector<64x32xf32> -> vector<64x32xf32>
    %cst_116 = arith.constant dense<0.000000e+00> : vector<32xf32>
    %289 = vector.multi_reduction <add>, %288, %cst_116 [0] : vector<64x32xf32> to vector<32xf32>
    %290 = vector.shape_cast %289 : vector<32xf32> to vector<1x32xf32>
    %cst_117 = arith.constant 6.400000e+01 : f32
    %291 = vector.broadcast %cst_117 : f32 to vector<1x32xf32>
    %292 = arith.divf %290, %291 : vector<1x32xf32>
    %293 = vector.broadcast %292 : vector<1x32xf32> to vector<64x32xf32>
    %294 = arith.subf %288, %293 : vector<64x32xf32>
    %295 = arith.mulf %294, %294 : vector<64x32xf32>
    %cst_118 = arith.constant dense<0.000000e+00> : vector<32xf32>
    %296 = vector.multi_reduction <add>, %295, %cst_118 [0] : vector<64x32xf32> to vector<32xf32>
    %297 = vector.shape_cast %296 : vector<32xf32> to vector<1x32xf32>
    %cst_119 = arith.constant 6.400000e+01 : f32
    %298 = vector.broadcast %cst_119 : f32 to vector<1x32xf32>
    %299 = arith.divf %297, %298 : vector<1x32xf32>
    %c20 = arith.constant 20 : index
    %c0_120 = arith.constant 0 : index
    %300 = vector.load %arg3[%c20, %c0_120] : memref<23x1024xf32, #tpu.memory_space<vmem>>, vector<1x32xf32>
    %cst_121 = arith.constant 9.99999974E-6 : f32
    %301 = vector.broadcast %cst_121 : f32 to vector<1x32xf32>
    %302 = arith.addf %299, %301 : vector<1x32xf32>
    %303 = math.rsqrt %302 : vector<1x32xf32>
    %304 = arith.mulf %300, %303 : vector<1x32xf32>
    %305 = vector.broadcast %304 : vector<1x32xf32> to vector<64x32xf32>
    %306 = arith.mulf %294, %305 : vector<64x32xf32>
    %c21 = arith.constant 21 : index
    %c0_122 = arith.constant 0 : index
    %307 = vector.load %arg3[%c21, %c0_122] : memref<23x1024xf32, #tpu.memory_space<vmem>>, vector<1x32xf32>
    %308 = vector.broadcast %307 : vector<1x32xf32> to vector<64x32xf32>
    %309 = arith.addf %306, %308 : vector<64x32xf32>
    %cst_123 = arith.constant 0.000000e+00 : f32
    %310 = vector.broadcast %cst_123 : f32 to vector<64x32xf32>
    %311 = arith.maximumf %309, %310 : vector<64x32xf32>
    %c944 = arith.constant 944 : index
    %c0_124 = arith.constant 0 : index
    %312 = vector.load %arg2[%c944, %c0_124] : memref<976x256xbf16, #tpu.memory_space<vmem>>, vector<32x3xbf16>
    %313 = arith.truncf %311 : vector<64x32xf32> to vector<64x32xbf16>
    %cst_125 = arith.constant dense<0.000000e+00> : vector<64x3xf32>
    %314 = tpu.matmul %313, %312, %cst_125 {dimension_numbers = #tpu.dot_dimension_numbers<[1], [0], [0], [1], [0, 0, 1, 1], [], []>} : vector<64x32xbf16>, vector<32x3xbf16>, vector<64x3xf32> -> vector<64x3xf32>
    %c22 = arith.constant 22 : index
    %c0_126 = arith.constant 0 : index
    %315 = vector.load %arg3[%c22, %c0_126] : memref<23x1024xf32, #tpu.memory_space<vmem>>, vector<1x3xf32>
    %316 = vector.broadcast %315 : vector<1x3xf32> to vector<64x3xf32>
    %317 = arith.addf %314, %316 : vector<64x3xf32>
    %318 = arith.negf %317 : vector<64x3xf32>
    %319 = math.exp %318 : vector<64x3xf32>
    %cst_127 = arith.constant 1.000000e+00 : f32
    %320 = vector.broadcast %cst_127 : f32 to vector<64x3xf32>
    %321 = arith.addf %320, %319 : vector<64x3xf32>
    %322 = arith.divf %320, %321 : vector<64x3xf32>
    %c0_128 = arith.constant 0 : index
    %c0_129 = arith.constant 0 : index
    %323 = vector.load %arg8[%c0_128, %c0_129] : memref<64x3xf32, #tpu.memory_space<vmem>>, vector<64x3xf32>
    tpu.vector_store %arg8[%c0_128, %c0_129], %322 {strides = array<i32>} : memref<64x3xf32, #tpu.memory_space<vmem>>, vector<64x3xf32>,
    return
  }
}

</mosaic_0001>

<llo_original>
// kernel: tpu_custom_call.1
$region0: #{tpu_custom_call.1}
  #allocation0 [shape = 'u32[]', space=smem, size = 0x4, offset = 0x4, fixed_abs, tag = 'smem constant byte address 0x4 - core index']
  #allocation1 [shape = 'u32[144,128]{1,0:T(1,128)}', space=vmem, size = 0x12000, scoped, tag = 'internal scratch']
  #allocation2 [shape = 'bf16[256,512]{1,0:T(16,128)(2,1)}', space=vmem, size = 0x40000, scoped, tag = 'scratch operand']
  #allocation3 [shape = 'bf16[512,1024]{1,0:T(16,128)(2,1)}', space=vmem, size = 0x100000, scoped, tag = 'scratch operand']
  #allocation4 [shape = 'bf16[1024,128]{1,0:T(16,128)(2,1)}', space=vmem, size = 0x40000, scoped, tag = 'scratch operand']
  #allocation5 [shape = 'bf16[1024,256]{1,0:T(16,128)(2,1)}', space=vmem, size = 0x80000, scoped, tag = 'scratch operand']
  #allocation6 [shape = 's32[4]{0}', space=sflag, size = 0x10, scoped, tag = 'scratch operand']
  #allocation11 [shape = 's32[]', space=sflag, size = 0x4, offset = 0, fixed_abs, tag = 'sflag constant byte address 0x0 - dummy sync flag']
  #allocation13 [shape = 's32[]', space=sflag, size = 0x4, offset = 0, fixed_abs, tag = 'sflag constant byte address 0x0 - dummy sync flag']
  #allocation15 [shape = 's32[]', space=sflag, size = 0x4, offset = 0, fixed_abs, tag = 'sflag constant byte address 0x0 - dummy sync flag']
  #allocation16 [shape = 's32[]', space=sflag, size = 0x4, offset = 0, fixed_abs, tag = 'sflag constant byte address 0x0 - dummy sync flag']
  #allocation17 [shape = 'u32[]', space=smem, size = 0x4, offset = 0x44, fixed_abs, tag = 'smem constant byte address 0x44 - assertion arg 0']
  #allocation18 [shape = 'u32[]', space=smem, size = 0x4, offset = 0x48, fixed_abs, tag = 'smem constant byte address 0x48 - assertion arg 1']
  #allocation19 [shape = 's32[]', space=sflag, size = 0x4, offset = 0, fixed_abs, tag = 'sflag constant byte address 0x0 - dummy sync flag']
  %s0 = inlined_call_operand.vmem [shape: f32[64,4], index: 0, kind: input, shape index: {}]
  %s1 = inlined_call_operand.vmem [shape: s32[64,1], index: 1, kind: input, shape index: {}]
  %s2 = inlined_call_operand.hbm [shape: bf16[976,256], index: 2, kind: input, shape index: {}]
  %s3 = inlined_call_operand.hbm [shape: f32[23,1024], index: 3, kind: input, shape index: {}]
  %s4 = inlined_call_operand.hbm [shape: bf16[256,512], index: 4, kind: input, shape index: {}]
  %s5 = inlined_call_operand.hbm [shape: bf16[512,1024], index: 5, kind: input, shape index: {}]
  %s6 = inlined_call_operand.hbm [shape: bf16[1024,128], index: 6, kind: input, shape index: {}]
  %s7 = inlined_call_operand.hbm [shape: bf16[1024,256], index: 7, kind: input, shape index: {}]
  %s8 = inlined_call_operand.vmem [shape: f32[64,3], index: 8, kind: output, shape index: {}]
  %s9 = sld [smem:[#allocation0]]
  $region38: #{tpu_custom_call.1} parent=0
    _
  %s11 = ssub.s32 1, %s9
  %s12 = scalar_select 0, %s11, %s9
  $region1: #{tpu_custom_call.1} parent=0
    #allocation7 [shape = 'u8[499712]{0}', space=vmem, size = 0x7a000, scoped, tag = 'input window, operand 2, single buffered']
    #allocation8 [shape = 's32[1]{0}', space=sflag, size = 0x4, scoped, tag = 'scoped memory for tpu_custom_call.1']
    #allocation9 [shape = 'u8[98304]{0}', space=vmem, size = 0x18000, scoped, tag = 'input window, operand 3, single buffered']
    #allocation10 [shape = 's32[1]{0}', space=sflag, size = 0x4, scoped, tag = 'scoped memory for tpu_custom_call.1']
    #allocation12 [shape = 'u32[9]{0}', space=smem, size = 0x24, scoped, tag = 'DMA stride descriptor']
    #allocation14 [shape = 'u32[9]{0}', space=smem, size = 0x24, scoped, tag = 'DMA stride descriptor']
    #allocation20 [shape = 'u32[9]{0}', space=smem, size = 0x24, scoped, tag = 'DMA stride descriptor']
    %13 = vsyncpa [#allocation8], 0
    %14 = vsyncpa [#allocation10], 0
    // Predicated region
    $region2: #{tpu_custom_call.1} parent=1 // pred_check
      _
    $region3: #{tpu_custom_call.1} parent=1 // pred_check_branch
      %16 = sbr.rel (0) target = $region5
    $region4: #{tpu_custom_call.1} parent=1 // pred_region
      _
    $region5: #{tpu_custom_call.1} parent=1 // pred_fallthru
      _
    // Predicated region
    $region6: #{tpu_custom_call.1} parent=1 // pred_check
      _
    $region7: #{tpu_custom_call.1} parent=1 // pred_check_branch
      %18 = sbr.rel (0) target = $region9
    $region8: #{tpu_custom_call.1} parent=1 // pred_region
      _
    $region9: #{tpu_custom_call.1} parent=1 // pred_fallthru
      _
    // Predicated region
    $region10: #{tpu_custom_call.1} parent=1 // pred_check
      _
    $region11: #{tpu_custom_call.1} parent=1 // pred_check_branch
      %20 = sbr.rel (0) target = $region13
    $region12: #{tpu_custom_call.1} parent=1 // pred_region
      %s22 = ssub.s32 15616, 15616
      %23 = vsyncadd [#allocation8], %s22
      %s24 = sshll.u32 [#allocation7], 4
      %s25 = int_to_ptr.vmem [resolvable:$true] %s24
      %30 = dma.hbm_to_vmem [thread:$0]  %s2, 15616, %s25, [#allocation8], 128, 128, 8
    $region13: #{tpu_custom_call.1} parent=1 // pred_fallthru
      _
    // Predicated region
    $region14: #{tpu_custom_call.1} parent=1 // pred_check
      _
    $region15: #{tpu_custom_call.1} parent=1 // pred_check_branch
      %32 = sbr.rel (0) target = $region17
    $region16: #{tpu_custom_call.1} parent=1 // pred_region
      %s34 = ssub.s32 3072, 3072
      %35 = vsyncadd [#allocation10], %s34
      %s36 = sshll.u32 [#allocation9], 4
      %s37 = int_to_ptr.vmem [resolvable:$true] %s36
      %42 = dma.hbm_to_vmem [thread:$0]  %s3, 3072, %s37, [#allocation10], 1024, 1024, 64
    $region17: #{tpu_custom_call.1} parent=1 // pred_fallthru
      _
    // Predicated region
    $region18: #{tpu_custom_call.1} parent=1 // pred_check
      _
    $region19: #{tpu_custom_call.1} parent=1 // pred_check_branch
      %44 = sbr.rel (0) target = $region21
    $region20: #{tpu_custom_call.1} parent=1 // pred_region
      %45 = dma.done [#allocation8], 15616
    $region21: #{tpu_custom_call.1} parent=1 // pred_fallthru
      _
    // Predicated region
    $region22: #{tpu_custom_call.1} parent=1 // pred_check
      _
    $region23: #{tpu_custom_call.1} parent=1 // pred_check_branch
      %47 = sbr.rel (0) target = $region25
    $region24: #{tpu_custom_call.1} parent=1 // pred_region
      %48 = dma.done [#allocation10], 3072
    $region25: #{tpu_custom_call.1} parent=1 // pred_fallthru
      _
    %s51 = sshll.u32 1, 14
    %s52 = sxor.u32 4294967295, %s51
    %s54 = sld [smem:[#allocation0]]
    %s55 = sadd.s32 2, %s54
    %s57 = sshll.u32 7, 26
    %s58 = sxor.u32 4294967295, %s57
    %s59 = sand.u32 0, %s58
    %s60 = sshll.u32 %s55, 26
    %s61 = sor.u32 %s59, %s60
    %s62 = sshll.u32 [#allocation2], 4
    %s63 = int_to_ptr.vmem [resolvable:$true] %s62
    %66 = sst [smem:[#allocation12]] 512
    %s67 = scalar_lea.smem [#allocation12], 1
    %68 = sst [smem:[%s67]] 512
    %s69 = scalar_lea.smem [#allocation12], 2
    %70 = sst [smem:[%s69]] 4
    %s71 = scalar_lea.smem [#allocation12], 3
    %72 = sst [smem:[%s71]] 64
    %s73 = scalar_lea.smem [#allocation12], 4
    %74 = sst [smem:[%s73]] 128
    %s75 = scalar_lea.smem [#allocation12], 5
    %76 = sst [smem:[%s75]] 2
    %s77 = scalar_lea.smem [#allocation12], 6
    %78 = sst [smem:[%s77]] 256
    %s79 = scalar_lea.smem [#allocation12], 7
    %80 = sst [smem:[%s79]] 64
    %s81 = scalar_lea.smem [#allocation12], 8
    %82 = sst [smem:[%s81]] 4
    %84 = dma.general %s4, 8192, %s63, [#allocation6], [#allocation11], [#allocation12], %s61, 0
    %s85 = scalar_lea.sflag [#allocation6], 1
    %s87 = sshll.u32 1, 14
    %s88 = sxor.u32 4294967295, %s87
    %s90 = sadd.s32 2, %s54
    %s92 = sshll.u32 7, 26
    %s93 = sxor.u32 4294967295, %s92
    %s94 = sand.u32 0, %s93
    %s95 = sshll.u32 %s90, 26
    %s96 = sor.u32 %s94, %s95
    %s97 = sshll.u32 [#allocation3], 4
    %s98 = int_to_ptr.vmem [resolvable:$true] %s97
    %101 = sst [smem:[#allocation14]] 1024
    %s102 = scalar_lea.smem [#allocation14], 1
    %103 = sst [smem:[%s102]] 1024
    %s104 = scalar_lea.smem [#allocation14], 2
    %105 = sst [smem:[%s104]] 8
    %s106 = scalar_lea.smem [#allocation14], 3
    %107 = sst [smem:[%s106]] 64
    %s108 = scalar_lea.smem [#allocation14], 4
    %109 = sst [smem:[%s108]] 128
    %s110 = scalar_lea.smem [#allocation14], 5
    %111 = sst [smem:[%s110]] 2
    %s112 = scalar_lea.smem [#allocation14], 6
    %113 = sst [smem:[%s112]] 512
    %s114 = scalar_lea.smem [#allocation14], 7
    %115 = sst [smem:[%s114]] 64
    %s116 = scalar_lea.smem [#allocation14], 8
    %117 = sst [smem:[%s116]] 4
    %119 = dma.general %s5, 32768, %s98, %s85, [#allocation13], [#allocation14], %s96, 0
    %s120 = scalar_lea.sflag [#allocation6], 2
    // Predicated region
    $region26: #{tpu_custom_call.1} parent=1 // pred_check
      _
    $region27: #{tpu_custom_call.1} parent=1 // pred_check_branch
      %122 = sbr.rel target = $region29
    $region28: #{tpu_custom_call.1} parent=1 // pred_region
      %123 = sst [smem:[#allocation17]] [#allocation16]
      %124 = sst [smem:[#allocation18]] [#allocation15]
    $region29: #{tpu_custom_call.1} parent=1 // pred_fallthru
      _
    %126 = shalt.err (0)
    %s128 = sshll.u32 [#allocation4], 4
    %s129 = int_to_ptr.vmem [resolvable:$true] %s128
    %131 = dma.hbm_to_vmem [thread:$0]  %s6, 8192, %s129, %s120
    %s132 = scalar_lea.sflag [#allocation6], 3
    %s134 = sshll.u32 1, 14
    %s135 = sxor.u32 4294967295, %s134
    %s137 = sadd.s32 2, %s54
    %s139 = sshll.u32 7, 26
    %s140 = sxor.u32 4294967295, %s139
    %s141 = sand.u32 0, %s140
    %s142 = sshll.u32 %s137, 26
    %s143 = sor.u32 %s141, %s142
    %s144 = sshll.u32 [#allocation5], 4
    %s145 = int_to_ptr.vmem [resolvable:$true] %s144
    %148 = sst [smem:[#allocation20]] 256
    %s149 = scalar_lea.smem [#allocation20], 1
    %150 = sst [smem:[%s149]] 256
    %s151 = scalar_lea.smem [#allocation20], 2
    %152 = sst [smem:[%s151]] 2
    %s153 = scalar_lea.smem [#allocation20], 3
    %154 = sst [smem:[%s153]] 64
    %s155 = scalar_lea.smem [#allocation20], 4
    %156 = sst [smem:[%s155]] 128
    %s157 = scalar_lea.smem [#allocation20], 5
    %158 = sst [smem:[%s157]] 2
    %s159 = scalar_lea.smem [#allocation20], 6
    %160 = sst [smem:[%s159]] 128
    %s161 = scalar_lea.smem [#allocation20], 7
    %162 = sst [smem:[%s161]] 64
    %s163 = scalar_lea.smem [#allocation20], 8
    %164 = sst [smem:[%s163]] 4
    %166 = dma.general %s7, 16384, %s145, %s132, [#allocation19], [#allocation20], %s143, 0
    %v167 = vld [vmem:[%s0] sm:$0xff]
    %v168 = vld [vmem:[%s0 + $0x8] sm:$0xff]
    %v169 = vld [vmem:[%s0 + $0x10] sm:$0xff]
    %v170 = vld [vmem:[%s0 + $0x18] sm:$0xff]
    %v171 = vld [vmem:[%s0 + $0x20] sm:$0xff]
    %v172 = vld [vmem:[%s0 + $0x28] sm:$0xff]
    %v173 = vld [vmem:[%s0 + $0x30] sm:$0xff]
    %v174 = vld [vmem:[%s0 + $0x38] sm:$0xff]
    %v175 = vld [vmem:[#allocation7] sm:$0x3]
    %v176 = vpack.c.bf16 %v168, %v167
    %v177 = vpack.c.bf16 %v170, %v169
    %v178 = vpack.c.bf16 %v172, %v171
    %v179 = vpack.c.bf16 %v174, %v173
    %vm180 = vcmask 31744
    %v182 = vsel %vm180, %v176, 0
    %v185 = vsel %vm180, %v177, 0
    %v188 = vsel %vm180, %v178, 0
    %v191 = vsel %vm180, %v179, 0
    %vm193 = vcmask 1041408
    %v195 = vsel %vm193, %v175, 0
    %197 = vmatprep.subr.bf16.mxu0 0
    %198 = vmatpush1.bf16.msra.mxu0 %v195
    %199 = vmatprep.subr.bf16.mxu0 0
    %200 = vmatpush1.bf16.msra.mxu0 0
    %201 = vmatprep.subr.bf16.mxu0 0
    %202 = vmatpush1.bf16.msra.mxu0 0
    %203 = vmatprep.subr.bf16.mxu0 0
    %204 = vmatpush1.bf16.msra.mxu0 0
    %205 = vmatprep.subr.bf16.mxu0 0
    %206 = vmatpush1.bf16.msra.mxu0 0
    %207 = vmatprep.subr.bf16.mxu0 0
    %208 = vmatpush1.bf16.msra.mxu0 0
    %209 = vmatprep.subr.bf16.mxu0 0
    %210 = vmatpush1.bf16.msra.mxu0 0
    %211 = vmatprep.subr.bf16.mxu0 0
    %212 = vmatpush1.bf16.msra.mxu0 0
    %213 = vmatprep.subr.bf16.mxu0 0
    %214 = vmatpush1.bf16.msra.mxu0 0
    %215 = vmatprep.subr.bf16.mxu0 0
    %216 = vmatpush1.bf16.msra.mxu0 0
    %217 = vmatprep.subr.bf16.mxu0 0
    %218 = vmatpush1.bf16.msra.mxu0 0
    %219 = vmatprep.subr.bf16.mxu0 0
    %220 = vmatpush1.bf16.msra.mxu0 0
    %221 = vmatprep.subr.bf16.mxu0 0
    %222 = vmatpush1.bf16.msra.mxu0 0
    %223 = vmatprep.subr.bf16.mxu0 0
    %224 = vmatpush1.bf16.msra.mxu0 0
    %225 = vmatprep.subr.bf16.mxu0 0
    %226 = vmatpush1.bf16.msra.mxu0 0
    %227 = vmatprep.subr.bf16.mxu0 0
    %228 = vmatpush1.bf16.msra.mxu0 0
    %229 = vmatprep.mubr.bf16.mxu0 0
    %230 = vmatmul.mubr.bf16.gmra.mrb[0].mxu0 %v182
    %v231 = vpop.f32.mrb[0].mxu0
    %v232 = vadd.f32 0.0, %v231
    %v233 = vpop.f32.mrb[0].mxu0
    %v234 = vpop.f32.mrb[0].mxu0
    %v235 = vadd.f32 0.0, %v234
    %v236 = vpop.f32.mrb[0].mxu0
    %237 = vmatprep.mubr.bf16.mxu0 0
    %238 = vmatmul.mubr.bf16.gmra.mrb[0].mxu0 %v185
    %v239 = vpop.f32.mrb[0].mxu0
    %v240 = vadd.f32 0.0, %v239
    %v241 = vpop.f32.mrb[0].mxu0
    %v242 = vpop.f32.mrb[0].mxu0
    %v243 = vadd.f32 0.0, %v242
    %v244 = vpop.f32.mrb[0].mxu0
    %245 = vmatprep.mubr.bf16.mxu0 0
    %246 = vmatmul.mubr.bf16.gmra.mrb[0].mxu0 %v188
    %v247 = vpop.f32.mrb[0].mxu0
    %v248 = vadd.f32 0.0, %v247
    %v249 = vpop.f32.mrb[0].mxu0
    %v250 = vpop.f32.mrb[0].mxu0
    %v251 = vadd.f32 0.0, %v250
    %v252 = vpop.f32.mrb[0].mxu0
    %253 = vmatprep.mubr.bf16.mxu0 0
    %254 = vmatmul.mubr.bf16.gmra.mrb[0].mxu0 %v191
    %v255 = vpop.f32.mrb[0].mxu0
    %v256 = vadd.f32 0.0, %v255
    %v257 = vpop.f32.mrb[0].mxu0
    %v258 = vpop.f32.mrb[0].mxu0
    %v259 = vadd.f32 0.0, %v258
    %v260 = vpop.f32.mrb[0].mxu0
    %261 = vdwg.mxu0
    %vm262 = vcmask 523264
    %v263 = vsel %vm262, %v232, 0.0
    %v264 = vsel %vm262, %v235, 0.0
    %v265 = vadd.f32 %v263, %v264
    %v266 = vsel %vm262, %v240, 0.0
    %v267 = vadd.f32 %v265, %v266
    %v268 = vsel %vm262, %v243, 0.0
    %v269 = vadd.f32 %v267, %v268
    %v270 = vsel %vm262, %v248, 0.0
    %v271 = vadd.f32 %v269, %v270
    %v272 = vsel %vm262, %v251, 0.0
    %v273 = vadd.f32 %v271, %v272
    %v274 = vsel %vm262, %v256, 0.0
    %v275 = vadd.f32 %v273, %v274
    %v276 = vsel %vm262, %v259, 0.0
    %v277 = vadd.f32 %v275, %v276
    %v278 = vrot.slane %v277, 4
    %v279 = vadd.f32 %v277, %v278
    %v280 = vrot.slane %v279, 2
    %v281 = vadd.f32 %v279, %v280
    %v282 = vrot.slane %v281, 1
    %v283 = vadd.f32 %v281, %v282
    %v284 = vrcp.pop 64.0
    %v285 = vmul.f32 %v283, %v284
    %v286 = vsub.f32 %v232, %v285
    %v287 = vsub.f32 %v235, %v285
    %v288 = vsub.f32 %v240, %v285
    %v289 = vsub.f32 %v243, %v285
    %v290 = vsub.f32 %v248, %v285
    %v291 = vsub.f32 %v251, %v285
    %v292 = vsub.f32 %v256, %v285
    %v293 = vsub.f32 %v259, %v285
    %v294 = vmul.f32 %v286, %v286
    %v295 = vmul.f32 %v287, %v287
    %v296 = vmul.f32 %v288, %v288
    %v297 = vmul.f32 %v289, %v289
    %v298 = vmul.f32 %v290, %v290
    %v299 = vmul.f32 %v291, %v291
    %v300 = vmul.f32 %v292, %v292
    %v301 = vmul.f32 %v293, %v293
    %v302 = vsel %vm262, %v294, 0.0
    %v303 = vsel %vm262, %v295, 0.0
    %v304 = vadd.f32 %v302, %v303
    %v305 = vsel %vm262, %v296, 0.0
    %v306 = vadd.f32 %v304, %v305
    %v307 = vsel %vm262, %v297, 0.0
    %v308 = vadd.f32 %v306, %v307
    %v309 = vsel %vm262, %v298, 0.0
    %v310 = vadd.f32 %v308, %v309
    %v311 = vsel %vm262, %v299, 0.0
    %v312 = vadd.f32 %v310, %v311
    %v313 = vsel %vm262, %v300, 0.0
    %v314 = vadd.f32 %v312, %v313
    %v315 = vsel %vm262, %v301, 0.0
    %v316 = vadd.f32 %v314, %v315
    %v317 = vrot.slane %v316, 4
    %v318 = vadd.f32 %v316, %v317
    %v319 = vrot.slane %v318, 2
    %v320 = vadd.f32 %v318, %v319
    %v321 = vrot.slane %v320, 1
    %v322 = vadd.f32 %v320, %v321
    %v323 = vmul.f32 %v322, %v284
    %v324 = vld [vmem:[#allocation9] ss:$0 sm:$0xff]
    %v325 = vadd.f32 %v323, 1e-05
    %v326 = vrsqrt.pop %v325
    %v327 = vmul.f32 %v324, %v326
    %v328 = vmul.f32 %v286, %v327
    %v329 = vmul.f32 %v287, %v327
    %v330 = vmul.f32 %v288, %v327
    %v331 = vmul.f32 %v289, %v327
    %v332 = vmul.f32 %v290, %v327
    %v333 = vmul.f32 %v291, %v327
    %v334 = vmul.f32 %v292, %v327
    %v335 = vmul.f32 %v293, %v327
    %v336 = vld [vmem:[#allocation9 + $0x1] ss:$0 sm:$0xff]
    %v337 = vadd.f32 %v328, %v336
    %v338 = vadd.f32 %v329, %v336
    %v339 = vadd.f32 %v330, %v336
    %v340 = vadd.f32 %v331, %v336
    %v341 = vadd.f32 %v332, %v336
    %v342 = vadd.f32 %v333, %v336
    %v343 = vadd.f32 %v334, %v336
    %v344 = vadd.f32 %v335, %v336
    %v345 = vmax.f32 %v337, 0.0
    %v346 = vmax.f32 %v338, 0.0
    %v347 = vmax.f32 %v339, 0.0
    %v348 = vmax.f32 %v340, 0.0
    %v349 = vmax.f32 %v341, 0.0
    %v350 = vmax.f32 %v342, 0.0
    %v351 = vmax.f32 %v343, 0.0
    %v352 = vmax.f32 %v344, 0.0
    %v353 = vld [vmem:[#allocation7 + $0x10] sm:$0xf]
    %v354 = vld [vmem:[#allocation7 + $0x18] sm:$0xf]
    %v355 = vld [vmem:[#allocation7 + $0x20] sm:$0xf]
    %v356 = vld [vmem:[#allocation7 + $0x28] sm:$0xf]
    %v357 = vld [vmem:[#allocation7 + $0x30] sm:$0xf]
    %v358 = vld [vmem:[#allocation7 + $0x38] sm:$0xf]
    %v359 = vld [vmem:[#allocation7 + $0x40] sm:$0xf]
    %v360 = vld [vmem:[#allocation7 + $0x48] sm:$0xf]
    %v361 = vpack.c.bf16 %v346, %v345
    %v362 = vpack.c.bf16 %v348, %v347
    %v363 = vpack.c.bf16 %v350, %v349
    %v364 = vpack.c.bf16 %v352, %v351
    %v373 = vunpack.c.l.b16 %v353
    %v374 = vunpack.c.l.b16 %v354
    %v375 = vunpack.c.l.b16 %v355
    %v376 = vunpack.c.l.b16 %v356
    %v377 = vunpack.c.l.b16 %v357
    %v378 = vunpack.c.l.b16 %v358
    %v379 = vunpack.c.l.b16 %v359
    %v380 = vunpack.c.l.b16 %v360
    %v381 = vpack.c.b16 %v374, %v373
    %v382 = vpack.c.b16 %v376, %v375
    %v383 = vpack.c.b16 %v378, %v377
    %v384 = vpack.c.b16 %v380, %v379
    %v390 = vsel %vm262, %v361, 0
    %v393 = vsel %vm262, %v362, 0
    %v396 = vsel %vm262, %v363, 0
    %v399 = vsel %vm262, %v364, 0
    %401 = vmatprep.subr.bf16.mxu0 0
    %402 = vmatpush1.bf16.msra.mxu0 %v381
    %403 = vmatprep.subr.bf16.mxu0 0
    %404 = vmatpush1.bf16.msra.mxu0 %v382
    %405 = vmatprep.subr.bf16.mxu0 0
    %406 = vmatpush1.bf16.msra.mxu0 %v383
    %407 = vmatprep.subr.bf16.mxu0 0
    %408 = vmatpush1.bf16.msra.mxu0 %v384
    %409 = vmatprep.subr.bf16.mxu0 0
    %410 = vmatpush1.bf16.msra.mxu0 0
    %411 = vmatprep.subr.bf16.mxu0 0
    %412 = vmatpush1.bf16.msra.mxu0 0
    %413 = vmatprep.subr.bf16.mxu0 0
    %414 = vmatpush1.bf16.msra.mxu0 0
    %415 = vmatprep.subr.bf16.mxu0 0
    %416 = vmatpush1.bf16.msra.mxu0 0
    %417 = vmatprep.subr.bf16.mxu0 0
    %418 = vmatpush1.bf16.msra.mxu0 0
    %419 = vmatprep.subr.bf16.mxu0 0
    %420 = vmatpush1.bf16.msra.mxu0 0
    %421 = vmatprep.subr.bf16.mxu0 0
    %422 = vmatpush1.bf16.msra.mxu0 0
    %423 = vmatprep.subr.bf16.mxu0 0
    %424 = vmatpush1.bf16.msra.mxu0 0
    %425 = vmatprep.subr.bf16.mxu0 0
    %426 = vmatpush1.bf16.msra.mxu0 0
    %427 = vmatprep.subr.bf16.mxu0 0
    %428 = vmatpush1.bf16.msra.mxu0 0
    %429 = vmatprep.subr.bf16.mxu0 0
    %430 = vmatpush1.bf16.msra.mxu0 0
    %431 = vmatprep.subr.bf16.mxu0 0
    %432 = vmatpush1.bf16.msra.mxu0 0
    %433 = vmatprep.mubr.bf16.mxu0 0
    %434 = vmatmul.mubr.bf16.gmra.mrb[0].mxu0 %v390
    %v435 = vpop.f32.mrb[0].mxu0
    %v436 = vadd.f32 0.0, %v435
    %v437 = vpop.f32.mrb[0].mxu0
    %v438 = vpop.f32.mrb[0].mxu0
    %v439 = vadd.f32 0.0, %v438
    %v440 = vpop.f32.mrb[0].mxu0
    %441 = vmatprep.mubr.bf16.mxu0 0
    %442 = vmatmul.mubr.bf16.gmra.mrb[0].mxu0 %v393
    %v443 = vpop.f32.mrb[0].mxu0
    %v444 = vadd.f32 0.0, %v443
    %v445 = vpop.f32.mrb[0].mxu0
    %v446 = vpop.f32.mrb[0].mxu0
    %v447 = vadd.f32 0.0, %v446
    %v448 = vpop.f32.mrb[0].mxu0
    %449 = vmatprep.mubr.bf16.mxu0 0
    %450 = vmatmul.mubr.bf16.gmra.mrb[0].mxu0 %v396
    %v451 = vpop.f32.mrb[0].mxu0
    %v452 = vadd.f32 0.0, %v451
    %v453 = vpop.f32.mrb[0].mxu0
    %v454 = vpop.f32.mrb[0].mxu0
    %v455 = vadd.f32 0.0, %v454
    %v456 = vpop.f32.mrb[0].mxu0
    %457 = vmatprep.mubr.bf16.mxu0 0
    %458 = vmatmul.mubr.bf16.gmra.mrb[0].mxu0 %v399
    %v459 = vpop.f32.mrb[0].mxu0
    %v460 = vadd.f32 0.0, %v459
    %v461 = vpop.f32.mrb[0].mxu0
    %v462 = vpop.f32.mrb[0].mxu0
    %v463 = vadd.f32 0.0, %v462
    %v464 = vpop.f32.mrb[0].mxu0
    %465 = vdwg.mxu0
    %v466 = vsel %vm262, %v436, 0.0
    %v467 = vsel %vm262, %v439, 0.0
    %v468 = vadd.f32 %v466, %v467
    %v469 = vsel %vm262, %v444, 0.0
    %v470 = vadd.f32 %v468, %v469
    %v471 = vsel %vm262, %v447, 0.0
    %v472 = vadd.f32 %v470, %v471
    %v473 = vsel %vm262, %v452, 0.0
    %v474 = vadd.f32 %v472, %v473
    %v475 = vsel %vm262, %v455, 0.0
    %v476 = vadd.f32 %v474, %v475
    %v477 = vsel %vm262, %v460, 0.0
    %v478 = vadd.f32 %v476, %v477
    %v479 = vsel %vm262, %v463, 0.0
    %v480 = vadd.f32 %v478, %v479
    %v481 = vrot.slane %v480, 4
    %v482 = vadd.f32 %v480, %v481
    %v483 = vrot.slane %v482, 2
    %v484 = vadd.f32 %v482, %v483
    %v485 = vrot.slane %v484, 1
    %v486 = vadd.f32 %v484, %v485
    %v487 = vmul.f32 %v486, %v284
    %v488 = vsub.f32 %v436, %v487
    %v489 = vsub.f32 %v439, %v487
    %v490 = vsub.f32 %v444, %v487
    %v491 = vsub.f32 %v447, %v487
    %v492 = vsub.f32 %v452, %v487
    %v493 = vsub.f32 %v455, %v487
    %v494 = vsub.f32 %v460, %v487
    %v495 = vsub.f32 %v463, %v487
    %v496 = vmul.f32 %v488, %v488
    %v497 = vmul.f32 %v489, %v489
    %v498 = vmul.f32 %v490, %v490
    %v499 = vmul.f32 %v491, %v491
    %v500 = vmul.f32 %v492, %v492
    %v501 = vmul.f32 %v493, %v493
    %v502 = vmul.f32 %v494, %v494
    %v503 = vmul.f32 %v495, %v495
    %v504 = vsel %vm262, %v496, 0.0
    %v505 = vsel %vm262, %v497, 0.0
    %v506 = vadd.f32 %v504, %v505
    %v507 = vsel %vm262, %v498, 0.0
    %v508 = vadd.f32 %v506, %v507
    %v509 = vsel %vm262, %v499, 0.0
    %v510 = vadd.f32 %v508, %v509
    %v511 = vsel %vm262, %v500, 0.0
    %v512 = vadd.f32 %v510, %v511
    %v513 = vsel %vm262, %v501, 0.0
    %v514 = vadd.f32 %v512, %v513
    %v515 = vsel %vm262, %v502, 0.0
    %v516 = vadd.f32 %v514, %v515
    %v517 = vsel %vm262, %v503, 0.0
    %v518 = vadd.f32 %v516, %v517
    %v519 = vrot.slane %v518, 4
    %v520 = vadd.f32 %v518, %v519
    %v521 = vrot.slane %v520, 2
    %v522 = vadd.f32 %v520, %v521
    %v523 = vrot.slane %v522, 1
    %v524 = vadd.f32 %v522, %v523
    %v525 = vmul.f32 %v524, %v284
    %v526 = vld [vmem:[#allocation9 + $0x2] ss:$0 sm:$0xff]
    %v527 = vadd.f32 %v525, 1e-05
    %v528 = vrsqrt.pop %v527
    %v529 = vmul.f32 %v526, %v528
    %v530 = vmul.f32 %v488, %v529
    %v531 = vmul.f32 %v489, %v529
    %v532 = vmul.f32 %v490, %v529
    %v533 = vmul.f32 %v491, %v529
    %v534 = vmul.f32 %v492, %v529
    %v535 = vmul.f32 %v493, %v529
    %v536 = vmul.f32 %v494, %v529
    %v537 = vmul.f32 %v495, %v529
    %v538 = vld [vmem:[#allocation9 + $0x3] ss:$0 sm:$0xff]
    %v539 = vadd.f32 %v530, %v538
    %v540 = vadd.f32 %v531, %v538
    %v541 = vadd.f32 %v532, %v538
    %v542 = vadd.f32 %v533, %v538
    %v543 = vadd.f32 %v534, %v538
    %v544 = vadd.f32 %v535, %v538
    %v545 = vadd.f32 %v536, %v538
    %v546 = vadd.f32 %v537, %v538
    %v547 = vmax.f32 %v539, 0.0
    %v548 = vmax.f32 %v540, 0.0
    %v549 = vmax.f32 %v541, 0.0
    %v550 = vmax.f32 %v542, 0.0
    %v551 = vmax.f32 %v543, 0.0
    %v552 = vmax.f32 %v544, 0.0
    %v553 = vmax.f32 %v545, 0.0
    %v554 = vmax.f32 %v546, 0.0
    %v555 = vld [vmem:[#allocation7 + $0x50] sm:$0xf]
    %v556 = vld [vmem:[#allocation7 + $0x58] sm:$0xf]
    %v557 = vld [vmem:[#allocation7 + $0x60] sm:$0xf]
    %v558 = vld [vmem:[#allocation7 + $0x68] sm:$0xf]
    %v559 = vld [vmem:[#allocation7 + $0x70] sm:$0xf]
    %v560 = vld [vmem:[#allocation7 + $0x78] sm:$0xf]
    %v561 = vld [vmem:[#allocation7 + $0x80] sm:$0xf]
    %v562 = vld [vmem:[#allocation7 + $0x88] sm:$0xf]
    %v563 = vpack.c.bf16 %v548, %v547
    %v564 = vpack.c.bf16 %v550, %v549
    %v565 = vpack.c.bf16 %v552, %v551
    %v566 = vpack.c.bf16 %v554, %v553
    %v575 = vunpack.c.l.b16 %v555
    %v576 = vunpack.c.l.b16 %v556
    %v577 = vunpack.c.l.b16 %v557
    %v578 = vunpack.c.l.b16 %v558
    %v579 = vunpack.c.l.b16 %v559
    %v580 = vunpack.c.l.b16 %v560
    %v581 = vunpack.c.l.b16 %v561
    %v582 = vunpack.c.l.b16 %v562
    %v583 = vpack.c.b16 %v576, %v575
    %v584 = vpack.c.b16 %v578, %v577
    %v585 = vpack.c.b16 %v580, %v579
    %v586 = vpack.c.b16 %v582, %v581
    %v592 = vsel %vm262, %v563, 0
    %v595 = vsel %vm262, %v564, 0
    %v598 = vsel %vm262, %v565, 0
    %v601 = vsel %vm262, %v566, 0
    %603 = vmatprep.subr.bf16.mxu0 0
    %604 = vmatpush1.bf16.msra.mxu0 %v583
    %605 = vmatprep.subr.bf16.mxu0 0
    %606 = vmatpush1.bf16.msra.mxu0 %v584
    %607 = vmatprep.subr.bf16.mxu0 0
    %608 = vmatpush1.bf16.msra.mxu0 %v585
    %609 = vmatprep.subr.bf16.mxu0 0
    %610 = vmatpush1.bf16.msra.mxu0 %v586
    %611 = vmatprep.subr.bf16.mxu0 0
    %612 = vmatpush1.bf16.msra.mxu0 0
    %613 = vmatprep.subr.bf16.mxu0 0
    %614 = vmatpush1.bf16.msra.mxu0 0
    %615 = vmatprep.subr.bf16.mxu0 0
    %616 = vmatpush1.bf16.msra.mxu0 0
    %617 = vmatprep.subr.bf16.mxu0 0
    %618 = vmatpush1.bf16.msra.mxu0 0
    %619 = vmatprep.subr.bf16.mxu0 0
    %620 = vmatpush1.bf16.msra.mxu0 0
    %621 = vmatprep.subr.bf16.mxu0 0
    %622 = vmatpush1.bf16.msra.mxu0 0
    %623 = vmatprep.subr.bf16.mxu0 0
    %624 = vmatpush1.bf16.msra.mxu0 0
    %625 = vmatprep.subr.bf16.mxu0 0
    %626 = vmatpush1.bf16.msra.mxu0 0
    %627 = vmatprep.subr.bf16.mxu0 0
    %628 = vmatpush1.bf16.msra.mxu0 0
    %629 = vmatprep.subr.bf16.mxu0 0
    %630 = vmatpush1.bf16.msra.mxu0 0
    %631 = vmatprep.subr.bf16.mxu0 0
    %632 = vmatpush1.bf16.msra.mxu0 0
    %633 = vmatprep.subr.bf16.mxu0 0
    %634 = vmatpush1.bf16.msra.mxu0 0
    %635 = vmatprep.mubr.bf16.mxu0 0
    %636 = vmatmul.mubr.bf16.gmra.mrb[0].mxu0 %v592
    %v637 = vpop.f32.mrb[0].mxu0
    %v638 = vadd.f32 0.0, %v637
    %v639 = vpop.f32.mrb[0].mxu0
    %v640 = vpop.f32.mrb[0].mxu0
    %v641 = vadd.f32 0.0, %v640
    %v642 = vpop.f32.mrb[0].mxu0
    %643 = vmatprep.mubr.bf16.mxu0 0
    %644 = vmatmul.mubr.bf16.gmra.mrb[0].mxu0 %v595
    %v645 = vpop.f32.mrb[0].mxu0
    %v646 = vadd.f32 0.0, %v645
    %v647 = vpop.f32.mrb[0].mxu0
    %v648 = vpop.f32.mrb[0].mxu0
    %v649 = vadd.f32 0.0, %v648
    %v650 = vpop.f32.mrb[0].mxu0
    %651 = vmatprep.mubr.bf16.mxu0 0
    %652 = vmatmul.mubr.bf16.gmra.mrb[0].mxu0 %v598
    %v653 = vpop.f32.mrb[0].mxu0
    %v654 = vadd.f32 0.0, %v653
    %v655 = vpop.f32.mrb[0].mxu0
    %v656 = vpop.f32.mrb[0].mxu0
    %v657 = vadd.f32 0.0, %v656
    %v658 = vpop.f32.mrb[0].mxu0
    %659 = vmatprep.mubr.bf16.mxu0 0
    %660 = vmatmul.mubr.bf16.gmra.mrb[0].mxu0 %v601
    %v661 = vpop.f32.mrb[0].mxu0
    %v662 = vadd.f32 0.0, %v661
    %v663 = vpop.f32.mrb[0].mxu0
    %v664 = vpop.f32.mrb[0].mxu0
    %v665 = vadd.f32 0.0, %v664
    %v666 = vpop.f32.mrb[0].mxu0
    %667 = vdwg.mxu0
    %v668 = vadd.f32 %v638, %v641
    %v669 = vadd.f32 %v668, %v646
    %v670 = vadd.f32 %v669, %v649
    %v671 = vadd.f32 %v670, %v654
    %v672 = vadd.f32 %v671, %v657
    %v673 = vadd.f32 %v672, %v662
    %v674 = vadd.f32 %v673, %v665
    %v675 = vrot.slane %v674, 4
    %v676 = vadd.f32 %v674, %v675
    %v677 = vrot.slane %v676, 2
    %v678 = vadd.f32 %v676, %v677
    %v679 = vrot.slane %v678, 1
    %v680 = vadd.f32 %v678, %v679
    %v681 = vmul.f32 %v680, %v284
    %v682 = vsub.f32 %v638, %v681
    %v683 = vsub.f32 %v641, %v681
    %v684 = vsub.f32 %v646, %v681
    %v685 = vsub.f32 %v649, %v681
    %v686 = vsub.f32 %v654, %v681
    %v687 = vsub.f32 %v657, %v681
    %v688 = vsub.f32 %v662, %v681
    %v689 = vsub.f32 %v665, %v681
    %v690 = vmul.f32 %v682, %v682
    %v691 = vmul.f32 %v683, %v683
    %v692 = vmul.f32 %v684, %v684
    %v693 = vmul.f32 %v685, %v685
    %v694 = vmul.f32 %v686, %v686
    %v695 = vmul.f32 %v687, %v687
    %v696 = vmul.f32 %v688, %v688
    %v697 = vmul.f32 %v689, %v689
    %v698 = vadd.f32 %v690, %v691
    %v699 = vadd.f32 %v698, %v692
    %v700 = vadd.f32 %v699, %v693
    %v701 = vadd.f32 %v700, %v694
    %v702 = vadd.f32 %v701, %v695
    %v703 = vadd.f32 %v702, %v696
    %v704 = vadd.f32 %v703, %v697
    %v705 = vrot.slane %v704, 4
    %v706 = vadd.f32 %v704, %v705
    %v707 = vrot.slane %v706, 2
    %v708 = vadd.f32 %v706, %v707
    %v709 = vrot.slane %v708, 1
    %v710 = vadd.f32 %v708, %v709
    %v711 = vmul.f32 %v710, %v284
    %v712 = vld [vmem:[#allocation9 + $0x4] ss:$0 sm:$0xff]
    %v713 = vadd.f32 %v711, 1e-05
    %v714 = vrsqrt.pop %v713
    %v715 = vmul.f32 %v712, %v714
    %v716 = vmul.f32 %v682, %v715
    %v717 = vmul.f32 %v683, %v715
    %v718 = vmul.f32 %v684, %v715
    %v719 = vmul.f32 %v685, %v715
    %v720 = vmul.f32 %v686, %v715
    %v721 = vmul.f32 %v687, %v715
    %v722 = vmul.f32 %v688, %v715
    %v723 = vmul.f32 %v689, %v715
    %v724 = vld [vmem:[#allocation9 + $0x5] ss:$0 sm:$0xff]
    %v725 = vadd.f32 %v716, %v724
    %v726 = vadd.f32 %v717, %v724
    %v727 = vadd.f32 %v718, %v724
    %v728 = vadd.f32 %v719, %v724
    %v729 = vadd.f32 %v720, %v724
    %v730 = vadd.f32 %v721, %v724
    %v731 = vadd.f32 %v722, %v724
    %v732 = vadd.f32 %v723, %v724
    %v733 = vmax.f32 %v725, 0.0
    %v734 = vmax.f32 %v726, 0.0
    %v735 = vmax.f32 %v727, 0.0
    %v736 = vmax.f32 %v728, 0.0
    %v737 = vmax.f32 %v729, 0.0
    %v738 = vmax.f32 %v730, 0.0
    %v739 = vmax.f32 %v731, 0.0
    %v740 = vmax.f32 %v732, 0.0
    %v741 = vld [vmem:[#allocation7 + $0x90] sm:$0xff]
    %v742 = vld [vmem:[#allocation7 + $0x98] sm:$0xff]
    %v743 = vld [vmem:[#allocation7 + $0xa0] sm:$0xff]
    %v744 = vld [vmem:[#allocation7 + $0xa8] sm:$0xff]
    %v745 = vld [vmem:[#allocation7 + $0xb0] sm:$0xff]
    %v746 = vld [vmem:[#allocation7 + $0xb8] sm:$0xff]
    %v747 = vld [vmem:[#allocation7 + $0xc0] sm:$0xff]
    %v748 = vld [vmem:[#allocation7 + $0xc8] sm:$0xff]
    %v749 = vld [vmem:[#allocation7 + $0xd0] sm:$0xff]
    %v750 = vld [vmem:[#allocation7 + $0xd8] sm:$0xff]
    %v751 = vld [vmem:[#allocation7 + $0xe0] sm:$0xff]
    %v752 = vld [vmem:[#allocation7 + $0xe8] sm:$0xff]
    %v753 = vld [vmem:[#allocation7 + $0xf0] sm:$0xff]
    %v754 = vld [vmem:[#allocation7 + $0xf8] sm:$0xff]
    %v755 = vld [vmem:[#allocation7 + $0x100] sm:$0xff]
    %v756 = vld [vmem:[#allocation7 + $0x108] sm:$0xff]
    %v757 = vpack.c.bf16 %v734, %v733
    %v758 = vpack.c.bf16 %v736, %v735
    %v759 = vpack.c.bf16 %v738, %v737
    %v760 = vpack.c.bf16 %v740, %v739
    %v777 = vunpack.c.l.b16 %v741
    %v778 = vunpack.c.h.b16 %v741
    %v779 = vunpack.c.l.b16 %v742
    %v780 = vunpack.c.h.b16 %v742
    %v781 = vunpack.c.l.b16 %v743
    %v782 = vunpack.c.h.b16 %v743
    %v783 = vunpack.c.l.b16 %v744
    %v784 = vunpack.c.h.b16 %v744
    %v785 = vunpack.c.l.b16 %v745
    %v786 = vunpack.c.h.b16 %v745
    %v787 = vunpack.c.l.b16 %v746
    %v788 = vunpack.c.h.b16 %v746
    %v789 = vunpack.c.l.b16 %v747
    %v790 = vunpack.c.h.b16 %v747
    %v791 = vunpack.c.l.b16 %v748
    %v792 = vunpack.c.h.b16 %v748
    %v793 = vunpack.c.l.b16 %v749
    %v794 = vunpack.c.h.b16 %v749
    %v795 = vunpack.c.l.b16 %v750
    %v796 = vunpack.c.h.b16 %v750
    %v797 = vunpack.c.l.b16 %v751
    %v798 = vunpack.c.h.b16 %v751
    %v799 = vunpack.c.l.b16 %v752
    %v800 = vunpack.c.h.b16 %v752
    %v801 = vunpack.c.l.b16 %v753
    %v802 = vunpack.c.h.b16 %v753
    %v803 = vunpack.c.l.b16 %v754
    %v804 = vunpack.c.h.b16 %v754
    %v805 = vunpack.c.l.b16 %v755
    %v806 = vunpack.c.h.b16 %v755
    %v807 = vunpack.c.l.b16 %v756
    %v808 = vunpack.c.h.b16 %v756
    %v809 = vpack.c.b16 %v779, %v777
    %v810 = vpack.c.b16 %v780, %v778
    %v811 = vpack.c.b16 %v783, %v781
    %v812 = vpack.c.b16 %v784, %v782
    %v813 = vpack.c.b16 %v787, %v785
    %v814 = vpack.c.b16 %v788, %v786
    %v815 = vpack.c.b16 %v791, %v789
    %v816 = vpack.c.b16 %v792, %v790
    %v817 = vpack.c.b16 %v795, %v793
    %v818 = vpack.c.b16 %v796, %v794
    %v819 = vpack.c.b16 %v799, %v797
    %v820 = vpack.c.b16 %v800, %v798
    %v821 = vpack.c.b16 %v803, %v801
    %v822 = vpack.c.b16 %v804, %v802
    %v823 = vpack.c.b16 %v807, %v805
    %v824 = vpack.c.b16 %v808, %v806
    %841 = vmatprep.subr.bf16.mxu0 %v810
    %842 = vmatpush1.bf16.msra.mxu0 %v809
    %843 = vmatprep.subr.bf16.mxu0 %v812
    %844 = vmatpush1.bf16.msra.mxu0 %v811
    %845 = vmatprep.subr.bf16.mxu0 %v814
    %846 = vmatpush1.bf16.msra.mxu0 %v813
    %847 = vmatprep.subr.bf16.mxu0 %v816
    %848 = vmatpush1.bf16.msra.mxu0 %v815
    %849 = vmatprep.subr.bf16.mxu0 %v818
    %850 = vmatpush1.bf16.msra.mxu0 %v817
    %851 = vmatprep.subr.bf16.mxu0 %v820
    %852 = vmatpush1.bf16.msra.mxu0 %v819
    %853 = vmatprep.subr.bf16.mxu0 %v822
    %854 = vmatpush1.bf16.msra.mxu0 %v821
    %855 = vmatprep.subr.bf16.mxu0 %v824
    %856 = vmatpush1.bf16.msra.mxu0 %v823
    %857 = vmatprep.subr.bf16.mxu0 0
    %858 = vmatpush1.bf16.msra.mxu0 0
    %859 = vmatprep.subr.bf16.mxu0 0
    %860 = vmatpush1.bf16.msra.mxu0 0
    %861 = vmatprep.subr.bf16.mxu0 0
    %862 = vmatpush1.bf16.msra.mxu0 0
    %863 = vmatprep.subr.bf16.mxu0 0
    %864 = vmatpush1.bf16.msra.mxu0 0
    %865 = vmatprep.subr.bf16.mxu0 0
    %866 = vmatpush1.bf16.msra.mxu0 0
    %867 = vmatprep.subr.bf16.mxu0 0
    %868 = vmatpush1.bf16.msra.mxu0 0
    %869 = vmatprep.subr.bf16.mxu0 0
    %870 = vmatpush1.bf16.msra.mxu0 0
    %871 = vmatprep.subr.bf16.mxu0 0
    %872 = vmatpush1.bf16.msra.mxu0 0
    %873 = vmatprep.mubr.bf16.mxu0 0
    %874 = vmatmul.mubr.bf16.gmra.mrb[0].mxu0 %v757
    %v875 = vpop.f32.mrb[0].mxu0
    %v876 = vadd.f32 0.0, %v875
    %v877 = vpop.f32.mrb[0].mxu0
    %v878 = vadd.f32 0.0, %v877
    %v879 = vpop.f32.mrb[0].mxu0
    %v880 = vadd.f32 0.0, %v879
    %v881 = vpop.f32.mrb[0].mxu0
    %v882 = vadd.f32 0.0, %v881
    %883 = vmatprep.mubr.bf16.mxu0 0
    %884 = vmatmul.mubr.bf16.gmra.mrb[0].mxu0 %v758
    %v885 = vpop.f32.mrb[0].mxu0
    %v886 = vadd.f32 0.0, %v885
    %v887 = vpop.f32.mrb[0].mxu0
    %v888 = vadd.f32 0.0, %v887
    %v889 = vpop.f32.mrb[0].mxu0
    %v890 = vadd.f32 0.0, %v889
    %v891 = vpop.f32.mrb[0].mxu0
    %v892 = vadd.f32 0.0, %v891
    %893 = vmatprep.mubr.bf16.mxu0 0
    %894 = vmatmul.mubr.bf16.gmra.mrb[0].mxu0 %v759
    %v895 = vpop.f32.mrb[0].mxu0
    %v896 = vadd.f32 0.0, %v895
    %v897 = vpop.f32.mrb[0].mxu0
    %v898 = vadd.f32 0.0, %v897
    %v899 = vpop.f32.mrb[0].mxu0
    %v900 = vadd.f32 0.0, %v899
    %v901 = vpop.f32.mrb[0].mxu0
    %v902 = vadd.f32 0.0, %v901
    %903 = vmatprep.mubr.bf16.mxu0 0
    %904 = vmatmul.mubr.bf16.gmra.mrb[0].mxu0 %v760
    %v905 = vpop.f32.mrb[0].mxu0
    %v906 = vadd.f32 0.0, %v905
    %v907 = vpop.f32.mrb[0].mxu0
    %v908 = vadd.f32 0.0, %v907
    %v909 = vpop.f32.mrb[0].mxu0
    %v910 = vadd.f32 0.0, %v909
    %v911 = vpop.f32.mrb[0].mxu0
    %v912 = vadd.f32 0.0, %v911
    %913 = vdwg.mxu0
    %v914 = vadd.f32 %v876, %v880
    %v915 = vadd.f32 %v914, %v886
    %v916 = vadd.f32 %v915, %v890
    %v917 = vadd.f32 %v916, %v896
    %v918 = vadd.f32 %v917, %v900
    %v919 = vadd.f32 %v918, %v906
    %v920 = vadd.f32 %v919, %v910
    %v921 = vrot.slane %v920, 4
    %v922 = vadd.f32 %v920, %v921
    %v923 = vrot.slane %v922, 2
    %v924 = vadd.f32 %v922, %v923
    %v925 = vrot.slane %v924, 1
    %v926 = vadd.f32 %v924, %v925
    %v927 = vadd.f32 %v878, %v882
    %v928 = vadd.f32 %v927, %v888
    %v929 = vadd.f32 %v928, %v892
    %v930 = vadd.f32 %v929, %v898
    %v931 = vadd.f32 %v930, %v902
    %v932 = vadd.f32 %v931, %v908
    %v933 = vadd.f32 %v932, %v912
    %v934 = vrot.slane %v933, 4
    %v935 = vadd.f32 %v933, %v934
    %v936 = vrot.slane %v935, 2
    %v937 = vadd.f32 %v935, %v936
    %v938 = vrot.slane %v937, 1
    %v939 = vadd.f32 %v937, %v938
    %v940 = vmul.f32 %v926, %v284
    %v941 = vmul.f32 %v939, %v284
    %v942 = vsub.f32 %v876, %v940
    %v943 = vsub.f32 %v878, %v941
    %v944 = vsub.f32 %v880, %v940
    %v945 = vsub.f32 %v882, %v941
    %v946 = vsub.f32 %v886, %v940
    %v947 = vsub.f32 %v888, %v941
    %v948 = vsub.f32 %v890, %v940
    %v949 = vsub.f32 %v892, %v941
    %v950 = vsub.f32 %v896, %v940
    %v951 = vsub.f32 %v898, %v941
    %v952 = vsub.f32 %v900, %v940
    %v953 = vsub.f32 %v902, %v941
    %v954 = vsub.f32 %v906, %v940
    %v955 = vsub.f32 %v908, %v941
    %v956 = vsub.f32 %v910, %v940
    %v957 = vsub.f32 %v912, %v941
    %v958 = vmul.f32 %v942, %v942
    %v959 = vmul.f32 %v943, %v943
    %v960 = vmul.f32 %v944, %v944
    %v961 = vmul.f32 %v945, %v945
    %v962 = vmul.f32 %v946, %v946
    %v963 = vmul.f32 %v947, %v947
    %v964 = vmul.f32 %v948, %v948
    %v965 = vmul.f32 %v949, %v949
    %v966 = vmul.f32 %v950, %v950
    %v967 = vmul.f32 %v951, %v951
    %v968 = vmul.f32 %v952, %v952
    %v969 = vmul.f32 %v953, %v953
    %v970 = vmul.f32 %v954, %v954
    %v971 = vmul.f32 %v955, %v955
    %v972 = vmul.f32 %v956, %v956
    %v973 = vmul.f32 %v957, %v957
    %v974 = vadd.f32 %v958, %v960
    %v975 = vadd.f32 %v974, %v962
    %v976 = vadd.f32 %v975, %v964
    %v977 = vadd.f32 %v976, %v966
    %v978 = vadd.f32 %v977, %v968
    %v979 = vadd.f32 %v978, %v970
    %v980 = vadd.f32 %v979, %v972
    %v981 = vrot.slane %v980, 4
    %v982 = vadd.f32 %v980, %v981
    %v983 = vrot.slane %v982, 2
    %v984 = vadd.f32 %v982, %v983
    %v985 = vrot.slane %v984, 1
    %v986 = vadd.f32 %v984, %v985
    %v987 = vadd.f32 %v959, %v961
    %v988 = vadd.f32 %v987, %v963
    %v989 = vadd.f32 %v988, %v965
    %v990 = vadd.f32 %v989, %v967
    %v991 = vadd.f32 %v990, %v969
    %v992 = vadd.f32 %v991, %v971
    %v993 = vadd.f32 %v992, %v973
    %v994 = vrot.slane %v993, 4
    %v995 = vadd.f32 %v993, %v994
    %v996 = vrot.slane %v995, 2
    %v997 = vadd.f32 %v995, %v996
    %v998 = vrot.slane %v997, 1
    %v999 = vadd.f32 %v997, %v998
    %v1000 = vmul.f32 %v986, %v284
    %v1001 = vmul.f32 %v999, %v284
    %s1002 = scalar_lea.vmem [#allocation9], 6
    %v1003 = vld [vmem:[%s1002] ss:$8 sm:$0x3]
    %v1004 = vadd.f32 %v1000, 1e-05
    %v1005 = vadd.f32 %v1001, 1e-05
    %v1006 = vrsqrt.pop %v1004
    %v1007 = vrsqrt.pop %v1005
    %v1010 = vcombine.low %v1006, %v1007
    %v1012 = vunpack.c.l.s4 1966171168
    %v1013 = vunpack.c.0.s8 %v1012
    %v1014 = vlaneseq
    %v1015 = vshrl.u32 %v1014, 7
    %v1016 = vsub.s32 %v1013, %v1015
    %v1017 = vrot.slane %v1010, %v1016
    %v1019 = vunpack.c.l.s4 1966171168
    %v1020 = vunpack.c.0.s8 %v1019
    %v1021 = vlaneseq
    %v1022 = vshrl.u32 %v1021, 7
    %v1023 = vsub.s32 %v1020, %v1022
    %v1024 = vrot.slane %v1017, %v1023
    %v1026 = vmul.f32 %v1003, %v1024
    %v1028 = vlaneseq
    %v1029 = vshrl.u32 %v1028, 7
    %v1030 = vsub.s32 0, %v1029
    %v1031 = vrot.slane %v1026, %v1030
    %v1032 = vlaneseq
    %v1033 = vshrl.u32 %v1032, 7
    %v1034 = vsub.s32 1, %v1033
    %v1035 = vrot.slane %v1026, %v1034
    %v1038 = vmul.f32 %v942, %v1031
    %v1039 = vmul.f32 %v943, %v1035
    %v1040 = vmul.f32 %v944, %v1031
    %v1041 = vmul.f32 %v945, %v1035
    %v1042 = vmul.f32 %v946, %v1031
    %v1043 = vmul.f32 %v947, %v1035
    %v1044 = vmul.f32 %v948, %v1031
    %v1045 = vmul.f32 %v949, %v1035
    %v1046 = vmul.f32 %v950, %v1031
    %v1047 = vmul.f32 %v951, %v1035
    %v1048 = vmul.f32 %v952, %v1031
    %v1049 = vmul.f32 %v953, %v1035
    %v1050 = vmul.f32 %v954, %v1031
    %v1051 = vmul.f32 %v955, %v1035
    %v1052 = vmul.f32 %v956, %v1031
    %v1053 = vmul.f32 %v957, %v1035
    %s1054 = scalar_lea.vmem [#allocation9], 7
    %v1055 = vld [vmem:[%s1054] ss:$8 sm:$0x3]
    %v1057 = vlaneseq
    %v1058 = vshrl.u32 %v1057, 7
    %v1059 = vsub.s32 0, %v1058
    %v1060 = vrot.slane %v1055, %v1059
    %v1061 = vlaneseq
    %v1062 = vshrl.u32 %v1061, 7
    %v1063 = vsub.s32 1, %v1062
    %v1064 = vrot.slane %v1055, %v1063
    %v1067 = vadd.f32 %v1038, %v1060
    %v1068 = vadd.f32 %v1039, %v1064
    %v1069 = vadd.f32 %v1040, %v1060
    %v1070 = vadd.f32 %v1041, %v1064
    %v1071 = vadd.f32 %v1042, %v1060
    %v1072 = vadd.f32 %v1043, %v1064
    %v1073 = vadd.f32 %v1044, %v1060
    %v1074 = vadd.f32 %v1045, %v1064
    %v1075 = vadd.f32 %v1046, %v1060
    %v1076 = vadd.f32 %v1047, %v1064
    %v1077 = vadd.f32 %v1048, %v1060
    %v1078 = vadd.f32 %v1049, %v1064
    %v1079 = vadd.f32 %v1050, %v1060
    %v1080 = vadd.f32 %v1051, %v1064
    %v1081 = vadd.f32 %v1052, %v1060
    %v1082 = vadd.f32 %v1053, %v1064
    %v1083 = vmax.f32 %v1067, 0.0
    %v1084 = vmax.f32 %v1068, 0.0
    %v1085 = vmax.f32 %v1069, 0.0
    %v1086 = vmax.f32 %v1070, 0.0
    %v1087 = vmax.f32 %v1071, 0.0
    %v1088 = vmax.f32 %v1072, 0.0
    %v1089 = vmax.f32 %v1073, 0.0
    %v1090 = vmax.f32 %v1074, 0.0
    %v1091 = vmax.f32 %v1075, 0.0
    %v1092 = vmax.f32 %v1076, 0.0
    %v1093 = vmax.f32 %v1077, 0.0
    %v1094 = vmax.f32 %v1078, 0.0
    %v1095 = vmax.f32 %v1079, 0.0
    %v1096 = vmax.f32 %v1080, 0.0
    %v1097 = vmax.f32 %v1081, 0.0
    %v1098 = vmax.f32 %v1082, 0.0
    %s1099 = smul.u32 4, 32
    %s1100 = smul.u32 %s1099, 4
    %s1101 = sshll.u32 %s1100, 4
    %1102 = dma.done [#allocation6], %s1101
    %v1103 = vld [vmem:[#allocation2] sm:$0xff]
    %v1104 = vld [vmem:[#allocation2 + $0x8] sm:$0xff]
    %v1105 = vld [vmem:[#allocation2 + $0x10] sm:$0xff]
    %v1106 = vld [vmem:[#allocation2 + $0x18] sm:$0xff]
    %v1107 = vld [vmem:[#allocation2 + $0x20] sm:$0xff]
    %v1108 = vld [vmem:[#allocation2 + $0x28] sm:$0xff]
    %v1109 = vld [vmem:[#allocation2 + $0x30] sm:$0xff]
    %v1110 = vld [vmem:[#allocation2 + $0x38] sm:$0xff]
    %v1111 = vld [vmem:[#allocation2 + $0x40] sm:$0xff]
    %v1112 = vld [vmem:[#allocation2 + $0x48] sm:$0xff]
    %v1113 = vld [vmem:[#allocation2 + $0x50] sm:$0xff]
    %v1114 = vld [vmem:[#allocation2 + $0x58] sm:$0xff]
    %v1115 = vld [vmem:[#allocation2 + $0x60] sm:$0xff]
    %v1116 = vld [vmem:[#allocation2 + $0x68] sm:$0xff]
    %v1117 = vld [vmem:[#allocation2 + $0x70] sm:$0xff]
    %v1118 = vld [vmem:[#allocation2 + $0x78] sm:$0xff]
    %v1119 = vld [vmem:[#allocation2 + $0x80] sm:$0xff]
    %v1120 = vld [vmem:[#allocation2 + $0x88] sm:$0xff]
    %v1121 = vld [vmem:[#allocation2 + $0x90] sm:$0xff]
    %v1122 = vld [vmem:[#allocation2 + $0x98] sm:$0xff]
    %v1123 = vld [vmem:[#allocation2 + $0xa0] sm:$0xff]
    %v1124 = vld [vmem:[#allocation2 + $0xa8] sm:$0xff]
    %v1125 = vld [vmem:[#allocation2 + $0xb0] sm:$0xff]
    %v1126 = vld [vmem:[#allocation2 + $0xb8] sm:$0xff]
    %v1127 = vld [vmem:[#allocation2 + $0xc0] sm:$0xff]
    %v1128 = vld [vmem:[#allocation2 + $0xc8] sm:$0xff]
    %v1129 = vld [vmem:[#allocation2 + $0xd0] sm:$0xff]
    %v1130 = vld [vmem:[#allocation2 + $0xd8] sm:$0xff]
    %v1131 = vld [vmem:[#allocation2 + $0xe0] sm:$0xff]
    %v1132 = vld [vmem:[#allocation2 + $0xe8] sm:$0xff]
    %v1133 = vld [vmem:[#allocation2 + $0xf0] sm:$0xff]
    %v1134 = vld [vmem:[#allocation2 + $0xf8] sm:$0xff]
    %v1135 = vld [vmem:[#allocation2 + $0x100] sm:$0xff]
    %v1136 = vld [vmem:[#allocation2 + $0x108] sm:$0xff]
    %v1137 = vld [vmem:[#allocation2 + $0x110] sm:$0xff]
    %v1138 = vld [vmem:[#allocation2 + $0x118] sm:$0xff]
    %v1139 = vld [vmem:[#allocation2 + $0x120] sm:$0xff]
    %v1140 = vld [vmem:[#allocation2 + $0x128] sm:$0xff]
    %v1141 = vld [vmem:[#allocation2 + $0x130] sm:$0xff]
    %v1142 = vld [vmem:[#allocation2 + $0x138] sm:$0xff]
    %v1143 = vld [vmem:[#allocation2 + $0x140] sm:$0xff]
    %v1144 = vld [vmem:[#allocation2 + $0x148] sm:$0xff]
    %v1145 = vld [vmem:[#allocation2 + $0x150] sm:$0xff]
    %v1146 = vld [vmem:[#allocation2 + $0x158] sm:$0xff]
    %v1147 = vld [vmem:[#allocation2 + $0x160] sm:$0xff]
    %v1148 = vld [vmem:[#allocation2 + $0x168] sm:$0xff]
    %v1149 = vld [vmem:[#allocation2 + $0x170] sm:$0xff]
    %v1150 = vld [vmem:[#allocation2 + $0x178] sm:$0xff]
    %v1151 = vld [vmem:[#allocation2 + $0x180] sm:$0xff]
    %v1152 = vld [vmem:[#allocation2 + $0x188] sm:$0xff]
    %v1153 = vld [vmem:[#allocation2 + $0x190] sm:$0xff]
    %v1154 = vld [vmem:[#allocation2 + $0x198] sm:$0xff]
    %v1155 = vld [vmem:[#allocation2 + $0x1a0] sm:$0xff]
    %v1156 = vld [vmem:[#allocation2 + $0x1a8] sm:$0xff]
    %v1157 = vld [vmem:[#allocation2 + $0x1b0] sm:$0xff]
    %v1158 = vld [vmem:[#allocation2 + $0x1b8] sm:$0xff]
    %v1159 = vld [vmem:[#allocation2 + $0x1c0] sm:$0xff]
    %v1160 = vld [vmem:[#allocation2 + $0x1c8] sm:$0xff]
    %v1161 = vld [vmem:[#allocation2 + $0x1d0] sm:$0xff]
    %v1162 = vld [vmem:[#allocation2 + $0x1d8] sm:$0xff]
    %v1163 = vld [vmem:[#allocation2 + $0x1e0] sm:$0xff]
    %v1164 = vld [vmem:[#allocation2 + $0x1e8] sm:$0xff]
    %v1165 = vld [vmem:[#allocation2 + $0x1f0] sm:$0xff]
    %v1166 = vld [vmem:[#allocation2 + $0x1f8] sm:$0xff]
    %v1167 = vpack.c.bf16 %v1085, %v1083
    %v1168 = vpack.c.bf16 %v1086, %v1084
    %v1169 = vpack.c.bf16 %v1089, %v1087
    %v1170 = vpack.c.bf16 %v1090, %v1088
    %v1171 = vpack.c.bf16 %v1093, %v1091
    %v1172 = vpack.c.bf16 %v1094, %v1092
    %v1173 = vpack.c.bf16 %v1097, %v1095
    %v1174 = vpack.c.bf16 %v1098, %v1096
    %1175 = vmatprep.subr.bf16.mxu0 %v1104
    %1176 = vmatpush1.bf16.msra.mxu0 %v1103
    %1177 = vmatprep.subr.bf16.mxu0 %v1108
    %1178 = vmatpush1.bf16.msra.mxu0 %v1107
    %1179 = vmatprep.subr.bf16.mxu0 %v1112
    %1180 = vmatpush1.bf16.msra.mxu0 %v1111
    %1181 = vmatprep.subr.bf16.mxu0 %v1116
    %1182 = vmatpush1.bf16.msra.mxu0 %v1115
    %1183 = vmatprep.subr.bf16.mxu0 %v1120
    %1184 = vmatpush1.bf16.msra.mxu0 %v1119
    %1185 = vmatprep.subr.bf16.mxu0 %v1124
    %1186 = vmatpush1.bf16.msra.mxu0 %v1123
    %1187 = vmatprep.subr.bf16.mxu0 %v1128
    %1188 = vmatpush1.bf16.msra.mxu0 %v1127
    %1189 = vmatprep.subr.bf16.mxu0 %v1132
    %1190 = vmatpush1.bf16.msra.mxu0 %v1131
    %1191 = vmatprep.subr.bf16.mxu0 %v1136
    %1192 = vmatpush1.bf16.msra.mxu0 %v1135
    %1193 = vmatprep.subr.bf16.mxu0 %v1140
    %1194 = vmatpush1.bf16.msra.mxu0 %v1139
    %1195 = vmatprep.subr.bf16.mxu0 %v1144
    %1196 = vmatpush1.bf16.msra.mxu0 %v1143
    %1197 = vmatprep.subr.bf16.mxu0 %v1148
    %1198 = vmatpush1.bf16.msra.mxu0 %v1147
    %1199 = vmatprep.subr.bf16.mxu0 %v1152
    %1200 = vmatpush1.bf16.msra.mxu0 %v1151
    %1201 = vmatprep.subr.bf16.mxu0 %v1156
    %1202 = vmatpush1.bf16.msra.mxu0 %v1155
    %1203 = vmatprep.subr.bf16.mxu0 %v1160
    %1204 = vmatpush1.bf16.msra.mxu0 %v1159
    %1205 = vmatprep.subr.bf16.mxu0 %v1164
    %1206 = vmatpush1.bf16.msra.mxu0 %v1163
    %1207 = vmatprep.mubr.bf16.mxu0 %v1168
    %1208 = vmatmul.mubr.bf16.gmra.mrb[0].mxu0 %v1167
    %v1209 = vpop.f32.mrb[0].mxu0
    %v1210 = vadd.f32 0.0, %v1209
    %v1211 = vpop.f32.mrb[0].mxu0
    %v1212 = vadd.f32 0.0, %v1211
    %v1213 = vpop.f32.mrb[0].mxu0
    %v1214 = vadd.f32 0.0, %v1213
    %v1215 = vpop.f32.mrb[0].mxu0
    %v1216 = vadd.f32 0.0, %v1215
    %1217 = vmatprep.mubr.bf16.mxu0 %v1170
    %1218 = vmatmul.mubr.bf16.gmra.mrb[0].mxu0 %v1169
    %v1219 = vpop.f32.mrb[0].mxu0
    %v1220 = vadd.f32 0.0, %v1219
    %v1221 = vpop.f32.mrb[0].mxu0
    %v1222 = vadd.f32 0.0, %v1221
    %v1223 = vpop.f32.mrb[0].mxu0
    %v1224 = vadd.f32 0.0, %v1223
    %v1225 = vpop.f32.mrb[0].mxu0
    %v1226 = vadd.f32 0.0, %v1225
    %1227 = vmatprep.mubr.bf16.mxu0 %v1172
    %1228 = vmatmul.mubr.bf16.gmra.mrb[0].mxu0 %v1171
    %v1229 = vpop.f32.mrb[0].mxu0
    %v1230 = vadd.f32 0.0, %v1229
    %v1231 = vpop.f32.mrb[0].mxu0
    %v1232 = vadd.f32 0.0, %v1231
    %v1233 = vpop.f32.mrb[0].mxu0
    %v1234 = vadd.f32 0.0, %v1233
    %v1235 = vpop.f32.mrb[0].mxu0
    %v1236 = vadd.f32 0.0, %v1235
    %1237 = vmatprep.mubr.bf16.mxu0 %v1174
    %1238 = vmatmul.mubr.bf16.gmra.mrb[0].mxu0 %v1173
    %v1239 = vpop.f32.mrb[0].mxu0
    %v1240 = vadd.f32 0.0, %v1239
    %v1241 = vpop.f32.mrb[0].mxu0
    %v1242 = vadd.f32 0.0, %v1241
    %v1243 = vpop.f32.mrb[0].mxu0
    %v1244 = vadd.f32 0.0, %v1243
    %v1245 = vpop.f32.mrb[0].mxu0
    %v1246 = vadd.f32 0.0, %v1245
    %1247 = vdwg.mxu0
    %1248 = vmatprep.subr.bf16.mxu0 %v1106
    %1249 = vmatpush1.bf16.msra.mxu0 %v1105
    %1250 = vmatprep.subr.bf16.mxu0 %v1110
    %1251 = vmatpush1.bf16.msra.mxu0 %v1109
    %1252 = vmatprep.subr.bf16.mxu0 %v1114
    %1253 = vmatpush1.bf16.msra.mxu0 %v1113
    %1254 = vmatprep.subr.bf16.mxu0 %v1118
    %1255 = vmatpush1.bf16.msra.mxu0 %v1117
    %1256 = vmatprep.subr.bf16.mxu0 %v1122
    %1257 = vmatpush1.bf16.msra.mxu0 %v1121
    %1258 = vmatprep.subr.bf16.mxu0 %v1126
    %1259 = vmatpush1.bf16.msra.mxu0 %v1125
    %1260 = vmatprep.subr.bf16.mxu0 %v1130
    %1261 = vmatpush1.bf16.msra.mxu0 %v1129
    %1262 = vmatprep.subr.bf16.mxu0 %v1134
    %1263 = vmatpush1.bf16.msra.mxu0 %v1133
    %1264 = vmatprep.subr.bf16.mxu0 %v1138
    %1265 = vmatpush1.bf16.msra.mxu0 %v1137
    %1266 = vmatprep.subr.bf16.mxu0 %v1142
    %1267 = vmatpush1.bf16.msra.mxu0 %v1141
    %1268 = vmatprep.subr.bf16.mxu0 %v1146
    %1269 = vmatpush1.bf16.msra.mxu0 %v1145
    %1270 = vmatprep.subr.bf16.mxu0 %v1150
    %1271 = vmatpush1.bf16.msra.mxu0 %v1149
    %1272 = vmatprep.subr.bf16.mxu0 %v1154
    %1273 = vmatpush1.bf16.msra.mxu0 %v1153
    %1274 = vmatprep.subr.bf16.mxu0 %v1158
    %1275 = vmatpush1.bf16.msra.mxu0 %v1157
    %1276 = vmatprep.subr.bf16.mxu0 %v1162
    %1277 = vmatpush1.bf16.msra.mxu0 %v1161
    %1278 = vmatprep.subr.bf16.mxu0 %v1166
    %1279 = vmatpush1.bf16.msra.mxu0 %v1165
    %1280 = vmatprep.mubr.bf16.mxu0 %v1168
    %1281 = vmatmul.mubr.bf16.gmra.mrb[0].mxu0 %v1167
    %v1282 = vpop.f32.mrb[0].mxu0
    %v1283 = vadd.f32 0.0, %v1282
    %v1284 = vpop.f32.mrb[0].mxu0
    %v1285 = vadd.f32 0.0, %v1284
    %v1286 = vpop.f32.mrb[0].mxu0
    %v1287 = vadd.f32 0.0, %v1286
    %v1288 = vpop.f32.mrb[0].mxu0
    %v1289 = vadd.f32 0.0, %v1288
    %1290 = vmatprep.mubr.bf16.mxu0 %v1170
    %1291 = vmatmul.mubr.bf16.gmra.mrb[0].mxu0 %v1169
    %v1292 = vpop.f32.mrb[0].mxu0
    %v1293 = vadd.f32 0.0, %v1292
    %v1294 = vpop.f32.mrb[0].mxu0
    %v1295 = vadd.f32 0.0, %v1294
    %v1296 = vpop.f32.mrb[0].mxu0
    %v1297 = vadd.f32 0.0, %v1296
    %v1298 = vpop.f32.mrb[0].mxu0
    %v1299 = vadd.f32 0.0, %v1298
    %1300 = vmatprep.mubr.bf16.mxu0 %v1172
    %1301 = vmatmul.mubr.bf16.gmra.mrb[0].mxu0 %v1171
    %v1302 = vpop.f32.mrb[0].mxu0
    %v1303 = vadd.f32 0.0, %v1302
    %v1304 = vpop.f32.mrb[0].mxu0
    %v1305 = vadd.f32 0.0, %v1304
    %v1306 = vpop.f32.mrb[0].mxu0
    %v1307 = vadd.f32 0.0, %v1306
    %v1308 = vpop.f32.mrb[0].mxu0
    %v1309 = vadd.f32 0.0, %v1308
    %1310 = vmatprep.mubr.bf16.mxu0 %v1174
    %1311 = vmatmul.mubr.bf16.gmra.mrb[0].mxu0 %v1173
    %v1312 = vpop.f32.mrb[0].mxu0
    %v1313 = vadd.f32 0.0, %v1312
    %v1314 = vpop.f32.mrb[0].mxu0
    %v1315 = vadd.f32 0.0, %v1314
    %v1316 = vpop.f32.mrb[0].mxu0
    %v1317 = vadd.f32 0.0, %v1316
    %v1318 = vpop.f32.mrb[0].mxu0
    %v1319 = vadd.f32 0.0, %v1318
    %1320 = vdwg.mxu0
    %v1321 = vadd.f32 %v1210, %v1214
    %v1322 = vadd.f32 %v1321, %v1220
    %v1323 = vadd.f32 %v1322, %v1224
    %v1324 = vadd.f32 %v1323, %v1230
    %v1325 = vadd.f32 %v1324, %v1234
    %v1326 = vadd.f32 %v1325, %v1240
    %v1327 = vadd.f32 %v1326, %v1244
    %v1328 = vrot.slane %v1327, 4
    %v1329 = vadd.f32 %v1327, %v1328
    %v1330 = vrot.slane %v1329, 2
    %v1331 = vadd.f32 %v1329, %v1330
    %v1332 = vrot.slane %v1331, 1
    %v1333 = vadd.f32 %v1331, %v1332
    %v1334 = vadd.f32 %v1212, %v1216
    %v1335 = vadd.f32 %v1334, %v1222
    %v1336 = vadd.f32 %v1335, %v1226
    %v1337 = vadd.f32 %v1336, %v1232
    %v1338 = vadd.f32 %v1337, %v1236
    %v1339 = vadd.f32 %v1338, %v1242
    %v1340 = vadd.f32 %v1339, %v1246
    %v1341 = vrot.slane %v1340, 4
    %v1342 = vadd.f32 %v1340, %v1341
    %v1343 = vrot.slane %v1342, 2
    %v1344 = vadd.f32 %v1342, %v1343
    %v1345 = vrot.slane %v1344, 1
    %v1346 = vadd.f32 %v1344, %v1345
    %v1347 = vadd.f32 %v1283, %v1287
    %v1348 = vadd.f32 %v1347, %v1293
    %v1349 = vadd.f32 %v1348, %v1297
    %v1350 = vadd.f32 %v1349, %v1303
    %v1351 = vadd.f32 %v1350, %v1307
    %v1352 = vadd.f32 %v1351, %v1313
    %v1353 = vadd.f32 %v1352, %v1317
    %v1354 = vrot.slane %v1353, 4
    %v1355 = vadd.f32 %v1353, %v1354
    %v1356 = vrot.slane %v1355, 2
    %v1357 = vadd.f32 %v1355, %v1356
    %v1358 = vrot.slane %v1357, 1
    %v1359 = vadd.f32 %v1357, %v1358
    %v1360 = vadd.f32 %v1285, %v1289
    %v1361 = vadd.f32 %v1360, %v1295
    %v1362 = vadd.f32 %v1361, %v1299
    %v1363 = vadd.f32 %v1362, %v1305
    %v1364 = vadd.f32 %v1363, %v1309
    %v1365 = vadd.f32 %v1364, %v1315
    %v1366 = vadd.f32 %v1365, %v1319
    %v1367 = vrot.slane %v1366, 4
    %v1368 = vadd.f32 %v1366, %v1367
    %v1369 = vrot.slane %v1368, 2
    %v1370 = vadd.f32 %v1368, %v1369
    %v1371 = vrot.slane %v1370, 1
    %v1372 = vadd.f32 %v1370, %v1371
    %v1373 = vmul.f32 %v1333, %v284
    %v1374 = vmul.f32 %v1346, %v284
    %v1375 = vmul.f32 %v1359, %v284
    %v1376 = vmul.f32 %v1372, %v284
    %v1377 = vsub.f32 %v1210, %v1373
    %v1378 = vsub.f32 %v1212, %v1374
    %v1379 = vsub.f32 %v1283, %v1375
    %v1380 = vsub.f32 %v1285, %v1376
    %v1381 = vsub.f32 %v1214, %v1373
    %v1382 = vsub.f32 %v1216, %v1374
    %v1383 = vsub.f32 %v1287, %v1375
    %v1384 = vsub.f32 %v1289, %v1376
    %v1385 = vsub.f32 %v1220, %v1373
    %v1386 = vsub.f32 %v1222, %v1374
    %v1387 = vsub.f32 %v1293, %v1375
    %v1388 = vsub.f32 %v1295, %v1376
    %v1389 = vsub.f32 %v1224, %v1373
    %v1390 = vsub.f32 %v1226, %v1374
    %v1391 = vsub.f32 %v1297, %v1375
    %v1392 = vsub.f32 %v1299, %v1376
    %v1393 = vsub.f32 %v1230, %v1373
    %v1394 = vsub.f32 %v1232, %v1374
    %v1395 = vsub.f32 %v1303, %v1375
    %v1396 = vsub.f32 %v1305, %v1376
    %v1397 = vsub.f32 %v1234, %v1373
    %v1398 = vsub.f32 %v1236, %v1374
    %v1399 = vsub.f32 %v1307, %v1375
    %v1400 = vsub.f32 %v1309, %v1376
    %v1401 = vsub.f32 %v1240, %v1373
    %v1402 = vsub.f32 %v1242, %v1374
    %v1403 = vsub.f32 %v1313, %v1375
    %v1404 = vsub.f32 %v1315, %v1376
    %v1405 = vsub.f32 %v1244, %v1373
    %v1406 = vsub.f32 %v1246, %v1374
    %v1407 = vsub.f32 %v1317, %v1375
    %v1408 = vsub.f32 %v1319, %v1376
    %v1409 = vmul.f32 %v1377, %v1377
    %v1410 = vmul.f32 %v1378, %v1378
    %v1411 = vmul.f32 %v1379, %v1379
    %v1412 = vmul.f32 %v1380, %v1380
    %v1413 = vmul.f32 %v1381, %v1381
    %v1414 = vmul.f32 %v1382, %v1382
    %v1415 = vmul.f32 %v1383, %v1383
    %v1416 = vmul.f32 %v1384, %v1384
    %v1417 = vmul.f32 %v1385, %v1385
    %v1418 = vmul.f32 %v1386, %v1386
    %v1419 = vmul.f32 %v1387, %v1387
    %v1420 = vmul.f32 %v1388, %v1388
    %v1421 = vmul.f32 %v1389, %v1389
    %v1422 = vmul.f32 %v1390, %v1390
    %v1423 = vmul.f32 %v1391, %v1391
    %v1424 = vmul.f32 %v1392, %v1392
    %v1425 = vmul.f32 %v1393, %v1393
    %v1426 = vmul.f32 %v1394, %v1394
    %v1427 = vmul.f32 %v1395, %v1395
    %v1428 = vmul.f32 %v1396, %v1396
    %v1429 = vmul.f32 %v1397, %v1397
    %v1430 = vmul.f32 %v1398, %v1398
    %v1431 = vmul.f32 %v1399, %v1399
    %v1432 = vmul.f32 %v1400, %v1400
    %v1433 = vmul.f32 %v1401, %v1401
    %v1434 = vmul.f32 %v1402, %v1402
    %v1435 = vmul.f32 %v1403, %v1403
    %v1436 = vmul.f32 %v1404, %v1404
    %v1437 = vmul.f32 %v1405, %v1405
    %v1438 = vmul.f32 %v1406, %v1406
    %v1439 = vmul.f32 %v1407, %v1407
    %v1440 = vmul.f32 %v1408, %v1408
    %v1441 = vadd.f32 %v1409, %v1413
    %v1442 = vadd.f32 %v1441, %v1417
    %v1443 = vadd.f32 %v1442, %v1421
    %v1444 = vadd.f32 %v1443, %v1425
    %v1445 = vadd.f32 %v1444, %v1429
    %v1446 = vadd.f32 %v1445, %v1433
    %v1447 = vadd.f32 %v1446, %v1437
    %v1448 = vrot.slane %v1447, 4
    %v1449 = vadd.f32 %v1447, %v1448
    %v1450 = vrot.slane %v1449, 2
    %v1451 = vadd.f32 %v1449, %v1450
    %v1452 = vrot.slane %v1451, 1
    %v1453 = vadd.f32 %v1451, %v1452
    %v1454 = vadd.f32 %v1410, %v1414
    %v1455 = vadd.f32 %v1454, %v1418
    %v1456 = vadd.f32 %v1455, %v1422
    %v1457 = vadd.f32 %v1456, %v1426
    %v1458 = vadd.f32 %v1457, %v1430
    %v1459 = vadd.f32 %v1458, %v1434
    %v1460 = vadd.f32 %v1459, %v1438
    %v1461 = vrot.slane %v1460, 4
    %v1462 = vadd.f32 %v1460, %v1461
    %v1463 = vrot.slane %v1462, 2
    %v1464 = vadd.f32 %v1462, %v1463
    %v1465 = vrot.slane %v1464, 1
    %v1466 = vadd.f32 %v1464, %v1465
    %v1467 = vadd.f32 %v1411, %v1415
    %v1468 = vadd.f32 %v1467, %v1419
    %v1469 = vadd.f32 %v1468, %v1423
    %v1470 = vadd.f32 %v1469, %v1427
    %v1471 = vadd.f32 %v1470, %v1431
    %v1472 = vadd.f32 %v1471, %v1435
    %v1473 = vadd.f32 %v1472, %v1439
    %v1474 = vrot.slane %v1473, 4
    %v1475 = vadd.f32 %v1473, %v1474
    %v1476 = vrot.slane %v1475, 2
    %v1477 = vadd.f32 %v1475, %v1476
    %v1478 = vrot.slane %v1477, 1
    %v1479 = vadd.f32 %v1477, %v1478
    %v1480 = vadd.f32 %v1412, %v1416
    %v1481 = vadd.f32 %v1480, %v1420
    %v1482 = vadd.f32 %v1481, %v1424
    %v1483 = vadd.f32 %v1482, %v1428
    %v1484 = vadd.f32 %v1483, %v1432
    %v1485 = vadd.f32 %v1484, %v1436
    %v1486 = vadd.f32 %v1485, %v1440
    %v1487 = vrot.slane %v1486, 4
    %v1488 = vadd.f32 %v1486, %v1487
    %v1489 = vrot.slane %v1488, 2
    %v1490 = vadd.f32 %v1488, %v1489
    %v1491 = vrot.slane %v1490, 1
    %v1492 = vadd.f32 %v1490, %v1491
    %v1493 = vmul.f32 %v1453, %v284
    %v1494 = vmul.f32 %v1466, %v284
    %v1495 = vmul.f32 %v1479, %v284
    %v1496 = vmul.f32 %v1492, %v284
    %s1497 = scalar_lea.vmem [#allocation9], 64
    %v1498 = vld [vmem:[%s1497] ss:$8 sm:$0xf]
    %v1499 = vadd.f32 %v1493, 1e-05
    %v1500 = vadd.f32 %v1494, 1e-05
    %v1501 = vadd.f32 %v1495, 1e-05
    %v1502 = vadd.f32 %v1496, 1e-05
    %v1503 = vrsqrt.pop %v1499
    %v1504 = vrsqrt.pop %v1500
    %v1505 = vrsqrt.pop %v1501
    %v1506 = vrsqrt.pop %v1502
    %v1511 = vcombine.low %v1503, %v1504
    %v1512 = vcombine.low %v1505, %v1506
    %v1514 = vunpack.c.l.s4 1966171168
    %v1515 = vunpack.c.0.s8 %v1514
    %v1516 = vlaneseq
    %v1517 = vshrl.u32 %v1516, 7
    %v1518 = vsub.s32 %v1515, %v1517
    %v1519 = vrot.slane %v1511, %v1518
    %v1521 = vunpack.c.l.s4 1966171168
    %v1522 = vunpack.c.0.s8 %v1521
    %v1523 = vlaneseq
    %v1524 = vshrl.u32 %v1523, 7
    %v1525 = vsub.s32 %v1522, %v1524
    %v1526 = vrot.slane %v1512, %v1525
    %v1527 = vcombine.low %v1519, %v1526
    %v1529 = vunpack.c.l.s4 1966171168
    %v1530 = vunpack.c.0.s8 %v1529
    %v1531 = vlaneseq
    %v1532 = vshrl.u32 %v1531, 7
    %v1533 = vsub.s32 %v1530, %v1532
    %v1534 = vrot.slane %v1527, %v1533
    %v1536 = vmul.f32 %v1498, %v1534
    %v1538 = vlaneseq
    %v1539 = vshrl.u32 %v1538, 7
    %v1540 = vsub.s32 0, %v1539
    %v1541 = vrot.slane %v1536, %v1540
    %v1542 = vlaneseq
    %v1543 = vshrl.u32 %v1542, 7
    %v1544 = vsub.s32 1, %v1543
    %v1545 = vrot.slane %v1536, %v1544
    %v1546 = vlaneseq
    %v1547 = vshrl.u32 %v1546, 7
    %v1548 = vsub.s32 2, %v1547
    %v1549 = vrot.slane %v1536, %v1548
    %v1550 = vlaneseq
    %v1551 = vshrl.u32 %v1550, 7
    %v1552 = vsub.s32 3, %v1551
    %v1553 = vrot.slane %v1536, %v1552
    %v1558 = vmul.f32 %v1377, %v1541
    %v1559 = vmul.f32 %v1378, %v1545
    %v1560 = vmul.f32 %v1379, %v1549
    %v1561 = vmul.f32 %v1380, %v1553
    %v1562 = vmul.f32 %v1381, %v1541
    %v1563 = vmul.f32 %v1382, %v1545
    %v1564 = vmul.f32 %v1383, %v1549
    %v1565 = vmul.f32 %v1384, %v1553
    %v1566 = vmul.f32 %v1385, %v1541
    %v1567 = vmul.f32 %v1386, %v1545
    %v1568 = vmul.f32 %v1387, %v1549
    %v1569 = vmul.f32 %v1388, %v1553
    %v1570 = vmul.f32 %v1389, %v1541
    %v1571 = vmul.f32 %v1390, %v1545
    %v1572 = vmul.f32 %v1391, %v1549
    %v1573 = vmul.f32 %v1392, %v1553
    %v1574 = vmul.f32 %v1393, %v1541
    %v1575 = vmul.f32 %v1394, %v1545
    %v1576 = vmul.f32 %v1395, %v1549
    %v1577 = vmul.f32 %v1396, %v1553
    %v1578 = vmul.f32 %v1397, %v1541
    %v1579 = vmul.f32 %v1398, %v1545
    %v1580 = vmul.f32 %v1399, %v1549
    %v1581 = vmul.f32 %v1400, %v1553
    %v1582 = vmul.f32 %v1401, %v1541
    %v1583 = vmul.f32 %v1402, %v1545
    %v1584 = vmul.f32 %v1403, %v1549
    %v1585 = vmul.f32 %v1404, %v1553
    %v1586 = vmul.f32 %v1405, %v1541
    %v1587 = vmul.f32 %v1406, %v1545
    %v1588 = vmul.f32 %v1407, %v1549
    %v1589 = vmul.f32 %v1408, %v1553
    %s1590 = scalar_lea.vmem [#allocation9], 65
    %v1591 = vld [vmem:[%s1590] ss:$8 sm:$0xf]
    %v1593 = vlaneseq
    %v1594 = vshrl.u32 %v1593, 7
    %v1595 = vsub.s32 0, %v1594
    %v1596 = vrot.slane %v1591, %v1595
    %v1597 = vlaneseq
    %v1598 = vshrl.u32 %v1597, 7
    %v1599 = vsub.s32 1, %v1598
    %v1600 = vrot.slane %v1591, %v1599
    %v1601 = vlaneseq
    %v1602 = vshrl.u32 %v1601, 7
    %v1603 = vsub.s32 2, %v1602
    %v1604 = vrot.slane %v1591, %v1603
    %v1605 = vlaneseq
    %v1606 = vshrl.u32 %v1605, 7
    %v1607 = vsub.s32 3, %v1606
    %v1608 = vrot.slane %v1591, %v1607
    %v1613 = vadd.f32 %v1558, %v1596
    %v1614 = vadd.f32 %v1559, %v1600
    %v1615 = vadd.f32 %v1560, %v1604
    %v1616 = vadd.f32 %v1561, %v1608
    %v1617 = vadd.f32 %v1562, %v1596
    %v1618 = vadd.f32 %v1563, %v1600
    %v1619 = vadd.f32 %v1564, %v1604
    %v1620 = vadd.f32 %v1565, %v1608
    %v1621 = vadd.f32 %v1566, %v1596
    %v1622 = vadd.f32 %v1567, %v1600
    %v1623 = vadd.f32 %v1568, %v1604
    %v1624 = vadd.f32 %v1569, %v1608
    %v1625 = vadd.f32 %v1570, %v1596
    %v1626 = vadd.f32 %v1571, %v1600
    %v1627 = vadd.f32 %v1572, %v1604
    %v1628 = vadd.f32 %v1573, %v1608
    %v1629 = vadd.f32 %v1574, %v1596
    %v1630 = vadd.f32 %v1575, %v1600
    %v1631 = vadd.f32 %v1576, %v1604
    %v1632 = vadd.f32 %v1577, %v1608
    %v1633 = vadd.f32 %v1578, %v1596
    %v1634 = vadd.f32 %v1579, %v1600
    %v1635 = vadd.f32 %v1580, %v1604
    %v1636 = vadd.f32 %v1581, %v1608
    %v1637 = vadd.f32 %v1582, %v1596
    %v1638 = vadd.f32 %v1583, %v1600
    %v1639 = vadd.f32 %v1584, %v1604
    %v1640 = vadd.f32 %v1585, %v1608
    %v1641 = vadd.f32 %v1586, %v1596
    %v1642 = vadd.f32 %v1587, %v1600
    %v1643 = vadd.f32 %v1588, %v1604
    %v1644 = vadd.f32 %v1589, %v1608
    %v1645 = vmax.f32 %v1613, 0.0
    %v1646 = vmax.f32 %v1614, 0.0
    %v1647 = vmax.f32 %v1615, 0.0
    %v1648 = vmax.f32 %v1616, 0.0
    %v1649 = vmax.f32 %v1617, 0.0
    %v1650 = vmax.f32 %v1618, 0.0
    %v1651 = vmax.f32 %v1619, 0.0
    %v1652 = vmax.f32 %v1620, 0.0
    %v1653 = vmax.f32 %v1621, 0.0
    %v1654 = vmax.f32 %v1622, 0.0
    %v1655 = vmax.f32 %v1623, 0.0
    %v1656 = vmax.f32 %v1624, 0.0
    %v1657 = vmax.f32 %v1625, 0.0
    %v1658 = vmax.f32 %v1626, 0.0
    %v1659 = vmax.f32 %v1627, 0.0
    %v1660 = vmax.f32 %v1628, 0.0
    %v1661 = vmax.f32 %v1629, 0.0
    %v1662 = vmax.f32 %v1630, 0.0
    %v1663 = vmax.f32 %v1631, 0.0
    %v1664 = vmax.f32 %v1632, 0.0
    %v1665 = vmax.f32 %v1633, 0.0
    %v1666 = vmax.f32 %v1634, 0.0
    %v1667 = vmax.f32 %v1635, 0.0
    %v1668 = vmax.f32 %v1636, 0.0
    %v1669 = vmax.f32 %v1637, 0.0
    %v1670 = vmax.f32 %v1638, 0.0
    %v1671 = vmax.f32 %v1639, 0.0
    %v1672 = vmax.f32 %v1640, 0.0
    %v1673 = vmax.f32 %v1641, 0.0
    %v1674 = vmax.f32 %v1642, 0.0
    %v1675 = vmax.f32 %v1643, 0.0
    %v1676 = vmax.f32 %v1644, 0.0
    %s1677 = smul.u32 4, 64
    %s1678 = smul.u32 %s1677, 8
    %s1679 = sshll.u32 %s1678, 4
    %1680 = dma.done %s85, %s1679
    %v1681 = vld [vmem:[#allocation3] sm:$0xff]
    %v1682 = vld [vmem:[#allocation3 + $0x8] sm:$0xff]
    %v1683 = vld [vmem:[#allocation3 + $0x10] sm:$0xff]
    %v1684 = vld [vmem:[#allocation3 + $0x18] sm:$0xff]
    %v1685 = vld [vmem:[#allocation3 + $0x20] sm:$0xff]
    %v1686 = vld [vmem:[#allocation3 + $0x28] sm:$0xff]
    %v1687 = vld [vmem:[#allocation3 + $0x30] sm:$0xff]
    %v1688 = vld [vmem:[#allocation3 + $0x38] sm:$0xff]
    %v1689 = vld [vmem:[#allocation3 + $0x40] sm:$0xff]
    %v1690 = vld [vmem:[#allocation3 + $0x48] sm:$0xff]
    %v1691 = vld [vmem:[#allocation3 + $0x50] sm:$0xff]
    %v1692 = vld [vmem:[#allocation3 + $0x58] sm:$0xff]
    %v1693 = vld [vmem:[#allocation3 + $0x60] sm:$0xff]
    %v1694 = vld [vmem:[#allocation3 + $0x68] sm:$0xff]
    %v1695 = vld [vmem:[#allocation3 + $0x70] sm:$0xff]
    %v1696 = vld [vmem:[#allocation3 + $0x78] sm:$0xff]
    %v1697 = vld [vmem:[#allocation3 + $0x80] sm:$0xff]
    %v1698 = vld [vmem:[#allocation3 + $0x88] sm:$0xff]
    %v1699 = vld [vmem:[#allocation3 + $0x90] sm:$0xff]
    %v1700 = vld [vmem:[#allocation3 + $0x98] sm:$0xff]
    %v1701 = vld [vmem:[#allocation3 + $0xa0] sm:$0xff]
    %v1702 = vld [vmem:[#allocation3 + $0xa8] sm:$0xff]
    %v1703 = vld [vmem:[#allocation3 + $0xb0] sm:$0xff]
    %v1704 = vld [vmem:[#allocation3 + $0xb8] sm:$0xff]
    %v1705 = vld [vmem:[#allocation3 + $0xc0] sm:$0xff]
    %v1706 = vld [vmem:[#allocation3 + $0xc8] sm:$0xff]
    %v1707 = vld [vmem:[#allocation3 + $0xd0] sm:$0xff]
    %v1708 = vld [vmem:[#allocation3 + $0xd8] sm:$0xff]
    %v1709 = vld [vmem:[#allocation3 + $0xe0] sm:$0xff]
    %v1710 = vld [vmem:[#allocation3 + $0xe8] sm:$0xff]
    %v1711 = vld [vmem:[#allocation3 + $0xf0] sm:$0xff]
    %v1712 = vld [vmem:[#allocation3 + $0xf8] sm:$0xff]
    %v1713 = vld [vmem:[#allocation3 + $0x100] sm:$0xff]
    %v1714 = vld [vmem:[#allocation3 + $0x108] sm:$0xff]
    %v1715 = vld [vmem:[#allocation3 + $0x110] sm:$0xff]
    %v1716 = vld [vmem:[#allocation3 + $0x118] sm:$0xff]
    %v1717 = vld [vmem:[#allocation3 + $0x120] sm:$0xff]
    %v1718 = vld [vmem:[#allocation3 + $0x128] sm:$0xff]
    %v1719 = vld [vmem:[#allocation3 + $0x130] sm:$0xff]
    %v1720 = vld [vmem:[#allocation3 + $0x138] sm:$0xff]
    %v1721 = vld [vmem:[#allocation3 + $0x140] sm:$0xff]
    %v1722 = vld [vmem:[#allocation3 + $0x148] sm:$0xff]
    %v1723 = vld [vmem:[#allocation3 + $0x150] sm:$0xff]
    %v1724 = vld [vmem:[#allocation3 + $0x158] sm:$0xff]
    %v1725 = vld [vmem:[#allocation3 + $0x160] sm:$0xff]
    %v1726 = vld [vmem:[#allocation3 + $0x168] sm:$0xff]
    %v1727 = vld [vmem:[#allocation3 + $0x170] sm:$0xff]
    %v1728 = vld [vmem:[#allocation3 + $0x178] sm:$0xff]
    %v1729 = vld [vmem:[#allocation3 + $0x180] sm:$0xff]
    %v1730 = vld [vmem:[#allocation3 + $0x188] sm:$0xff]
    %v1731 = vld [vmem:[#allocation3 + $0x190] sm:$0xff]
    %v1732 = vld [vmem:[#allocation3 + $0x198] sm:$0xff]
    %v1733 = vld [vmem:[#allocation3 + $0x1a0] sm:$0xff]
    %v1734 = vld [vmem:[#allocation3 + $0x1a8] sm:$0xff]
    %v1735 = vld [vmem:[#allocation3 + $0x1b0] sm:$0xff]
    %v1736 = vld [vmem:[#allocation3 + $0x1b8] sm:$0xff]
    %v1737 = vld [vmem:[#allocation3 + $0x1c0] sm:$0xff]
    %v1738 = vld [vmem:[#allocation3 + $0x1c8] sm:$0xff]
    %v1739 = vld [vmem:[#allocation3 + $0x1d0] sm:$0xff]
    %v1740 = vld [vmem:[#allocation3 + $0x1d8] sm:$0xff]
    %v1741 = vld [vmem:[#allocation3 + $0x1e0] sm:$0xff]
    %v1742 = vld [vmem:[#allocation3 + $0x1e8] sm:$0xff]
    %v1743 = vld [vmem:[#allocation3 + $0x1f0] sm:$0xff]
    %v1744 = vld [vmem:[#allocation3 + $0x1f8] sm:$0xff]
    %v1745 = vld [vmem:[#allocation3 + $0x200] sm:$0xff]
    %v1746 = vld [vmem:[#allocation3 + $0x208] sm:$0xff]
    %v1747 = vld [vmem:[#allocation3 + $0x210] sm:$0xff]
    %v1748 = vld [vmem:[#allocation3 + $0x218] sm:$0xff]
    %v1749 = vld [vmem:[#allocation3 + $0x220] sm:$0xff]
    %v1750 = vld [vmem:[#allocation3 + $0x228] sm:$0xff]
    %v1751 = vld [vmem:[#allocation3 + $0x230] sm:$0xff]
    %v1752 = vld [vmem:[#allocation3 + $0x238] sm:$0xff]
    %v1753 = vld [vmem:[#allocation3 + $0x240] sm:$0xff]
    %v1754 = vld [vmem:[#allocation3 + $0x248] sm:$0xff]
    %v1755 = vld [vmem:[#allocation3 + $0x250] sm:$0xff]
    %v1756 = vld [vmem:[#allocation3 + $0x258] sm:$0xff]
    %v1757 = vld [vmem:[#allocation3 + $0x260] sm:$0xff]
    %v1758 = vld [vmem:[#allocation3 + $0x268] sm:$0xff]
    %v1759 = vld [vmem:[#allocation3 + $0x270] sm:$0xff]
    %v1760 = vld [vmem:[#allocation3 + $0x278] sm:$0xff]
    %v1761 = vld [vmem:[#allocation3 + $0x280] sm:$0xff]
    %v1762 = vld [vmem:[#allocation3 + $0x288] sm:$0xff]
    %v1763 = vld [vmem:[#allocation3 + $0x290] sm:$0xff]
    %v1764 = vld [vmem:[#allocation3 + $0x298] sm:$0xff]
    %v1765 = vld [vmem:[#allocation3 + $0x2a0] sm:$0xff]
    %v1766 = vld [vmem:[#allocation3 + $0x2a8] sm:$0xff]
    %v1767 = vld [vmem:[#allocation3 + $0x2b0] sm:$0xff]
    %v1768 = vld [vmem:[#allocation3 + $0x2b8] sm:$0xff]
    %v1769 = vld [vmem:[#allocation3 + $0x2c0] sm:$0xff]
    %v1770 = vld [vmem:[#allocation3 + $0x2c8] sm:$0xff]
    %v1771 = vld [vmem:[#allocation3 + $0x2d0] sm:$0xff]
    %v1772 = vld [vmem:[#allocation3 + $0x2d8] sm:$0xff]
    %v1773 = vld [vmem:[#allocation3 + $0x2e0] sm:$0xff]
    %v1774 = vld [vmem:[#allocation3 + $0x2e8] sm:$0xff]
    %v1775 = vld [vmem:[#allocation3 + $0x2f0] sm:$0xff]
    %v1776 = vld [vmem:[#allocation3 + $0x2f8] sm:$0xff]
    %v1777 = vld [vmem:[#allocation3 + $0x300] sm:$0xff]
    %v1778 = vld [vmem:[#allocation3 + $0x308] sm:$0xff]
    %v1779 = vld [vmem:[#allocation3 + $0x310] sm:$0xff]
    %v1780 = vld [vmem:[#allocation3 + $0x318] sm:$0xff]
    %v1781 = vld [vmem:[#allocation3 + $0x320] sm:$0xff]
    %v1782 = vld [vmem:[#allocation3 + $0x328] sm:$0xff]
    %v1783 = vld [vmem:[#allocation3 + $0x330] sm:$0xff]
    %v1784 = vld [vmem:[#allocation3 + $0x338] sm:$0xff]
    %v1785 = vld [vmem:[#allocation3 + $0x340] sm:$0xff]
    %v1786 = vld [vmem:[#allocation3 + $0x348] sm:$0xff]
    %v1787 = vld [vmem:[#allocation3 + $0x350] sm:$0xff]
    %v1788 = vld [vmem:[#allocation3 + $0x358] sm:$0xff]
    %v1789 = vld [vmem:[#allocation3 + $0x360] sm:$0xff]
    %v1790 = vld [vmem:[#allocation3 + $0x368] sm:$0xff]
    %v1791 = vld [vmem:[#allocation3 + $0x370] sm:$0xff]
    %v1792 = vld [vmem:[#allocation3 + $0x378] sm:$0xff]
    %v1793 = vld [vmem:[#allocation3 + $0x380] sm:$0xff]
    %v1794 = vld [vmem:[#allocation3 + $0x388] sm:$0xff]
    %v1795 = vld [vmem:[#allocation3 + $0x390] sm:$0xff]
    %v1796 = vld [vmem:[#allocation3 + $0x398] sm:$0xff]
    %v1797 = vld [vmem:[#allocation3 + $0x3a0] sm:$0xff]
    %v1798 = vld [vmem:[#allocation3 + $0x3a8] sm:$0xff]
    %v1799 = vld [vmem:[#allocation3 + $0x3b0] sm:$0xff]
    %v1800 = vld [vmem:[#allocation3 + $0x3b8] sm:$0xff]
    %v1801 = vld [vmem:[#allocation3 + $0x3c0] sm:$0xff]
    %v1802 = vld [vmem:[#allocation3 + $0x3c8] sm:$0xff]
    %v1803 = vld [vmem:[#allocation3 + $0x3d0] sm:$0xff]
    %v1804 = vld [vmem:[#allocation3 + $0x3d8] sm:$0xff]
    %v1805 = vld [vmem:[#allocation3 + $0x3e0] sm:$0xff]
    %v1806 = vld [vmem:[#allocation3 + $0x3e8] sm:$0xff]
    %v1807 = vld [vmem:[#allocation3 + $0x3f0] sm:$0xff]
    %v1808 = vld [vmem:[#allocation3 + $0x3f8] sm:$0xff]
    %v1809 = vld [vmem:[#allocation3 + $0x400] sm:$0xff]
    %v1810 = vld [vmem:[#allocation3 + $0x408] sm:$0xff]
    %v1811 = vld [vmem:[#allocation3 + $0x410] sm:$0xff]
    %v1812 = vld [vmem:[#allocation3 + $0x418] sm:$0xff]
    %v1813 = vld [vmem:[#allocation3 + $0x420] sm:$0xff]
    %v1814 = vld [vmem:[#allocation3 + $0x428] sm:$0xff]
    %v1815 = vld [vmem:[#allocation3 + $0x430] sm:$0xff]
    %v1816 = vld [vmem:[#allocation3 + $0x438] sm:$0xff]
    %v1817 = vld [vmem:[#allocation3 + $0x440] sm:$0xff]
    %v1818 = vld [vmem:[#allocation3 + $0x448] sm:$0xff]
    %v1819 = vld [vmem:[#allocation3 + $0x450] sm:$0xff]
    %v1820 = vld [vmem:[#allocation3 + $0x458] sm:$0xff]
    %v1821 = vld [vmem:[#allocation3 + $0x460] sm:$0xff]
    %v1822 = vld [vmem:[#allocation3 + $0x468] sm:$0xff]
    %v1823 = vld [vmem:[#allocation3 + $0x470] sm:$0xff]
    %v1824 = vld [vmem:[#allocation3 + $0x478] sm:$0xff]
    %v1825 = vld [vmem:[#allocation3 + $0x480] sm:$0xff]
    %v1826 = vld [vmem:[#allocation3 + $0x488] sm:$0xff]
    %v1827 = vld [vmem:[#allocation3 + $0x490] sm:$0xff]
    %v1828 = vld [vmem:[#allocation3 + $0x498] sm:$0xff]
    %v1829 = vld [vmem:[#allocation3 + $0x4a0] sm:$0xff]
    %v1830 = vld [vmem:[#allocation3 + $0x4a8] sm:$0xff]
    %v1831 = vld [vmem:[#allocation3 + $0x4b0] sm:$0xff]
    %v1832 = vld [vmem:[#allocation3 + $0x4b8] sm:$0xff]
    %v1833 = vld [vmem:[#allocation3 + $0x4c0] sm:$0xff]
    %v1834 = vld [vmem:[#allocation3 + $0x4c8] sm:$0xff]
    %v1835 = vld [vmem:[#allocation3 + $0x4d0] sm:$0xff]
    %v1836 = vld [vmem:[#allocation3 + $0x4d8] sm:$0xff]
    %v1837 = vld [vmem:[#allocation3 + $0x4e0] sm:$0xff]
    %v1838 = vld [vmem:[#allocation3 + $0x4e8] sm:$0xff]
    %v1839 = vld [vmem:[#allocation3 + $0x4f0] sm:$0xff]
    %v1840 = vld [vmem:[#allocation3 + $0x4f8] sm:$0xff]
    %v1841 = vld [vmem:[#allocation3 + $0x500] sm:$0xff]
    %v1842 = vld [vmem:[#allocation3 + $0x508] sm:$0xff]
    %v1843 = vld [vmem:[#allocation3 + $0x510] sm:$0xff]
    %v1844 = vld [vmem:[#allocation3 + $0x518] sm:$0xff]
    %v1845 = vld [vmem:[#allocation3 + $0x520] sm:$0xff]
    %v1846 = vld [vmem:[#allocation3 + $0x528] sm:$0xff]
    %v1847 = vld [vmem:[#allocation3 + $0x530] sm:$0xff]
    %v1848 = vld [vmem:[#allocation3 + $0x538] sm:$0xff]
    %v1849 = vld [vmem:[#allocation3 + $0x540] sm:$0xff]
    %v1850 = vld [vmem:[#allocation3 + $0x548] sm:$0xff]
    %v1851 = vld [vmem:[#allocation3 + $0x550] sm:$0xff]
    %v1852 = vld [vmem:[#allocation3 + $0x558] sm:$0xff]
    %v1853 = vld [vmem:[#allocation3 + $0x560] sm:$0xff]
    %v1854 = vld [vmem:[#allocation3 + $0x568] sm:$0xff]
    %v1855 = vld [vmem:[#allocation3 + $0x570] sm:$0xff]
    %v1856 = vld [vmem:[#allocation3 + $0x578] sm:$0xff]
    %v1857 = vld [vmem:[#allocation3 + $0x580] sm:$0xff]
    %v1858 = vld [vmem:[#allocation3 + $0x588] sm:$0xff]
    %v1859 = vld [vmem:[#allocation3 + $0x590] sm:$0xff]
    %v1860 = vld [vmem:[#allocation3 + $0x598] sm:$0xff]
    %v1861 = vld [vmem:[#allocation3 + $0x5a0] sm:$0xff]
    %v1862 = vld [vmem:[#allocation3 + $0x5a8] sm:$0xff]
    %v1863 = vld [vmem:[#allocation3 + $0x5b0] sm:$0xff]
    %v1864 = vld [vmem:[#allocation3 + $0x5b8] sm:$0xff]
    %v1865 = vld [vmem:[#allocation3 + $0x5c0] sm:$0xff]
    %v1866 = vld [vmem:[#allocation3 + $0x5c8] sm:$0xff]
    %v1867 = vld [vmem:[#allocation3 + $0x5d0] sm:$0xff]
    %v1868 = vld [vmem:[#allocation3 + $0x5d8] sm:$0xff]
    %v1869 = vld [vmem:[#allocation3 + $0x5e0] sm:$0xff]
    %v1870 = vld [vmem:[#allocation3 + $0x5e8] sm:$0xff]
    %v1871 = vld [vmem:[#allocation3 + $0x5f0] sm:$0xff]
    %v1872 = vld [vmem:[#allocation3 + $0x5f8] sm:$0xff]
    %v1873 = vld [vmem:[#allocation3 + $0x600] sm:$0xff]
    %v1874 = vld [vmem:[#allocation3 + $0x608] sm:$0xff]
    %v1875 = vld [vmem:[#allocation3 + $0x610] sm:$0xff]
    %v1876 = vld [vmem:[#allocation3 + $0x618] sm:$0xff]
    %v1877 = vld [vmem:[#allocation3 + $0x620] sm:$0xff]
    %v1878 = vld [vmem:[#allocation3 + $0x628] sm:$0xff]
    %v1879 = vld [vmem:[#allocation3 + $0x630] sm:$0xff]
    %v1880 = vld [vmem:[#allocation3 + $0x638] sm:$0xff]
    %v1881 = vld [vmem:[#allocation3 + $0x640] sm:$0xff]
    %v1882 = vld [vmem:[#allocation3 + $0x648] sm:$0xff]
    %v1883 = vld [vmem:[#allocation3 + $0x650] sm:$0xff]
    %v1884 = vld [vmem:[#allocation3 + $0x658] sm:$0xff]
    %v1885 = vld [vmem:[#allocation3 + $0x660] sm:$0xff]
    %v1886 = vld [vmem:[#allocation3 + $0x668] sm:$0xff]
    %v1887 = vld [vmem:[#allocation3 + $0x670] sm:$0xff]
    %v1888 = vld [vmem:[#allocation3 + $0x678] sm:$0xff]
    %v1889 = vld [vmem:[#allocation3 + $0x680] sm:$0xff]
    %v1890 = vld [vmem:[#allocation3 + $0x688] sm:$0xff]
    %v1891 = vld [vmem:[#allocation3 + $0x690] sm:$0xff]
    %v1892 = vld [vmem:[#allocation3 + $0x698] sm:$0xff]
    %v1893 = vld [vmem:[#allocation3 + $0x6a0] sm:$0xff]
    %v1894 = vld [vmem:[#allocation3 + $0x6a8] sm:$0xff]
    %v1895 = vld [vmem:[#allocation3 + $0x6b0] sm:$0xff]
    %v1896 = vld [vmem:[#allocation3 + $0x6b8] sm:$0xff]
    %v1897 = vld [vmem:[#allocation3 + $0x6c0] sm:$0xff]
    %v1898 = vld [vmem:[#allocation3 + $0x6c8] sm:$0xff]
    %v1899 = vld [vmem:[#allocation3 + $0x6d0] sm:$0xff]
    %v1900 = vld [vmem:[#allocation3 + $0x6d8] sm:$0xff]
    %v1901 = vld [vmem:[#allocation3 + $0x6e0] sm:$0xff]
    %v1902 = vld [vmem:[#allocation3 + $0x6e8] sm:$0xff]
    %v1903 = vld [vmem:[#allocation3 + $0x6f0] sm:$0xff]
    %v1904 = vld [vmem:[#allocation3 + $0x6f8] sm:$0xff]
    %v1905 = vld [vmem:[#allocation3 + $0x700] sm:$0xff]
    %v1906 = vld [vmem:[#allocation3 + $0x708] sm:$0xff]
    %v1907 = vld [vmem:[#allocation3 + $0x710] sm:$0xff]
    %v1908 = vld [vmem:[#allocation3 + $0x718] sm:$0xff]
    %v1909 = vld [vmem:[#allocation3 + $0x720] sm:$0xff]
    %v1910 = vld [vmem:[#allocation3 + $0x728] sm:$0xff]
    %v1911 = vld [vmem:[#allocation3 + $0x730] sm:$0xff]
    %v1912 = vld [vmem:[#allocation3 + $0x738] sm:$0xff]
    %v1913 = vld [vmem:[#allocation3 + $0x740] sm:$0xff]
    %v1914 = vld [vmem:[#allocation3 + $0x748] sm:$0xff]
    %v1915 = vld [vmem:[#allocation3 + $0x750] sm:$0xff]
    %v1916 = vld [vmem:[#allocation3 + $0x758] sm:$0xff]
    %v1917 = vld [vmem:[#allocation3 + $0x760] sm:$0xff]
    %v1918 = vld [vmem:[#allocation3 + $0x768] sm:$0xff]
    %v1919 = vld [vmem:[#allocation3 + $0x770] sm:$0xff]
    %v1920 = vld [vmem:[#allocation3 + $0x778] sm:$0xff]
    %v1921 = vld [vmem:[#allocation3 + $0x780] sm:$0xff]
    %v1922 = vld [vmem:[#allocation3 + $0x788] sm:$0xff]
    %v1923 = vld [vmem:[#allocation3 + $0x790] sm:$0xff]
    %v1924 = vld [vmem:[#allocation3 + $0x798] sm:$0xff]
    %v1925 = vld [vmem:[#allocation3 + $0x7a0] sm:$0xff]
    %v1926 = vld [vmem:[#allocation3 + $0x7a8] sm:$0xff]
    %v1927 = vld [vmem:[#allocation3 + $0x7b0] sm:$0xff]
    %v1928 = vld [vmem:[#allocation3 + $0x7b8] sm:$0xff]
    %v1929 = vld [vmem:[#allocation3 + $0x7c0] sm:$0xff]
    %v1930 = vld [vmem:[#allocation3 + $0x7c8] sm:$0xff]
    %v1931 = vld [vmem:[#allocation3 + $0x7d0] sm:$0xff]
    %v1932 = vld [vmem:[#allocation3 + $0x7d8] sm:$0xff]
    %v1933 = vld [vmem:[#allocation3 + $0x7e0] sm:$0xff]
    %v1934 = vld [vmem:[#allocation3 + $0x7e8] sm:$0xff]
    %v1935 = vld [vmem:[#allocation3 + $0x7f0] sm:$0xff]
    %v1936 = vld [vmem:[#allocation3 + $0x7f8] sm:$0xff]
    %v1937 = vpack.c.bf16 %v1649, %v1645
    %v1938 = vpack.c.bf16 %v1650, %v1646
    %v1939 = vpack.c.bf16 %v1651, %v1647
    %v1940 = vpack.c.bf16 %v1652, %v1648
    %v1941 = vpack.c.bf16 %v1657, %v1653
    %v1942 = vpack.c.bf16 %v1658, %v1654
    %v1943 = vpack.c.bf16 %v1659, %v1655
    %v1944 = vpack.c.bf16 %v1660, %v1656
    %v1945 = vpack.c.bf16 %v1665, %v1661
    %v1946 = vpack.c.bf16 %v1666, %v1662
    %v1947 = vpack.c.bf16 %v1667, %v1663
    %v1948 = vpack.c.bf16 %v1668, %v1664
    %v1949 = vpack.c.bf16 %v1673, %v1669
    %v1950 = vpack.c.bf16 %v1674, %v1670
    %v1951 = vpack.c.bf16 %v1675, %v1671
    %v1952 = vpack.c.bf16 %v1676, %v1672
    %s1953 = scalar_lea.vmem [#allocation9], 66
    %v1954 = vld [vmem:[%s1953] ss:$8 sm:$0xf]
    %v1955 = vld [vmem:[%s1953] ss:$8 sm:$0xf0]
    %v1956 = vor.u32 %v1954, %v1955
    %v1958 = vlaneseq
    %v1959 = vshrl.u32 %v1958, 7
    %v1960 = vsub.s32 0, %v1959
    %v1961 = vrot.slane %v1956, %v1960
    %v1962 = vlaneseq
    %v1963 = vshrl.u32 %v1962, 7
    %v1964 = vsub.s32 1, %v1963
    %v1965 = vrot.slane %v1956, %v1964
    %v1966 = vlaneseq
    %v1967 = vshrl.u32 %v1966, 7
    %v1968 = vsub.s32 2, %v1967
    %v1969 = vrot.slane %v1956, %v1968
    %v1970 = vlaneseq
    %v1971 = vshrl.u32 %v1970, 7
    %v1972 = vsub.s32 3, %v1971
    %v1973 = vrot.slane %v1956, %v1972
    %v1974 = vlaneseq
    %v1975 = vshrl.u32 %v1974, 7
    %v1976 = vsub.s32 4, %v1975
    %v1977 = vrot.slane %v1956, %v1976
    %v1978 = vlaneseq
    %v1979 = vshrl.u32 %v1978, 7
    %v1980 = vsub.s32 5, %v1979
    %v1981 = vrot.slane %v1956, %v1980
    %v1982 = vlaneseq
    %v1983 = vshrl.u32 %v1982, 7
    %v1984 = vsub.s32 6, %v1983
    %v1985 = vrot.slane %v1956, %v1984
    %v1986 = vlaneseq
    %v1987 = vshrl.u32 %v1986, 7
    %v1988 = vsub.s32 7, %v1987
    %v1989 = vrot.slane %v1956, %v1988
    %1998 = vmatprep.subr.bf16.mxu0 %v1682
    %1999 = vmatpush1.bf16.msra.mxu0 %v1681
    %2000 = vmatprep.subr.bf16.mxu0 %v1690
    %2001 = vmatpush1.bf16.msra.mxu0 %v1689
    %2002 = vmatprep.subr.bf16.mxu0 %v1698
    %2003 = vmatpush1.bf16.msra.mxu0 %v1697
    %2004 = vmatprep.subr.bf16.mxu0 %v1706
    %2005 = vmatpush1.bf16.msra.mxu0 %v1705
    %2006 = vmatprep.subr.bf16.mxu0 %v1714
    %2007 = vmatpush1.bf16.msra.mxu0 %v1713
    %2008 = vmatprep.subr.bf16.mxu0 %v1722
    %2009 = vmatpush1.bf16.msra.mxu0 %v1721
    %2010 = vmatprep.subr.bf16.mxu0 %v1730
    %2011 = vmatpush1.bf16.msra.mxu0 %v1729
    %2012 = vmatprep.subr.bf16.mxu0 %v1738
    %2013 = vmatpush1.bf16.msra.mxu0 %v1737
    %2014 = vmatprep.subr.bf16.mxu0 %v1746
    %2015 = vmatpush1.bf16.msra.mxu0 %v1745
    %2016 = vmatprep.subr.bf16.mxu0 %v1754
    %2017 = vmatpush1.bf16.msra.mxu0 %v1753
    %2018 = vmatprep.subr.bf16.mxu0 %v1762
    %2019 = vmatpush1.bf16.msra.mxu0 %v1761
    %2020 = vmatprep.subr.bf16.mxu0 %v1770
    %2021 = vmatpush1.bf16.msra.mxu0 %v1769
    %2022 = vmatprep.subr.bf16.mxu0 %v1778
    %2023 = vmatpush1.bf16.msra.mxu0 %v1777
    %2024 = vmatprep.subr.bf16.mxu0 %v1786
    %2025 = vmatpush1.bf16.msra.mxu0 %v1785
    %2026 = vmatprep.subr.bf16.mxu0 %v1794
    %2027 = vmatpush1.bf16.msra.mxu0 %v1793
    %2028 = vmatprep.subr.bf16.mxu0 %v1802
    %2029 = vmatpush1.bf16.msra.mxu0 %v1801
    %2030 = vmatprep.mubr.bf16.mxu0 %v1938
    %2031 = vmatmul.mubr.bf16.gmra.mrb[0].mxu0 %v1937
    %v2032 = vpop.f32.mrb[0].mxu0
    %v2033 = vadd.f32 %v1961, %v2032
    %v2034 = vpop.f32.mrb[0].mxu0
    %v2035 = vadd.f32 %v1965, %v2034
    %v2036 = vpop.f32.mrb[0].mxu0
    %v2037 = vadd.f32 %v1961, %v2036
    %v2038 = vpop.f32.mrb[0].mxu0
    %v2039 = vadd.f32 %v1965, %v2038
    %2040 = vmatprep.mubr.bf16.mxu0 %v1942
    %2041 = vmatmul.mubr.bf16.gmra.mrb[0].mxu0 %v1941
    %v2042 = vpop.f32.mrb[0].mxu0
    %v2043 = vadd.f32 %v1961, %v2042
    %v2044 = vpop.f32.mrb[0].mxu0
    %v2045 = vadd.f32 %v1965, %v2044
    %v2046 = vpop.f32.mrb[0].mxu0
    %v2047 = vadd.f32 %v1961, %v2046
    %v2048 = vpop.f32.mrb[0].mxu0
    %v2049 = vadd.f32 %v1965, %v2048
    %2050 = vmatprep.mubr.bf16.mxu0 %v1946
    %2051 = vmatmul.mubr.bf16.gmra.mrb[0].mxu0 %v1945
    %v2052 = vpop.f32.mrb[0].mxu0
    %v2053 = vadd.f32 %v1961, %v2052
    %v2054 = vpop.f32.mrb[0].mxu0
    %v2055 = vadd.f32 %v1965, %v2054
    %v2056 = vpop.f32.mrb[0].mxu0
    %v2057 = vadd.f32 %v1961, %v2056
    %v2058 = vpop.f32.mrb[0].mxu0
    %v2059 = vadd.f32 %v1965, %v2058
    %2060 = vmatprep.mubr.bf16.mxu0 %v1950
    %2061 = vmatmul.mubr.bf16.gmra.mrb[0].mxu0 %v1949
    %v2062 = vpop.f32.mrb[0].mxu0
    %v2063 = vadd.f32 %v1961, %v2062
    %v2064 = vpop.f32.mrb[0].mxu0
    %v2065 = vadd.f32 %v1965, %v2064
    %v2066 = vpop.f32.mrb[0].mxu0
    %v2067 = vadd.f32 %v1961, %v2066
    %v2068 = vpop.f32.mrb[0].mxu0
    %v2069 = vadd.f32 %v1965, %v2068
    %2070 = vdwg.mxu0
    %2071 = vmatprep.subr.bf16.mxu0 %v1810
    %2072 = vmatpush1.bf16.msra.mxu0 %v1809
    %2073 = vmatprep.subr.bf16.mxu0 %v1818
    %2074 = vmatpush1.bf16.msra.mxu0 %v1817
    %2075 = vmatprep.subr.bf16.mxu0 %v1826
    %2076 = vmatpush1.bf16.msra.mxu0 %v1825
    %2077 = vmatprep.subr.bf16.mxu0 %v1834
    %2078 = vmatpush1.bf16.msra.mxu0 %v1833
    %2079 = vmatprep.subr.bf16.mxu0 %v1842
    %2080 = vmatpush1.bf16.msra.mxu0 %v1841
    %2081 = vmatprep.subr.bf16.mxu0 %v1850
    %2082 = vmatpush1.bf16.msra.mxu0 %v1849
    %2083 = vmatprep.subr.bf16.mxu0 %v1858
    %2084 = vmatpush1.bf16.msra.mxu0 %v1857
    %2085 = vmatprep.subr.bf16.mxu0 %v1866
    %2086 = vmatpush1.bf16.msra.mxu0 %v1865
    %2087 = vmatprep.subr.bf16.mxu0 %v1874
    %2088 = vmatpush1.bf16.msra.mxu0 %v1873
    %2089 = vmatprep.subr.bf16.mxu0 %v1882
    %2090 = vmatpush1.bf16.msra.mxu0 %v1881
    %2091 = vmatprep.subr.bf16.mxu0 %v1890
    %2092 = vmatpush1.bf16.msra.mxu0 %v1889
    %2093 = vmatprep.subr.bf16.mxu0 %v1898
    %2094 = vmatpush1.bf16.msra.mxu0 %v1897
    %2095 = vmatprep.subr.bf16.mxu0 %v1906
    %2096 = vmatpush1.bf16.msra.mxu0 %v1905
    %2097 = vmatprep.subr.bf16.mxu0 %v1914
    %2098 = vmatpush1.bf16.msra.mxu0 %v1913
    %2099 = vmatprep.subr.bf16.mxu0 %v1922
    %2100 = vmatpush1.bf16.msra.mxu0 %v1921
    %2101 = vmatprep.subr.bf16.mxu0 %v1930
    %2102 = vmatpush1.bf16.msra.mxu0 %v1929
    %2103 = vmatprep.mubr.bf16.mxu0 %v1940
    %2104 = vmatmul.mubr.bf16.gmra.mrb[0].mxu0 %v1939
    %v2105 = vpop.f32.mrb[0].mxu0
    %v2106 = vadd.f32 %v2033, %v2105
    %v2107 = vpop.f32.mrb[0].mxu0
    %v2108 = vadd.f32 %v2035, %v2107
    %v2109 = vpop.f32.mrb[0].mxu0
    %v2110 = vadd.f32 %v2037, %v2109
    %v2111 = vpop.f32.mrb[0].mxu0
    %v2112 = vadd.f32 %v2039, %v2111
    %2113 = vmatprep.mubr.bf16.mxu0 %v1944
    %2114 = vmatmul.mubr.bf16.gmra.mrb[0].mxu0 %v1943
    %v2115 = vpop.f32.mrb[0].mxu0
    %v2116 = vadd.f32 %v2043, %v2115
    %v2117 = vpop.f32.mrb[0].mxu0
    %v2118 = vadd.f32 %v2045, %v2117
    %v2119 = vpop.f32.mrb[0].mxu0
    %v2120 = vadd.f32 %v2047, %v2119
    %v2121 = vpop.f32.mrb[0].mxu0
    %v2122 = vadd.f32 %v2049, %v2121
    %2123 = vmatprep.mubr.bf16.mxu0 %v1948
    %2124 = vmatmul.mubr.bf16.gmra.mrb[0].mxu0 %v1947
    %v2125 = vpop.f32.mrb[0].mxu0
    %v2126 = vadd.f32 %v2053, %v2125
    %v2127 = vpop.f32.mrb[0].mxu0
    %v2128 = vadd.f32 %v2055, %v2127
    %v2129 = vpop.f32.mrb[0].mxu0
    %v2130 = vadd.f32 %v2057, %v2129
    %v2131 = vpop.f32.mrb[0].mxu0
    %v2132 = vadd.f32 %v2059, %v2131
    %2133 = vmatprep.mubr.bf16.mxu0 %v1952
    %2134 = vmatmul.mubr.bf16.gmra.mrb[0].mxu0 %v1951
    %v2135 = vpop.f32.mrb[0].mxu0
    %v2136 = vadd.f32 %v2063, %v2135
    %v2137 = vpop.f32.mrb[0].mxu0
    %v2138 = vadd.f32 %v2065, %v2137
    %v2139 = vpop.f32.mrb[0].mxu0
    %v2140 = vadd.f32 %v2067, %v2139
    %v2141 = vpop.f32.mrb[0].mxu0
    %v2142 = vadd.f32 %v2069, %v2141
    %2143 = vdwg.mxu0
    %2144 = vmatprep.subr.bf16.mxu0 %v1684
    %2145 = vmatpush1.bf16.msra.mxu0 %v1683
    %2146 = vmatprep.subr.bf16.mxu0 %v1692
    %2147 = vmatpush1.bf16.msra.mxu0 %v1691
    %2148 = vmatprep.subr.bf16.mxu0 %v1700
    %2149 = vmatpush1.bf16.msra.mxu0 %v1699
    %2150 = vmatprep.subr.bf16.mxu0 %v1708
    %2151 = vmatpush1.bf16.msra.mxu0 %v1707
    %2152 = vmatprep.subr.bf16.mxu0 %v1716
    %2153 = vmatpush1.bf16.msra.mxu0 %v1715
    %2154 = vmatprep.subr.bf16.mxu0 %v1724
    %2155 = vmatpush1.bf16.msra.mxu0 %v1723
    %2156 = vmatprep.subr.bf16.mxu0 %v1732
    %2157 = vmatpush1.bf16.msra.mxu0 %v1731
    %2158 = vmatprep.subr.bf16.mxu0 %v1740
    %2159 = vmatpush1.bf16.msra.mxu0 %v1739
    %2160 = vmatprep.subr.bf16.mxu0 %v1748
    %2161 = vmatpush1.bf16.msra.mxu0 %v1747
    %2162 = vmatprep.subr.bf16.mxu0 %v1756
    %2163 = vmatpush1.bf16.msra.mxu0 %v1755
    %2164 = vmatprep.subr.bf16.mxu0 %v1764
    %2165 = vmatpush1.bf16.msra.mxu0 %v1763
    %2166 = vmatprep.subr.bf16.mxu0 %v1772
    %2167 = vmatpush1.bf16.msra.mxu0 %v1771
    %2168 = vmatprep.subr.bf16.mxu0 %v1780
    %2169 = vmatpush1.bf16.msra.mxu0 %v1779
    %2170 = vmatprep.subr.bf16.mxu0 %v1788
    %2171 = vmatpush1.bf16.msra.mxu0 %v1787
    %2172 = vmatprep.subr.bf16.mxu0 %v1796
    %2173 = vmatpush1.bf16.msra.mxu0 %v1795
    %2174 = vmatprep.subr.bf16.mxu0 %v1804
    %2175 = vmatpush1.bf16.msra.mxu0 %v1803
    %2176 = vmatprep.mubr.bf16.mxu0 %v1938
    %2177 = vmatmul.mubr.bf16.gmra.mrb[0].mxu0 %v1937
    %v2178 = vpop.f32.mrb[0].mxu0
    %v2179 = vadd.f32 %v1969, %v2178
    %v2180 = vpop.f32.mrb[0].mxu0
    %v2181 = vadd.f32 %v1973, %v2180
    %v2182 = vpop.f32.mrb[0].mxu0
    %v2183 = vadd.f32 %v1969, %v2182
    %v2184 = vpop.f32.mrb[0].mxu0
    %v2185 = vadd.f32 %v1973, %v2184
    %2186 = vmatprep.mubr.bf16.mxu0 %v1942
    %2187 = vmatmul.mubr.bf16.gmra.mrb[0].mxu0 %v1941
    %v2188 = vpop.f32.mrb[0].mxu0
    %v2189 = vadd.f32 %v1969, %v2188
    %v2190 = vpop.f32.mrb[0].mxu0
    %v2191 = vadd.f32 %v1973, %v2190
    %v2192 = vpop.f32.mrb[0].mxu0
    %v2193 = vadd.f32 %v1969, %v2192
    %v2194 = vpop.f32.mrb[0].mxu0
    %v2195 = vadd.f32 %v1973, %v2194
    %2196 = vmatprep.mubr.bf16.mxu0 %v1946
    %2197 = vmatmul.mubr.bf16.gmra.mrb[0].mxu0 %v1945
    %v2198 = vpop.f32.mrb[0].mxu0
    %v2199 = vadd.f32 %v1969, %v2198
    %v2200 = vpop.f32.mrb[0].mxu0
    %v2201 = vadd.f32 %v1973, %v2200
    %v2202 = vpop.f32.mrb[0].mxu0
    %v2203 = vadd.f32 %v1969, %v2202
    %v2204 = vpop.f32.mrb[0].mxu0
    %v2205 = vadd.f32 %v1973, %v2204
    %2206 = vmatprep.mubr.bf16.mxu0 %v1950
    %2207 = vmatmul.mubr.bf16.gmra.mrb[0].mxu0 %v1949
    %v2208 = vpop.f32.mrb[0].mxu0
    %v2209 = vadd.f32 %v1969, %v2208
    %v2210 = vpop.f32.mrb[0].mxu0
    %v2211 = vadd.f32 %v1973, %v2210
    %v2212 = vpop.f32.mrb[0].mxu0
    %v2213 = vadd.f32 %v1969, %v2212
    %v2214 = vpop.f32.mrb[0].mxu0
    %v2215 = vadd.f32 %v1973, %v2214
    %2216 = vdwg.mxu0
    %2217 = vmatprep.subr.bf16.mxu0 %v1812
    %2218 = vmatpush1.bf16.msra.mxu0 %v1811
    %2219 = vmatprep.subr.bf16.mxu0 %v1820
    %2220 = vmatpush1.bf16.msra.mxu0 %v1819
    %2221 = vmatprep.subr.bf16.mxu0 %v1828
    %2222 = vmatpush1.bf16.msra.mxu0 %v1827
    %2223 = vmatprep.subr.bf16.mxu0 %v1836
    %2224 = vmatpush1.bf16.msra.mxu0 %v1835
    %2225 = vmatprep.subr.bf16.mxu0 %v1844
    %2226 = vmatpush1.bf16.msra.mxu0 %v1843
    %2227 = vmatprep.subr.bf16.mxu0 %v1852
    %2228 = vmatpush1.bf16.msra.mxu0 %v1851
    %2229 = vmatprep.subr.bf16.mxu0 %v1860
    %2230 = vmatpush1.bf16.msra.mxu0 %v1859
    %2231 = vmatprep.subr.bf16.mxu0 %v1868
    %2232 = vmatpush1.bf16.msra.mxu0 %v1867
    %2233 = vmatprep.subr.bf16.mxu0 %v1876
    %2234 = vmatpush1.bf16.msra.mxu0 %v1875
    %2235 = vmatprep.subr.bf16.mxu0 %v1884
    %2236 = vmatpush1.bf16.msra.mxu0 %v1883
    %2237 = vmatprep.subr.bf16.mxu0 %v1892
    %2238 = vmatpush1.bf16.msra.mxu0 %v1891
    %2239 = vmatprep.subr.bf16.mxu0 %v1900
    %2240 = vmatpush1.bf16.msra.mxu0 %v1899
    %2241 = vmatprep.subr.bf16.mxu0 %v1908
    %2242 = vmatpush1.bf16.msra.mxu0 %v1907
    %2243 = vmatprep.subr.bf16.mxu0 %v1916
    %2244 = vmatpush1.bf16.msra.mxu0 %v1915
    %2245 = vmatprep.subr.bf16.mxu0 %v1924
    %2246 = vmatpush1.bf16.msra.mxu0 %v1923
    %2247 = vmatprep.subr.bf16.mxu0 %v1932
    %2248 = vmatpush1.bf16.msra.mxu0 %v1931
    %2249 = vmatprep.mubr.bf16.mxu0 %v1940
    %2250 = vmatmul.mubr.bf16.gmra.mrb[0].mxu0 %v1939
    %v2251 = vpop.f32.mrb[0].mxu0
    %v2252 = vadd.f32 %v2179, %v2251
    %v2253 = vpop.f32.mrb[0].mxu0
    %v2254 = vadd.f32 %v2181, %v2253
    %v2255 = vpop.f32.mrb[0].mxu0
    %v2256 = vadd.f32 %v2183, %v2255
    %v2257 = vpop.f32.mrb[0].mxu0
    %v2258 = vadd.f32 %v2185, %v2257
    %2259 = vmatprep.mubr.bf16.mxu0 %v1944
    %2260 = vmatmul.mubr.bf16.gmra.mrb[0].mxu0 %v1943
    %v2261 = vpop.f32.mrb[0].mxu0
    %v2262 = vadd.f32 %v2189, %v2261
    %v2263 = vpop.f32.mrb[0].mxu0
    %v2264 = vadd.f32 %v2191, %v2263
    %v2265 = vpop.f32.mrb[0].mxu0
    %v2266 = vadd.f32 %v2193, %v2265
    %v2267 = vpop.f32.mrb[0].mxu0
    %v2268 = vadd.f32 %v2195, %v2267
    %2269 = vmatprep.mubr.bf16.mxu0 %v1948
    %2270 = vmatmul.mubr.bf16.gmra.mrb[0].mxu0 %v1947
    %v2271 = vpop.f32.mrb[0].mxu0
    %v2272 = vadd.f32 %v2199, %v2271
    %v2273 = vpop.f32.mrb[0].mxu0
    %v2274 = vadd.f32 %v2201, %v2273
    %v2275 = vpop.f32.mrb[0].mxu0
    %v2276 = vadd.f32 %v2203, %v2275
    %v2277 = vpop.f32.mrb[0].mxu0
    %v2278 = vadd.f32 %v2205, %v2277
    %2279 = vmatprep.mubr.bf16.mxu0 %v1952
    %2280 = vmatmul.mubr.bf16.gmra.mrb[0].mxu0 %v1951
    %v2281 = vpop.f32.mrb[0].mxu0
    %v2282 = vadd.f32 %v2209, %v2281
    %v2283 = vpop.f32.mrb[0].mxu0
    %v2284 = vadd.f32 %v2211, %v2283
    %v2285 = vpop.f32.mrb[0].mxu0
    %v2286 = vadd.f32 %v2213, %v2285
    %v2287 = vpop.f32.mrb[0].mxu0
    %v2288 = vadd.f32 %v2215, %v2287
    %2289 = vdwg.mxu0
    %2290 = vmatprep.subr.bf16.mxu0 %v1686
    %2291 = vmatpush1.bf16.msra.mxu0 %v1685
    %2292 = vmatprep.subr.bf16.mxu0 %v1694
    %2293 = vmatpush1.bf16.msra.mxu0 %v1693
    %2294 = vmatprep.subr.bf16.mxu0 %v1702
    %2295 = vmatpush1.bf16.msra.mxu0 %v1701
    %2296 = vmatprep.subr.bf16.mxu0 %v1710
    %2297 = vmatpush1.bf16.msra.mxu0 %v1709
    %2298 = vmatprep.subr.bf16.mxu0 %v1718
    %2299 = vmatpush1.bf16.msra.mxu0 %v1717
    %2300 = vmatprep.subr.bf16.mxu0 %v1726
    %2301 = vmatpush1.bf16.msra.mxu0 %v1725
    %2302 = vmatprep.subr.bf16.mxu0 %v1734
    %2303 = vmatpush1.bf16.msra.mxu0 %v1733
    %2304 = vmatprep.subr.bf16.mxu0 %v1742
    %2305 = vmatpush1.bf16.msra.mxu0 %v1741
    %2306 = vmatprep.subr.bf16.mxu0 %v1750
    %2307 = vmatpush1.bf16.msra.mxu0 %v1749
    %2308 = vmatprep.subr.bf16.mxu0 %v1758
    %2309 = vmatpush1.bf16.msra.mxu0 %v1757
    %2310 = vmatprep.subr.bf16.mxu0 %v1766
    %2311 = vmatpush1.bf16.msra.mxu0 %v1765
    %2312 = vmatprep.subr.bf16.mxu0 %v1774
    %2313 = vmatpush1.bf16.msra.mxu0 %v1773
    %2314 = vmatprep.subr.bf16.mxu0 %v1782
    %2315 = vmatpush1.bf16.msra.mxu0 %v1781
    %2316 = vmatprep.subr.bf16.mxu0 %v1790
    %2317 = vmatpush1.bf16.msra.mxu0 %v1789
    %2318 = vmatprep.subr.bf16.mxu0 %v1798
    %2319 = vmatpush1.bf16.msra.mxu0 %v1797
    %2320 = vmatprep.subr.bf16.mxu0 %v1806
    %2321 = vmatpush1.bf16.msra.mxu0 %v1805
    %2322 = vmatprep.mubr.bf16.mxu0 %v1938
    %2323 = vmatmul.mubr.bf16.gmra.mrb[0].mxu0 %v1937
    %v2324 = vpop.f32.mrb[0].mxu0
    %v2325 = vadd.f32 %v1977, %v2324
    %v2326 = vpop.f32.mrb[0].mxu0
    %v2327 = vadd.f32 %v1981, %v2326
    %v2328 = vpop.f32.mrb[0].mxu0
    %v2329 = vadd.f32 %v1977, %v2328
    %v2330 = vpop.f32.mrb[0].mxu0
    %v2331 = vadd.f32 %v1981, %v2330
    %2332 = vmatprep.mubr.bf16.mxu0 %v1942
    %2333 = vmatmul.mubr.bf16.gmra.mrb[0].mxu0 %v1941
    %v2334 = vpop.f32.mrb[0].mxu0
    %v2335 = vadd.f32 %v1977, %v2334
    %v2336 = vpop.f32.mrb[0].mxu0
    %v2337 = vadd.f32 %v1981, %v2336
    %v2338 = vpop.f32.mrb[0].mxu0
    %v2339 = vadd.f32 %v1977, %v2338
    %v2340 = vpop.f32.mrb[0].mxu0
    %v2341 = vadd.f32 %v1981, %v2340
    %2342 = vmatprep.mubr.bf16.mxu0 %v1946
    %2343 = vmatmul.mubr.bf16.gmra.mrb[0].mxu0 %v1945
    %v2344 = vpop.f32.mrb[0].mxu0
    %v2345 = vadd.f32 %v1977, %v2344
    %v2346 = vpop.f32.mrb[0].mxu0
    %v2347 = vadd.f32 %v1981, %v2346
    %v2348 = vpop.f32.mrb[0].mxu0
    %v2349 = vadd.f32 %v1977, %v2348
    %v2350 = vpop.f32.mrb[0].mxu0
    %v2351 = vadd.f32 %v1981, %v2350
    %2352 = vmatprep.mubr.bf16.mxu0 %v1950
    %2353 = vmatmul.mubr.bf16.gmra.mrb[0].mxu0 %v1949
    %v2354 = vpop.f32.mrb[0].mxu0
    %v2355 = vadd.f32 %v1977, %v2354
    %v2356 = vpop.f32.mrb[0].mxu0
    %v2357 = vadd.f32 %v1981, %v2356
    %v2358 = vpop.f32.mrb[0].mxu0
    %v2359 = vadd.f32 %v1977, %v2358
    %v2360 = vpop.f32.mrb[0].mxu0
    %v2361 = vadd.f32 %v1981, %v2360
    %2362 = vdwg.mxu0
    %2363 = vmatprep.subr.bf16.mxu0 %v1814
    %2364 = vmatpush1.bf16.msra.mxu0 %v1813
    %2365 = vmatprep.subr.bf16.mxu0 %v1822
    %2366 = vmatpush1.bf16.msra.mxu0 %v1821
    %2367 = vmatprep.subr.bf16.mxu0 %v1830
    %2368 = vmatpush1.bf16.msra.mxu0 %v1829
    %2369 = vmatprep.subr.bf16.mxu0 %v1838
    %2370 = vmatpush1.bf16.msra.mxu0 %v1837
    %2371 = vmatprep.subr.bf16.mxu0 %v1846
    %2372 = vmatpush1.bf16.msra.mxu0 %v1845
    %2373 = vmatprep.subr.bf16.mxu0 %v1854
    %2374 = vmatpush1.bf16.msra.mxu0 %v1853
    %2375 = vmatprep.subr.bf16.mxu0 %v1862
    %2376 = vmatpush1.bf16.msra.mxu0 %v1861
    %2377 = vmatprep.subr.bf16.mxu0 %v1870
    %2378 = vmatpush1.bf16.msra.mxu0 %v1869
    %2379 = vmatprep.subr.bf16.mxu0 %v1878
    %2380 = vmatpush1.bf16.msra.mxu0 %v1877
    %2381 = vmatprep.subr.bf16.mxu0 %v1886
    %2382 = vmatpush1.bf16.msra.mxu0 %v1885
    %2383 = vmatprep.subr.bf16.mxu0 %v1894
    %2384 = vmatpush1.bf16.msra.mxu0 %v1893
    %2385 = vmatprep.subr.bf16.mxu0 %v1902
    %2386 = vmatpush1.bf16.msra.mxu0 %v1901
    %2387 = vmatprep.subr.bf16.mxu0 %v1910
    %2388 = vmatpush1.bf16.msra.mxu0 %v1909
    %2389 = vmatprep.subr.bf16.mxu0 %v1918
    %2390 = vmatpush1.bf16.msra.mxu0 %v1917
    %2391 = vmatprep.subr.bf16.mxu0 %v1926
    %2392 = vmatpush1.bf16.msra.mxu0 %v1925
    %2393 = vmatprep.subr.bf16.mxu0 %v1934
    %2394 = vmatpush1.bf16.msra.mxu0 %v1933
    %2395 = vmatprep.mubr.bf16.mxu0 %v1940
    %2396 = vmatmul.mubr.bf16.gmra.mrb[0].mxu0 %v1939
    %v2397 = vpop.f32.mrb[0].mxu0
    %v2398 = vadd.f32 %v2325, %v2397
    %v2399 = vpop.f32.mrb[0].mxu0
    %v2400 = vadd.f32 %v2327, %v2399
    %v2401 = vpop.f32.mrb[0].mxu0
    %v2402 = vadd.f32 %v2329, %v2401
    %v2403 = vpop.f32.mrb[0].mxu0
    %v2404 = vadd.f32 %v2331, %v2403
    %2405 = vmatprep.mubr.bf16.mxu0 %v1944
    %2406 = vmatmul.mubr.bf16.gmra.mrb[0].mxu0 %v1943
    %v2407 = vpop.f32.mrb[0].mxu0
    %v2408 = vadd.f32 %v2335, %v2407
    %v2409 = vpop.f32.mrb[0].mxu0
    %v2410 = vadd.f32 %v2337, %v2409
    %v2411 = vpop.f32.mrb[0].mxu0
    %v2412 = vadd.f32 %v2339, %v2411
    %v2413 = vpop.f32.mrb[0].mxu0
    %v2414 = vadd.f32 %v2341, %v2413
    %2415 = vmatprep.mubr.bf16.mxu0 %v1948
    %2416 = vmatmul.mubr.bf16.gmra.mrb[0].mxu0 %v1947
    %v2417 = vpop.f32.mrb[0].mxu0
    %v2418 = vadd.f32 %v2345, %v2417
    %v2419 = vpop.f32.mrb[0].mxu0
    %v2420 = vadd.f32 %v2347, %v2419
    %v2421 = vpop.f32.mrb[0].mxu0
    %v2422 = vadd.f32 %v2349, %v2421
    %v2423 = vpop.f32.mrb[0].mxu0
    %v2424 = vadd.f32 %v2351, %v2423
    %2425 = vmatprep.mubr.bf16.mxu0 %v1952
    %2426 = vmatmul.mubr.bf16.gmra.mrb[0].mxu0 %v1951
    %v2427 = vpop.f32.mrb[0].mxu0
    %v2428 = vadd.f32 %v2355, %v2427
    %v2429 = vpop.f32.mrb[0].mxu0
    %v2430 = vadd.f32 %v2357, %v2429
    %v2431 = vpop.f32.mrb[0].mxu0
    %v2432 = vadd.f32 %v2359, %v2431
    %v2433 = vpop.f32.mrb[0].mxu0
    %v2434 = vadd.f32 %v2361, %v2433
    %2435 = vdwg.mxu0
    %2436 = vmatprep.subr.bf16.mxu0 %v1688
    %2437 = vmatpush1.bf16.msra.mxu0 %v1687
    %2438 = vmatprep.subr.bf16.mxu0 %v1696
    %2439 = vmatpush1.bf16.msra.mxu0 %v1695
    %2440 = vmatprep.subr.bf16.mxu0 %v1704
    %2441 = vmatpush1.bf16.msra.mxu0 %v1703
    %2442 = vmatprep.subr.bf16.mxu0 %v1712
    %2443 = vmatpush1.bf16.msra.mxu0 %v1711
    %2444 = vmatprep.subr.bf16.mxu0 %v1720
    %2445 = vmatpush1.bf16.msra.mxu0 %v1719
    %2446 = vmatprep.subr.bf16.mxu0 %v1728
    %2447 = vmatpush1.bf16.msra.mxu0 %v1727
    %2448 = vmatprep.subr.bf16.mxu0 %v1736
    %2449 = vmatpush1.bf16.msra.mxu0 %v1735
    %2450 = vmatprep.subr.bf16.mxu0 %v1744
    %2451 = vmatpush1.bf16.msra.mxu0 %v1743
    %2452 = vmatprep.subr.bf16.mxu0 %v1752
    %2453 = vmatpush1.bf16.msra.mxu0 %v1751
    %2454 = vmatprep.subr.bf16.mxu0 %v1760
    %2455 = vmatpush1.bf16.msra.mxu0 %v1759
    %2456 = vmatprep.subr.bf16.mxu0 %v1768
    %2457 = vmatpush1.bf16.msra.mxu0 %v1767
    %2458 = vmatprep.subr.bf16.mxu0 %v1776
    %2459 = vmatpush1.bf16.msra.mxu0 %v1775
    %2460 = vmatprep.subr.bf16.mxu0 %v1784
    %2461 = vmatpush1.bf16.msra.mxu0 %v1783
    %2462 = vmatprep.subr.bf16.mxu0 %v1792
    %2463 = vmatpush1.bf16.msra.mxu0 %v1791
    %2464 = vmatprep.subr.bf16.mxu0 %v1800
    %2465 = vmatpush1.bf16.msra.mxu0 %v1799
    %2466 = vmatprep.subr.bf16.mxu0 %v1808
    %2467 = vmatpush1.bf16.msra.mxu0 %v1807
    %2468 = vmatprep.mubr.bf16.mxu0 %v1938
    %2469 = vmatmul.mubr.bf16.gmra.mrb[0].mxu0 %v1937
    %v2470 = vpop.f32.mrb[0].mxu0
    %v2471 = vadd.f32 %v1985, %v2470
    %v2472 = vpop.f32.mrb[0].mxu0
    %v2473 = vadd.f32 %v1989, %v2472
    %v2474 = vpop.f32.mrb[0].mxu0
    %v2475 = vadd.f32 %v1985, %v2474
    %v2476 = vpop.f32.mrb[0].mxu0
    %v2477 = vadd.f32 %v1989, %v2476
    %2478 = vmatprep.mubr.bf16.mxu0 %v1942
    %2479 = vmatmul.mubr.bf16.gmra.mrb[0].mxu0 %v1941
    %v2480 = vpop.f32.mrb[0].mxu0
    %v2481 = vadd.f32 %v1985, %v2480
    %v2482 = vpop.f32.mrb[0].mxu0
    %v2483 = vadd.f32 %v1989, %v2482
    %v2484 = vpop.f32.mrb[0].mxu0
    %v2485 = vadd.f32 %v1985, %v2484
    %v2486 = vpop.f32.mrb[0].mxu0
    %v2487 = vadd.f32 %v1989, %v2486
    %2488 = vmatprep.mubr.bf16.mxu0 %v1946
    %2489 = vmatmul.mubr.bf16.gmra.mrb[0].mxu0 %v1945
    %v2490 = vpop.f32.mrb[0].mxu0
    %v2491 = vadd.f32 %v1985, %v2490
    %v2492 = vpop.f32.mrb[0].mxu0
    %v2493 = vadd.f32 %v1989, %v2492
    %v2494 = vpop.f32.mrb[0].mxu0
    %v2495 = vadd.f32 %v1985, %v2494
    %v2496 = vpop.f32.mrb[0].mxu0
    %v2497 = vadd.f32 %v1989, %v2496
    %2498 = vmatprep.mubr.bf16.mxu0 %v1950
    %2499 = vmatmul.mubr.bf16.gmra.mrb[0].mxu0 %v1949
    %v2500 = vpop.f32.mrb[0].mxu0
    %v2501 = vadd.f32 %v1985, %v2500
    %v2502 = vpop.f32.mrb[0].mxu0
    %v2503 = vadd.f32 %v1989, %v2502
    %v2504 = vpop.f32.mrb[0].mxu0
    %v2505 = vadd.f32 %v1985, %v2504
    %v2506 = vpop.f32.mrb[0].mxu0
    %v2507 = vadd.f32 %v1989, %v2506
    %2508 = vdwg.mxu0
    %2509 = vmatprep.subr.bf16.mxu0 %v1816
    %2510 = vmatpush1.bf16.msra.mxu0 %v1815
    %2511 = vmatprep.subr.bf16.mxu0 %v1824
    %2512 = vmatpush1.bf16.msra.mxu0 %v1823
    %2513 = vmatprep.subr.bf16.mxu0 %v1832
    %2514 = vmatpush1.bf16.msra.mxu0 %v1831
    %2515 = vmatprep.subr.bf16.mxu0 %v1840
    %2516 = vmatpush1.bf16.msra.mxu0 %v1839
    %2517 = vmatprep.subr.bf16.mxu0 %v1848
    %2518 = vmatpush1.bf16.msra.mxu0 %v1847
    %2519 = vmatprep.subr.bf16.mxu0 %v1856
    %2520 = vmatpush1.bf16.msra.mxu0 %v1855
    %2521 = vmatprep.subr.bf16.mxu0 %v1864
    %2522 = vmatpush1.bf16.msra.mxu0 %v1863
    %2523 = vmatprep.subr.bf16.mxu0 %v1872
    %2524 = vmatpush1.bf16.msra.mxu0 %v1871
    %2525 = vmatprep.subr.bf16.mxu0 %v1880
    %2526 = vmatpush1.bf16.msra.mxu0 %v1879
    %2527 = vmatprep.subr.bf16.mxu0 %v1888
    %2528 = vmatpush1.bf16.msra.mxu0 %v1887
    %2529 = vmatprep.subr.bf16.mxu0 %v1896
    %2530 = vmatpush1.bf16.msra.mxu0 %v1895
    %2531 = vmatprep.subr.bf16.mxu0 %v1904
    %2532 = vmatpush1.bf16.msra.mxu0 %v1903
    %2533 = vmatprep.subr.bf16.mxu0 %v1912
    %2534 = vmatpush1.bf16.msra.mxu0 %v1911
    %2535 = vmatprep.subr.bf16.mxu0 %v1920
    %2536 = vmatpush1.bf16.msra.mxu0 %v1919
    %2537 = vmatprep.subr.bf16.mxu0 %v1928
    %2538 = vmatpush1.bf16.msra.mxu0 %v1927
    %2539 = vmatprep.subr.bf16.mxu0 %v1936
    %2540 = vmatpush1.bf16.msra.mxu0 %v1935
    %2541 = vmatprep.mubr.bf16.mxu0 %v1940
    %2542 = vmatmul.mubr.bf16.gmra.mrb[0].mxu0 %v1939
    %v2543 = vpop.f32.mrb[0].mxu0
    %v2544 = vadd.f32 %v2471, %v2543
    %v2545 = vpop.f32.mrb[0].mxu0
    %v2546 = vadd.f32 %v2473, %v2545
    %v2547 = vpop.f32.mrb[0].mxu0
    %v2548 = vadd.f32 %v2475, %v2547
    %v2549 = vpop.f32.mrb[0].mxu0
    %v2550 = vadd.f32 %v2477, %v2549
    %2551 = vmatprep.mubr.bf16.mxu0 %v1944
    %2552 = vmatmul.mubr.bf16.gmra.mrb[0].mxu0 %v1943
    %v2553 = vpop.f32.mrb[0].mxu0
    %v2554 = vadd.f32 %v2481, %v2553
    %v2555 = vpop.f32.mrb[0].mxu0
    %v2556 = vadd.f32 %v2483, %v2555
    %v2557 = vpop.f32.mrb[0].mxu0
    %v2558 = vadd.f32 %v2485, %v2557
    %v2559 = vpop.f32.mrb[0].mxu0
    %v2560 = vadd.f32 %v2487, %v2559
    %2561 = vmatprep.mubr.bf16.mxu0 %v1948
    %2562 = vmatmul.mubr.bf16.gmra.mrb[0].mxu0 %v1947
    %v2563 = vpop.f32.mrb[0].mxu0
    %v2564 = vadd.f32 %v2491, %v2563
    %v2565 = vpop.f32.mrb[0].mxu0
    %v2566 = vadd.f32 %v2493, %v2565
    %v2567 = vpop.f32.mrb[0].mxu0
    %v2568 = vadd.f32 %v2495, %v2567
    %v2569 = vpop.f32.mrb[0].mxu0
    %v2570 = vadd.f32 %v2497, %v2569
    %2571 = vmatprep.mubr.bf16.mxu0 %v1952
    %2572 = vmatmul.mubr.bf16.gmra.mrb[0].mxu0 %v1951
    %v2573 = vpop.f32.mrb[0].mxu0
    %v2574 = vadd.f32 %v2501, %v2573
    %v2575 = vpop.f32.mrb[0].mxu0
    %v2576 = vadd.f32 %v2503, %v2575
    %v2577 = vpop.f32.mrb[0].mxu0
    %v2578 = vadd.f32 %v2505, %v2577
    %v2579 = vpop.f32.mrb[0].mxu0
    %v2580 = vadd.f32 %v2507, %v2579
    %2581 = vdwg.mxu0
    %s2582 = smul.u32 4, 128
    %s2583 = smul.u32 %s2582, 1
    %s2584 = sshll.u32 %s2583, 4
    %2585 = dma.done %s120, %s2584
    %v2586 = vld [vmem:[#allocation4] sm:$0xff]
    %v2587 = vld [vmem:[#allocation4 + $0x8] sm:$0xff]
    %v2588 = vld [vmem:[#allocation4 + $0x10] sm:$0xff]
    %v2589 = vld [vmem:[#allocation4 + $0x18] sm:$0xff]
    %v2590 = vld [vmem:[#allocation4 + $0x20] sm:$0xff]
    %v2591 = vld [vmem:[#allocation4 + $0x28] sm:$0xff]
    %v2592 = vld [vmem:[#allocation4 + $0x30] sm:$0xff]
    %v2593 = vld [vmem:[#allocation4 + $0x38] sm:$0xff]
    %v2594 = vld [vmem:[#allocation4 + $0x40] sm:$0xff]
    %v2595 = vld [vmem:[#allocation4 + $0x48] sm:$0xff]
    %v2596 = vld [vmem:[#allocation4 + $0x50] sm:$0xff]
    %v2597 = vld [vmem:[#allocation4 + $0x58] sm:$0xff]
    %v2598 = vld [vmem:[#allocation4 + $0x60] sm:$0xff]
    %v2599 = vld [vmem:[#allocation4 + $0x68] sm:$0xff]
    %v2600 = vld [vmem:[#allocation4 + $0x70] sm:$0xff]
    %v2601 = vld [vmem:[#allocation4 + $0x78] sm:$0xff]
    %v2602 = vld [vmem:[#allocation4 + $0x80] sm:$0xff]
    %v2603 = vld [vmem:[#allocation4 + $0x88] sm:$0xff]
    %v2604 = vld [vmem:[#allocation4 + $0x90] sm:$0xff]
    %v2605 = vld [vmem:[#allocation4 + $0x98] sm:$0xff]
    %v2606 = vld [vmem:[#allocation4 + $0xa0] sm:$0xff]
    %v2607 = vld [vmem:[#allocation4 + $0xa8] sm:$0xff]
    %v2608 = vld [vmem:[#allocation4 + $0xb0] sm:$0xff]
    %v2609 = vld [vmem:[#allocation4 + $0xb8] sm:$0xff]
    %v2610 = vld [vmem:[#allocation4 + $0xc0] sm:$0xff]
    %v2611 = vld [vmem:[#allocation4 + $0xc8] sm:$0xff]
    %v2612 = vld [vmem:[#allocation4 + $0xd0] sm:$0xff]
    %v2613 = vld [vmem:[#allocation4 + $0xd8] sm:$0xff]
    %v2614 = vld [vmem:[#allocation4 + $0xe0] sm:$0xff]
    %v2615 = vld [vmem:[#allocation4 + $0xe8] sm:$0xff]
    %v2616 = vld [vmem:[#allocation4 + $0xf0] sm:$0xff]
    %v2617 = vld [vmem:[#allocation4 + $0xf8] sm:$0xff]
    %v2618 = vld [vmem:[#allocation4 + $0x100] sm:$0xff]
    %v2619 = vld [vmem:[#allocation4 + $0x108] sm:$0xff]
    %v2620 = vld [vmem:[#allocation4 + $0x110] sm:$0xff]
    %v2621 = vld [vmem:[#allocation4 + $0x118] sm:$0xff]
    %v2622 = vld [vmem:[#allocation4 + $0x120] sm:$0xff]
    %v2623 = vld [vmem:[#allocation4 + $0x128] sm:$0xff]
    %v2624 = vld [vmem:[#allocation4 + $0x130] sm:$0xff]
    %v2625 = vld [vmem:[#allocation4 + $0x138] sm:$0xff]
    %v2626 = vld [vmem:[#allocation4 + $0x140] sm:$0xff]
    %v2627 = vld [vmem:[#allocation4 + $0x148] sm:$0xff]
    %v2628 = vld [vmem:[#allocation4 + $0x150] sm:$0xff]
    %v2629 = vld [vmem:[#allocation4 + $0x158] sm:$0xff]
    %v2630 = vld [vmem:[#allocation4 + $0x160] sm:$0xff]
    %v2631 = vld [vmem:[#allocation4 + $0x168] sm:$0xff]
    %v2632 = vld [vmem:[#allocation4 + $0x170] sm:$0xff]
    %v2633 = vld [vmem:[#allocation4 + $0x178] sm:$0xff]
    %v2634 = vld [vmem:[#allocation4 + $0x180] sm:$0xff]
    %v2635 = vld [vmem:[#allocation4 + $0x188] sm:$0xff]
    %v2636 = vld [vmem:[#allocation4 + $0x190] sm:$0xff]
    %v2637 = vld [vmem:[#allocation4 + $0x198] sm:$0xff]
    %v2638 = vld [vmem:[#allocation4 + $0x1a0] sm:$0xff]
    %v2639 = vld [vmem:[#allocation4 + $0x1a8] sm:$0xff]
    %v2640 = vld [vmem:[#allocation4 + $0x1b0] sm:$0xff]
    %v2641 = vld [vmem:[#allocation4 + $0x1b8] sm:$0xff]
    %v2642 = vld [vmem:[#allocation4 + $0x1c0] sm:$0xff]
    %v2643 = vld [vmem:[#allocation4 + $0x1c8] sm:$0xff]
    %v2644 = vld [vmem:[#allocation4 + $0x1d0] sm:$0xff]
    %v2645 = vld [vmem:[#allocation4 + $0x1d8] sm:$0xff]
    %v2646 = vld [vmem:[#allocation4 + $0x1e0] sm:$0xff]
    %v2647 = vld [vmem:[#allocation4 + $0x1e8] sm:$0xff]
    %v2648 = vld [vmem:[#allocation4 + $0x1f0] sm:$0xff]
    %v2649 = vld [vmem:[#allocation4 + $0x1f8] sm:$0xff]
    %v2650 = vpack.c.bf16 %v2110, %v2106
    %v2651 = vpack.c.bf16 %v2112, %v2108
    %v2652 = vpack.c.bf16 %v2256, %v2252
    %v2653 = vpack.c.bf16 %v2258, %v2254
    %v2654 = vpack.c.bf16 %v2402, %v2398
    %v2655 = vpack.c.bf16 %v2404, %v2400
    %v2656 = vpack.c.bf16 %v2548, %v2544
    %v2657 = vpack.c.bf16 %v2550, %v2546
    %v2658 = vpack.c.bf16 %v2120, %v2116
    %v2659 = vpack.c.bf16 %v2122, %v2118
    %v2660 = vpack.c.bf16 %v2266, %v2262
    %v2661 = vpack.c.bf16 %v2268, %v2264
    %v2662 = vpack.c.bf16 %v2412, %v2408
    %v2663 = vpack.c.bf16 %v2414, %v2410
    %v2664 = vpack.c.bf16 %v2558, %v2554
    %v2665 = vpack.c.bf16 %v2560, %v2556
    %v2666 = vpack.c.bf16 %v2130, %v2126
    %v2667 = vpack.c.bf16 %v2132, %v2128
    %v2668 = vpack.c.bf16 %v2276, %v2272
    %v2669 = vpack.c.bf16 %v2278, %v2274
    %v2670 = vpack.c.bf16 %v2422, %v2418
    %v2671 = vpack.c.bf16 %v2424, %v2420
    %v2672 = vpack.c.bf16 %v2568, %v2564
    %v2673 = vpack.c.bf16 %v2570, %v2566
    %v2674 = vpack.c.bf16 %v2140, %v2136
    %v2675 = vpack.c.bf16 %v2142, %v2138
    %v2676 = vpack.c.bf16 %v2286, %v2282
    %v2677 = vpack.c.bf16 %v2288, %v2284
    %v2678 = vpack.c.bf16 %v2432, %v2428
    %v2679 = vpack.c.bf16 %v2434, %v2430
    %v2680 = vpack.c.bf16 %v2578, %v2574
    %v2681 = vpack.c.bf16 %v2580, %v2576
    %2682 = vmatprep.subr.bf16.mxu0 0
    %2683 = vmatpush1.bf16.msra.mxu0 %v2586
    %2684 = vmatprep.subr.bf16.mxu0 0
    %2685 = vmatpush1.bf16.msra.mxu0 %v2587
    %2686 = vmatprep.subr.bf16.mxu0 0
    %2687 = vmatpush1.bf16.msra.mxu0 %v2588
    %2688 = vmatprep.subr.bf16.mxu0 0
    %2689 = vmatpush1.bf16.msra.mxu0 %v2589
    %2690 = vmatprep.subr.bf16.mxu0 0
    %2691 = vmatpush1.bf16.msra.mxu0 %v2590
    %2692 = vmatprep.subr.bf16.mxu0 0
    %2693 = vmatpush1.bf16.msra.mxu0 %v2591
    %2694 = vmatprep.subr.bf16.mxu0 0
    %2695 = vmatpush1.bf16.msra.mxu0 %v2592
    %2696 = vmatprep.subr.bf16.mxu0 0
    %2697 = vmatpush1.bf16.msra.mxu0 %v2593
    %2698 = vmatprep.subr.bf16.mxu0 0
    %2699 = vmatpush1.bf16.msra.mxu0 %v2594
    %2700 = vmatprep.subr.bf16.mxu0 0
    %2701 = vmatpush1.bf16.msra.mxu0 %v2595
    %2702 = vmatprep.subr.bf16.mxu0 0
    %2703 = vmatpush1.bf16.msra.mxu0 %v2596
    %2704 = vmatprep.subr.bf16.mxu0 0
    %2705 = vmatpush1.bf16.msra.mxu0 %v2597
    %2706 = vmatprep.subr.bf16.mxu0 0
    %2707 = vmatpush1.bf16.msra.mxu0 %v2598
    %2708 = vmatprep.subr.bf16.mxu0 0
    %2709 = vmatpush1.bf16.msra.mxu0 %v2599
    %2710 = vmatprep.subr.bf16.mxu0 0
    %2711 = vmatpush1.bf16.msra.mxu0 %v2600
    %2712 = vmatprep.subr.bf16.mxu0 0
    %2713 = vmatpush1.bf16.msra.mxu0 %v2601
    %2714 = vmatprep.mubr.bf16.mxu0 %v2651
    %2715 = vmatmul.mubr.bf16.gmra.mrb[0].mxu0 %v2650
    %v2716 = vpop.f32.mrb[0].mxu0
    %v2717 = vadd.f32 0.0, %v2716
    %v2718 = vpop.f32.mrb[0].mxu0
    %v2719 = vpop.f32.mrb[0].mxu0
    %v2720 = vadd.f32 0.0, %v2719
    %v2721 = vpop.f32.mrb[0].mxu0
    %2722 = vmatprep.mubr.bf16.mxu0 %v2659
    %2723 = vmatmul.mubr.bf16.gmra.mrb[0].mxu0 %v2658
    %v2724 = vpop.f32.mrb[0].mxu0
    %v2725 = vadd.f32 0.0, %v2724
    %v2726 = vpop.f32.mrb[0].mxu0
    %v2727 = vpop.f32.mrb[0].mxu0
    %v2728 = vadd.f32 0.0, %v2727
    %v2729 = vpop.f32.mrb[0].mxu0
    %2730 = vmatprep.mubr.bf16.mxu0 %v2667
    %2731 = vmatmul.mubr.bf16.gmra.mrb[0].mxu0 %v2666
    %v2732 = vpop.f32.mrb[0].mxu0
    %v2733 = vadd.f32 0.0, %v2732
    %v2734 = vpop.f32.mrb[0].mxu0
    %v2735 = vpop.f32.mrb[0].mxu0
    %v2736 = vadd.f32 0.0, %v2735
    %v2737 = vpop.f32.mrb[0].mxu0
    %2738 = vmatprep.mubr.bf16.mxu0 %v2675
    %2739 = vmatmul.mubr.bf16.gmra.mrb[0].mxu0 %v2674
    %v2740 = vpop.f32.mrb[0].mxu0
    %v2741 = vadd.f32 0.0, %v2740
    %v2742 = vpop.f32.mrb[0].mxu0
    %v2743 = vpop.f32.mrb[0].mxu0
    %v2744 = vadd.f32 0.0, %v2743
    %v2745 = vpop.f32.mrb[0].mxu0
    %2746 = vdwg.mxu0
    %2747 = vmatprep.subr.bf16.mxu0 0
    %2748 = vmatpush1.bf16.msra.mxu0 %v2602
    %2749 = vmatprep.subr.bf16.mxu0 0
    %2750 = vmatpush1.bf16.msra.mxu0 %v2603
    %2751 = vmatprep.subr.bf16.mxu0 0
    %2752 = vmatpush1.bf16.msra.mxu0 %v2604
    %2753 = vmatprep.subr.bf16.mxu0 0
    %2754 = vmatpush1.bf16.msra.mxu0 %v2605
    %2755 = vmatprep.subr.bf16.mxu0 0
    %2756 = vmatpush1.bf16.msra.mxu0 %v2606
    %2757 = vmatprep.subr.bf16.mxu0 0
    %2758 = vmatpush1.bf16.msra.mxu0 %v2607
    %2759 = vmatprep.subr.bf16.mxu0 0
    %2760 = vmatpush1.bf16.msra.mxu0 %v2608
    %2761 = vmatprep.subr.bf16.mxu0 0
    %2762 = vmatpush1.bf16.msra.mxu0 %v2609
    %2763 = vmatprep.subr.bf16.mxu0 0
    %2764 = vmatpush1.bf16.msra.mxu0 %v2610
    %2765 = vmatprep.subr.bf16.mxu0 0
    %2766 = vmatpush1.bf16.msra.mxu0 %v2611
    %2767 = vmatprep.subr.bf16.mxu0 0
    %2768 = vmatpush1.bf16.msra.mxu0 %v2612
    %2769 = vmatprep.subr.bf16.mxu0 0
    %2770 = vmatpush1.bf16.msra.mxu0 %v2613
    %2771 = vmatprep.subr.bf16.mxu0 0
    %2772 = vmatpush1.bf16.msra.mxu0 %v2614
    %2773 = vmatprep.subr.bf16.mxu0 0
    %2774 = vmatpush1.bf16.msra.mxu0 %v2615
    %2775 = vmatprep.subr.bf16.mxu0 0
    %2776 = vmatpush1.bf16.msra.mxu0 %v2616
    %2777 = vmatprep.subr.bf16.mxu0 0
    %2778 = vmatpush1.bf16.msra.mxu0 %v2617
    %2779 = vmatprep.mubr.bf16.mxu0 %v2653
    %2780 = vmatmul.mubr.bf16.gmra.mrb[0].mxu0 %v2652
    %v2781 = vpop.f32.mrb[0].mxu0
    %v2782 = vadd.f32 %v2717, %v2781
    %v2783 = vpop.f32.mrb[0].mxu0
    %v2784 = vpop.f32.mrb[0].mxu0
    %v2785 = vadd.f32 %v2720, %v2784
    %v2786 = vpop.f32.mrb[0].mxu0
    %2787 = vmatprep.mubr.bf16.mxu0 %v2661
    %2788 = vmatmul.mubr.bf16.gmra.mrb[0].mxu0 %v2660
    %v2789 = vpop.f32.mrb[0].mxu0
    %v2790 = vadd.f32 %v2725, %v2789
    %v2791 = vpop.f32.mrb[0].mxu0
    %v2792 = vpop.f32.mrb[0].mxu0
    %v2793 = vadd.f32 %v2728, %v2792
    %v2794 = vpop.f32.mrb[0].mxu0
    %2795 = vmatprep.mubr.bf16.mxu0 %v2669
    %2796 = vmatmul.mubr.bf16.gmra.mrb[0].mxu0 %v2668
    %v2797 = vpop.f32.mrb[0].mxu0
    %v2798 = vadd.f32 %v2733, %v2797
    %v2799 = vpop.f32.mrb[0].mxu0
    %v2800 = vpop.f32.mrb[0].mxu0
    %v2801 = vadd.f32 %v2736, %v2800
    %v2802 = vpop.f32.mrb[0].mxu0
    %2803 = vmatprep.mubr.bf16.mxu0 %v2677
    %2804 = vmatmul.mubr.bf16.gmra.mrb[0].mxu0 %v2676
    %v2805 = vpop.f32.mrb[0].mxu0
    %v2806 = vadd.f32 %v2741, %v2805
    %v2807 = vpop.f32.mrb[0].mxu0
    %v2808 = vpop.f32.mrb[0].mxu0
    %v2809 = vadd.f32 %v2744, %v2808
    %v2810 = vpop.f32.mrb[0].mxu0
    %2811 = vdwg.mxu0
    %2812 = vmatprep.subr.bf16.mxu0 0
    %2813 = vmatpush1.bf16.msra.mxu0 %v2618
    %2814 = vmatprep.subr.bf16.mxu0 0
    %2815 = vmatpush1.bf16.msra.mxu0 %v2619
    %2816 = vmatprep.subr.bf16.mxu0 0
    %2817 = vmatpush1.bf16.msra.mxu0 %v2620
    %2818 = vmatprep.subr.bf16.mxu0 0
    %2819 = vmatpush1.bf16.msra.mxu0 %v2621
    %2820 = vmatprep.subr.bf16.mxu0 0
    %2821 = vmatpush1.bf16.msra.mxu0 %v2622
    %2822 = vmatprep.subr.bf16.mxu0 0
    %2823 = vmatpush1.bf16.msra.mxu0 %v2623
    %2824 = vmatprep.subr.bf16.mxu0 0
    %2825 = vmatpush1.bf16.msra.mxu0 %v2624
    %2826 = vmatprep.subr.bf16.mxu0 0
    %2827 = vmatpush1.bf16.msra.mxu0 %v2625
    %2828 = vmatprep.subr.bf16.mxu0 0
    %2829 = vmatpush1.bf16.msra.mxu0 %v2626
    %2830 = vmatprep.subr.bf16.mxu0 0
    %2831 = vmatpush1.bf16.msra.mxu0 %v2627
    %2832 = vmatprep.subr.bf16.mxu0 0
    %2833 = vmatpush1.bf16.msra.mxu0 %v2628
    %2834 = vmatprep.subr.bf16.mxu0 0
    %2835 = vmatpush1.bf16.msra.mxu0 %v2629
    %2836 = vmatprep.subr.bf16.mxu0 0
    %2837 = vmatpush1.bf16.msra.mxu0 %v2630
    %2838 = vmatprep.subr.bf16.mxu0 0
    %2839 = vmatpush1.bf16.msra.mxu0 %v2631
    %2840 = vmatprep.subr.bf16.mxu0 0
    %2841 = vmatpush1.bf16.msra.mxu0 %v2632
    %2842 = vmatprep.subr.bf16.mxu0 0
    %2843 = vmatpush1.bf16.msra.mxu0 %v2633
    %2844 = vmatprep.mubr.bf16.mxu0 %v2655
    %2845 = vmatmul.mubr.bf16.gmra.mrb[0].mxu0 %v2654
    %v2846 = vpop.f32.mrb[0].mxu0
    %v2847 = vadd.f32 %v2782, %v2846
    %v2848 = vpop.f32.mrb[0].mxu0
    %v2849 = vpop.f32.mrb[0].mxu0
    %v2850 = vadd.f32 %v2785, %v2849
    %v2851 = vpop.f32.mrb[0].mxu0
    %2852 = vmatprep.mubr.bf16.mxu0 %v2663
    %2853 = vmatmul.mubr.bf16.gmra.mrb[0].mxu0 %v2662
    %v2854 = vpop.f32.mrb[0].mxu0
    %v2855 = vadd.f32 %v2790, %v2854
    %v2856 = vpop.f32.mrb[0].mxu0
    %v2857 = vpop.f32.mrb[0].mxu0
    %v2858 = vadd.f32 %v2793, %v2857
    %v2859 = vpop.f32.mrb[0].mxu0
    %2860 = vmatprep.mubr.bf16.mxu0 %v2671
    %2861 = vmatmul.mubr.bf16.gmra.mrb[0].mxu0 %v2670
    %v2862 = vpop.f32.mrb[0].mxu0
    %v2863 = vadd.f32 %v2798, %v2862
    %v2864 = vpop.f32.mrb[0].mxu0
    %v2865 = vpop.f32.mrb[0].mxu0
    %v2866 = vadd.f32 %v2801, %v2865
    %v2867 = vpop.f32.mrb[0].mxu0
    %2868 = vmatprep.mubr.bf16.mxu0 %v2679
    %2869 = vmatmul.mubr.bf16.gmra.mrb[0].mxu0 %v2678
    %v2870 = vpop.f32.mrb[0].mxu0
    %v2871 = vadd.f32 %v2806, %v2870
    %v2872 = vpop.f32.mrb[0].mxu0
    %v2873 = vpop.f32.mrb[0].mxu0
    %v2874 = vadd.f32 %v2809, %v2873
    %v2875 = vpop.f32.mrb[0].mxu0
    %2876 = vdwg.mxu0
    %2877 = vmatprep.subr.bf16.mxu0 0
    %2878 = vmatpush1.bf16.msra.mxu0 %v2634
    %2879 = vmatprep.subr.bf16.mxu0 0
    %2880 = vmatpush1.bf16.msra.mxu0 %v2635
    %2881 = vmatprep.subr.bf16.mxu0 0
    %2882 = vmatpush1.bf16.msra.mxu0 %v2636
    %2883 = vmatprep.subr.bf16.mxu0 0
    %2884 = vmatpush1.bf16.msra.mxu0 %v2637
    %2885 = vmatprep.subr.bf16.mxu0 0
    %2886 = vmatpush1.bf16.msra.mxu0 %v2638
    %2887 = vmatprep.subr.bf16.mxu0 0
    %2888 = vmatpush1.bf16.msra.mxu0 %v2639
    %2889 = vmatprep.subr.bf16.mxu0 0
    %2890 = vmatpush1.bf16.msra.mxu0 %v2640
    %2891 = vmatprep.subr.bf16.mxu0 0
    %2892 = vmatpush1.bf16.msra.mxu0 %v2641
    %2893 = vmatprep.subr.bf16.mxu0 0
    %2894 = vmatpush1.bf16.msra.mxu0 %v2642
    %2895 = vmatprep.subr.bf16.mxu0 0
    %2896 = vmatpush1.bf16.msra.mxu0 %v2643
    %2897 = vmatprep.subr.bf16.mxu0 0
    %2898 = vmatpush1.bf16.msra.mxu0 %v2644
    %2899 = vmatprep.subr.bf16.mxu0 0
    %2900 = vmatpush1.bf16.msra.mxu0 %v2645
    %2901 = vmatprep.subr.bf16.mxu0 0
    %2902 = vmatpush1.bf16.msra.mxu0 %v2646
    %2903 = vmatprep.subr.bf16.mxu0 0
    %2904 = vmatpush1.bf16.msra.mxu0 %v2647
    %2905 = vmatprep.subr.bf16.mxu0 0
    %2906 = vmatpush1.bf16.msra.mxu0 %v2648
    %2907 = vmatprep.subr.bf16.mxu0 0
    %2908 = vmatpush1.bf16.msra.mxu0 %v2649
    %2909 = vmatprep.mubr.bf16.mxu0 %v2657
    %2910 = vmatmul.mubr.bf16.gmra.mrb[0].mxu0 %v2656
    %v2911 = vpop.f32.mrb[0].mxu0
    %v2912 = vadd.f32 %v2847, %v2911
    %v2913 = vpop.f32.mrb[0].mxu0
    %v2914 = vpop.f32.mrb[0].mxu0
    %v2915 = vadd.f32 %v2850, %v2914
    %v2916 = vpop.f32.mrb[0].mxu0
    %2917 = vmatprep.mubr.bf16.mxu0 %v2665
    %2918 = vmatmul.mubr.bf16.gmra.mrb[0].mxu0 %v2664
    %v2919 = vpop.f32.mrb[0].mxu0
    %v2920 = vadd.f32 %v2855, %v2919
    %v2921 = vpop.f32.mrb[0].mxu0
    %v2922 = vpop.f32.mrb[0].mxu0
    %v2923 = vadd.f32 %v2858, %v2922
    %v2924 = vpop.f32.mrb[0].mxu0
    %2925 = vmatprep.mubr.bf16.mxu0 %v2673
    %2926 = vmatmul.mubr.bf16.gmra.mrb[0].mxu0 %v2672
    %v2927 = vpop.f32.mrb[0].mxu0
    %v2928 = vadd.f32 %v2863, %v2927
    %v2929 = vpop.f32.mrb[0].mxu0
    %v2930 = vpop.f32.mrb[0].mxu0
    %v2931 = vadd.f32 %v2866, %v2930
    %v2932 = vpop.f32.mrb[0].mxu0
    %2933 = vmatprep.mubr.bf16.mxu0 %v2681
    %2934 = vmatmul.mubr.bf16.gmra.mrb[0].mxu0 %v2680
    %v2935 = vpop.f32.mrb[0].mxu0
    %v2936 = vadd.f32 %v2871, %v2935
    %v2937 = vpop.f32.mrb[0].mxu0
    %v2938 = vpop.f32.mrb[0].mxu0
    %v2939 = vadd.f32 %v2874, %v2938
    %v2940 = vpop.f32.mrb[0].mxu0
    %2941 = vdwg.mxu0
    %v2942 = vadd.f32 %v2912, %v2915
    %v2943 = vadd.f32 %v2942, %v2920
    %v2944 = vadd.f32 %v2943, %v2923
    %v2945 = vadd.f32 %v2944, %v2928
    %v2946 = vadd.f32 %v2945, %v2931
    %v2947 = vadd.f32 %v2946, %v2936
    %v2948 = vadd.f32 %v2947, %v2939
    %v2949 = vrot.slane %v2948, 4
    %v2950 = vadd.f32 %v2948, %v2949
    %v2951 = vrot.slane %v2950, 2
    %v2952 = vadd.f32 %v2950, %v2951
    %v2953 = vrot.slane %v2952, 1
    %v2954 = vadd.f32 %v2952, %v2953
    %v2955 = vmul.f32 %v2954, %v284
    %v2956 = vsub.f32 %v2912, %v2955
    %v2957 = vsub.f32 %v2915, %v2955
    %v2958 = vsub.f32 %v2920, %v2955
    %v2959 = vsub.f32 %v2923, %v2955
    %v2960 = vsub.f32 %v2928, %v2955
    %v2961 = vsub.f32 %v2931, %v2955
    %v2962 = vsub.f32 %v2936, %v2955
    %v2963 = vsub.f32 %v2939, %v2955
    %v2964 = vmul.f32 %v2956, %v2956
    %v2965 = vmul.f32 %v2957, %v2957
    %v2966 = vmul.f32 %v2958, %v2958
    %v2967 = vmul.f32 %v2959, %v2959
    %v2968 = vmul.f32 %v2960, %v2960
    %v2969 = vmul.f32 %v2961, %v2961
    %v2970 = vmul.f32 %v2962, %v2962
    %v2971 = vmul.f32 %v2963, %v2963
    %v2972 = vadd.f32 %v2964, %v2965
    %v2973 = vadd.f32 %v2972, %v2966
    %v2974 = vadd.f32 %v2973, %v2967
    %v2975 = vadd.f32 %v2974, %v2968
    %v2976 = vadd.f32 %v2975, %v2969
    %v2977 = vadd.f32 %v2976, %v2970
    %v2978 = vadd.f32 %v2977, %v2971
    %v2979 = vrot.slane %v2978, 4
    %v2980 = vadd.f32 %v2978, %v2979
    %v2981 = vrot.slane %v2980, 2
    %v2982 = vadd.f32 %v2980, %v2981
    %v2983 = vrot.slane %v2982, 1
    %v2984 = vadd.f32 %v2982, %v2983
    %v2985 = vmul.f32 %v2984, %v284
    %v2986 = vld [vmem:[#allocation9 + $0x43] ss:$0 sm:$0xff]
    %v2987 = vadd.f32 %v2985, 1e-05
    %v2988 = vrsqrt.pop %v2987
    %v2989 = vmul.f32 %v2986, %v2988
    %v2990 = vmul.f32 %v2956, %v2989
    %v2991 = vmul.f32 %v2957, %v2989
    %v2992 = vmul.f32 %v2958, %v2989
    %v2993 = vmul.f32 %v2959, %v2989
    %v2994 = vmul.f32 %v2960, %v2989
    %v2995 = vmul.f32 %v2961, %v2989
    %v2996 = vmul.f32 %v2962, %v2989
    %v2997 = vmul.f32 %v2963, %v2989
    %v2998 = vld [vmem:[#allocation9 + $0x44] ss:$0 sm:$0xff]
    %v2999 = vadd.f32 %v2990, %v2998
    %v3000 = vadd.f32 %v2991, %v2998
    %v3001 = vadd.f32 %v2992, %v2998
    %v3002 = vadd.f32 %v2993, %v2998
    %v3003 = vadd.f32 %v2994, %v2998
    %v3004 = vadd.f32 %v2995, %v2998
    %v3005 = vadd.f32 %v2996, %v2998
    %v3006 = vadd.f32 %v2997, %v2998
    %v3007 = vmax.f32 %v2999, 0.0
    %v3008 = vmax.f32 %v3000, 0.0
    %v3009 = vmax.f32 %v3001, 0.0
    %v3010 = vmax.f32 %v3002, 0.0
    %v3011 = vmax.f32 %v3003, 0.0
    %v3012 = vmax.f32 %v3004, 0.0
    %v3013 = vmax.f32 %v3005, 0.0
    %v3014 = vmax.f32 %v3006, 0.0
    %v3015 = vld [vmem:[#allocation7 + $0x110] sm:$0xf]
    %v3016 = vld [vmem:[#allocation7 + $0x118] sm:$0xf]
    %v3017 = vld [vmem:[#allocation7 + $0x120] sm:$0xf]
    %v3018 = vld [vmem:[#allocation7 + $0x128] sm:$0xf]
    %v3019 = vld [vmem:[#allocation7 + $0x130] sm:$0xf]
    %v3020 = vld [vmem:[#allocation7 + $0x138] sm:$0xf]
    %v3021 = vld [vmem:[#allocation7 + $0x140] sm:$0xf]
    %v3022 = vld [vmem:[#allocation7 + $0x148] sm:$0xf]
    %v3023 = vld [vmem:[#allocation7 + $0x150] sm:$0xf]
    %v3024 = vld [vmem:[#allocation7 + $0x158] sm:$0xf]
    %v3025 = vld [vmem:[#allocation7 + $0x160] sm:$0xf]
    %v3026 = vld [vmem:[#allocation7 + $0x168] sm:$0xf]
    %v3027 = vld [vmem:[#allocation7 + $0x170] sm:$0xf]
    %v3028 = vld [vmem:[#allocation7 + $0x178] sm:$0xf]
    %v3029 = vld [vmem:[#allocation7 + $0x180] sm:$0xf]
    %v3030 = vld [vmem:[#allocation7 + $0x188] sm:$0xf]
    %v3031 = vpack.c.bf16 %v3008, %v3007
    %v3032 = vpack.c.bf16 %v3010, %v3009
    %v3033 = vpack.c.bf16 %v3012, %v3011
    %v3034 = vpack.c.bf16 %v3014, %v3013
    %v3051 = vunpack.c.l.b16 %v3015
    %v3052 = vunpack.c.l.b16 %v3016
    %v3053 = vunpack.c.l.b16 %v3017
    %v3054 = vunpack.c.l.b16 %v3018
    %v3055 = vunpack.c.l.b16 %v3019
    %v3056 = vunpack.c.l.b16 %v3020
    %v3057 = vunpack.c.l.b16 %v3021
    %v3058 = vunpack.c.l.b16 %v3022
    %v3059 = vunpack.c.l.b16 %v3023
    %v3060 = vunpack.c.l.b16 %v3024
    %v3061 = vunpack.c.l.b16 %v3025
    %v3062 = vunpack.c.l.b16 %v3026
    %v3063 = vunpack.c.l.b16 %v3027
    %v3064 = vunpack.c.l.b16 %v3028
    %v3065 = vunpack.c.l.b16 %v3029
    %v3066 = vunpack.c.l.b16 %v3030
    %v3067 = vpack.c.b16 %v3052, %v3051
    %v3068 = vpack.c.b16 %v3054, %v3053
    %v3069 = vpack.c.b16 %v3056, %v3055
    %v3070 = vpack.c.b16 %v3058, %v3057
    %v3071 = vpack.c.b16 %v3060, %v3059
    %v3072 = vpack.c.b16 %v3062, %v3061
    %v3073 = vpack.c.b16 %v3064, %v3063
    %v3074 = vpack.c.b16 %v3066, %v3065
    %3083 = vmatprep.subr.bf16.mxu0 0
    %3084 = vmatpush1.bf16.msra.mxu0 %v3067
    %3085 = vmatprep.subr.bf16.mxu0 0
    %3086 = vmatpush1.bf16.msra.mxu0 %v3068
    %3087 = vmatprep.subr.bf16.mxu0 0
    %3088 = vmatpush1.bf16.msra.mxu0 %v3069
    %3089 = vmatprep.subr.bf16.mxu0 0
    %3090 = vmatpush1.bf16.msra.mxu0 %v3070
    %3091 = vmatprep.subr.bf16.mxu0 0
    %3092 = vmatpush1.bf16.msra.mxu0 %v3071
    %3093 = vmatprep.subr.bf16.mxu0 0
    %3094 = vmatpush1.bf16.msra.mxu0 %v3072
    %3095 = vmatprep.subr.bf16.mxu0 0
    %3096 = vmatpush1.bf16.msra.mxu0 %v3073
    %3097 = vmatprep.subr.bf16.mxu0 0
    %3098 = vmatpush1.bf16.msra.mxu0 %v3074
    %3099 = vmatprep.subr.bf16.mxu0 0
    %3100 = vmatpush1.bf16.msra.mxu0 0
    %3101 = vmatprep.subr.bf16.mxu0 0
    %3102 = vmatpush1.bf16.msra.mxu0 0
    %3103 = vmatprep.subr.bf16.mxu0 0
    %3104 = vmatpush1.bf16.msra.mxu0 0
    %3105 = vmatprep.subr.bf16.mxu0 0
    %3106 = vmatpush1.bf16.msra.mxu0 0
    %3107 = vmatprep.subr.bf16.mxu0 0
    %3108 = vmatpush1.bf16.msra.mxu0 0
    %3109 = vmatprep.subr.bf16.mxu0 0
    %3110 = vmatpush1.bf16.msra.mxu0 0
    %3111 = vmatprep.subr.bf16.mxu0 0
    %3112 = vmatpush1.bf16.msra.mxu0 0
    %3113 = vmatprep.subr.bf16.mxu0 0
    %3114 = vmatpush1.bf16.msra.mxu0 0
    %3115 = vmatprep.mubr.bf16.mxu0 0
    %3116 = vmatmul.mubr.bf16.gmra.mrb[0].mxu0 %v3031
    %v3117 = vpop.f32.mrb[0].mxu0
    %v3118 = vadd.f32 0.0, %v3117
    %v3119 = vpop.f32.mrb[0].mxu0
    %v3120 = vpop.f32.mrb[0].mxu0
    %v3121 = vadd.f32 0.0, %v3120
    %v3122 = vpop.f32.mrb[0].mxu0
    %3123 = vmatprep.mubr.bf16.mxu0 0
    %3124 = vmatmul.mubr.bf16.gmra.mrb[0].mxu0 %v3032
    %v3125 = vpop.f32.mrb[0].mxu0
    %v3126 = vadd.f32 0.0, %v3125
    %v3127 = vpop.f32.mrb[0].mxu0
    %v3128 = vpop.f32.mrb[0].mxu0
    %v3129 = vadd.f32 0.0, %v3128
    %v3130 = vpop.f32.mrb[0].mxu0
    %3131 = vmatprep.mubr.bf16.mxu0 0
    %3132 = vmatmul.mubr.bf16.gmra.mrb[0].mxu0 %v3033
    %v3133 = vpop.f32.mrb[0].mxu0
    %v3134 = vadd.f32 0.0, %v3133
    %v3135 = vpop.f32.mrb[0].mxu0
    %v3136 = vpop.f32.mrb[0].mxu0
    %v3137 = vadd.f32 0.0, %v3136
    %v3138 = vpop.f32.mrb[0].mxu0
    %3139 = vmatprep.mubr.bf16.mxu0 0
    %3140 = vmatmul.mubr.bf16.gmra.mrb[0].mxu0 %v3034
    %v3141 = vpop.f32.mrb[0].mxu0
    %v3142 = vadd.f32 0.0, %v3141
    %v3143 = vpop.f32.mrb[0].mxu0
    %v3144 = vpop.f32.mrb[0].mxu0
    %v3145 = vadd.f32 0.0, %v3144
    %v3146 = vpop.f32.mrb[0].mxu0
    %3147 = vdwg.mxu0
    %vm3148 = vcmask 261120
    %v3149 = vsel %vm3148, %v3118, 0.0
    %v3150 = vsel %vm3148, %v3121, 0.0
    %v3151 = vadd.f32 %v3149, %v3150
    %v3152 = vsel %vm3148, %v3126, 0.0
    %v3153 = vadd.f32 %v3151, %v3152
    %v3154 = vsel %vm3148, %v3129, 0.0
    %v3155 = vadd.f32 %v3153, %v3154
    %v3156 = vsel %vm3148, %v3134, 0.0
    %v3157 = vadd.f32 %v3155, %v3156
    %v3158 = vsel %vm3148, %v3137, 0.0
    %v3159 = vadd.f32 %v3157, %v3158
    %v3160 = vsel %vm3148, %v3142, 0.0
    %v3161 = vadd.f32 %v3159, %v3160
    %v3162 = vsel %vm3148, %v3145, 0.0
    %v3163 = vadd.f32 %v3161, %v3162
    %v3164 = vrot.slane %v3163, 4
    %v3165 = vadd.f32 %v3163, %v3164
    %v3166 = vrot.slane %v3165, 2
    %v3167 = vadd.f32 %v3165, %v3166
    %v3168 = vrot.slane %v3167, 1
    %v3169 = vadd.f32 %v3167, %v3168
    %v3170 = vmul.f32 %v3169, %v284
    %v3171 = vsub.f32 %v3118, %v3170
    %v3172 = vsub.f32 %v3121, %v3170
    %v3173 = vsub.f32 %v3126, %v3170
    %v3174 = vsub.f32 %v3129, %v3170
    %v3175 = vsub.f32 %v3134, %v3170
    %v3176 = vsub.f32 %v3137, %v3170
    %v3177 = vsub.f32 %v3142, %v3170
    %v3178 = vsub.f32 %v3145, %v3170
    %v3179 = vmul.f32 %v3171, %v3171
    %v3180 = vmul.f32 %v3172, %v3172
    %v3181 = vmul.f32 %v3173, %v3173
    %v3182 = vmul.f32 %v3174, %v3174
    %v3183 = vmul.f32 %v3175, %v3175
    %v3184 = vmul.f32 %v3176, %v3176
    %v3185 = vmul.f32 %v3177, %v3177
    %v3186 = vmul.f32 %v3178, %v3178
    %v3187 = vsel %vm3148, %v3179, 0.0
    %v3188 = vsel %vm3148, %v3180, 0.0
    %v3189 = vadd.f32 %v3187, %v3188
    %v3190 = vsel %vm3148, %v3181, 0.0
    %v3191 = vadd.f32 %v3189, %v3190
    %v3192 = vsel %vm3148, %v3182, 0.0
    %v3193 = vadd.f32 %v3191, %v3192
    %v3194 = vsel %vm3148, %v3183, 0.0
    %v3195 = vadd.f32 %v3193, %v3194
    %v3196 = vsel %vm3148, %v3184, 0.0
    %v3197 = vadd.f32 %v3195, %v3196
    %v3198 = vsel %vm3148, %v3185, 0.0
    %v3199 = vadd.f32 %v3197, %v3198
    %v3200 = vsel %vm3148, %v3186, 0.0
    %v3201 = vadd.f32 %v3199, %v3200
    %v3202 = vrot.slane %v3201, 4
    %v3203 = vadd.f32 %v3201, %v3202
    %v3204 = vrot.slane %v3203, 2
    %v3205 = vadd.f32 %v3203, %v3204
    %v3206 = vrot.slane %v3205, 1
    %v3207 = vadd.f32 %v3205, %v3206
    %v3208 = vmul.f32 %v3207, %v284
    %v3209 = vld [vmem:[#allocation9 + $0x45] ss:$0 sm:$0xff]
    %v3210 = vadd.f32 %v3208, 1e-05
    %v3211 = vrsqrt.pop %v3210
    %v3212 = vmul.f32 %v3209, %v3211
    %v3213 = vmul.f32 %v3171, %v3212
    %v3214 = vmul.f32 %v3172, %v3212
    %v3215 = vmul.f32 %v3173, %v3212
    %v3216 = vmul.f32 %v3174, %v3212
    %v3217 = vmul.f32 %v3175, %v3212
    %v3218 = vmul.f32 %v3176, %v3212
    %v3219 = vmul.f32 %v3177, %v3212
    %v3220 = vmul.f32 %v3178, %v3212
    %v3221 = vld [vmem:[#allocation9 + $0x46] ss:$0 sm:$0xff]
    %v3222 = vadd.f32 %v3213, %v3221
    %v3223 = vadd.f32 %v3214, %v3221
    %v3224 = vadd.f32 %v3215, %v3221
    %v3225 = vadd.f32 %v3216, %v3221
    %v3226 = vadd.f32 %v3217, %v3221
    %v3227 = vadd.f32 %v3218, %v3221
    %v3228 = vadd.f32 %v3219, %v3221
    %v3229 = vadd.f32 %v3220, %v3221
    %v3230 = vmax.f32 %v3222, 0.0
    %v3231 = vmax.f32 %v3223, 0.0
    %v3232 = vmax.f32 %v3224, 0.0
    %v3233 = vmax.f32 %v3225, 0.0
    %v3234 = vmax.f32 %v3226, 0.0
    %v3235 = vmax.f32 %v3227, 0.0
    %v3236 = vmax.f32 %v3228, 0.0
    %v3237 = vmax.f32 %v3229, 0.0
    %v3238 = vld [vmem:[#allocation7 + $0x190] sm:$0xf]
    %v3239 = vld [vmem:[#allocation7 + $0x198] sm:$0xf]
    %v3240 = vld [vmem:[#allocation7 + $0x1a0] sm:$0xf]
    %v3241 = vld [vmem:[#allocation7 + $0x1a8] sm:$0xf]
    %v3242 = vpack.c.bf16 %v3231, %v3230
    %v3243 = vpack.c.bf16 %v3233, %v3232
    %v3244 = vpack.c.bf16 %v3235, %v3234
    %v3245 = vpack.c.bf16 %v3237, %v3236
    %v3246 = vld [vmem:[#allocation9 + $0x47] ss:$0 sm:$0xff]
    %v3251 = vunpack.c.l.b16 %v3238
    %v3252 = vunpack.c.l.b16 %v3239
    %v3253 = vunpack.c.l.b16 %v3240
    %v3254 = vunpack.c.l.b16 %v3241
    %v3255 = vpack.c.b16 %v3252, %v3251
    %v3256 = vpack.c.b16 %v3254, %v3253
    %v3260 = vsel %vm3148, %v3242, 0
    %v3263 = vsel %vm3148, %v3243, 0
    %v3266 = vsel %vm3148, %v3244, 0
    %v3269 = vsel %vm3148, %v3245, 0
    %3271 = vmatprep.subr.bf16.mxu0 0
    %3272 = vmatpush1.bf16.msra.mxu0 %v3255
    %3273 = vmatprep.subr.bf16.mxu0 0
    %3274 = vmatpush1.bf16.msra.mxu0 %v3256
    %3275 = vmatprep.subr.bf16.mxu0 0
    %3276 = vmatpush1.bf16.msra.mxu0 0
    %3277 = vmatprep.subr.bf16.mxu0 0
    %3278 = vmatpush1.bf16.msra.mxu0 0
    %3279 = vmatprep.subr.bf16.mxu0 0
    %3280 = vmatpush1.bf16.msra.mxu0 0
    %3281 = vmatprep.subr.bf16.mxu0 0
    %3282 = vmatpush1.bf16.msra.mxu0 0
    %3283 = vmatprep.subr.bf16.mxu0 0
    %3284 = vmatpush1.bf16.msra.mxu0 0
    %3285 = vmatprep.subr.bf16.mxu0 0
    %3286 = vmatpush1.bf16.msra.mxu0 0
    %3287 = vmatprep.subr.bf16.mxu0 0
    %3288 = vmatpush1.bf16.msra.mxu0 0
    %3289 = vmatprep.subr.bf16.mxu0 0
    %3290 = vmatpush1.bf16.msra.mxu0 0
    %3291 = vmatprep.subr.bf16.mxu0 0
    %3292 = vmatpush1.bf16.msra.mxu0 0
    %3293 = vmatprep.subr.bf16.mxu0 0
    %3294 = vmatpush1.bf16.msra.mxu0 0
    %3295 = vmatprep.subr.bf16.mxu0 0
    %3296 = vmatpush1.bf16.msra.mxu0 0
    %3297 = vmatprep.subr.bf16.mxu0 0
    %3298 = vmatpush1.bf16.msra.mxu0 0
    %3299 = vmatprep.subr.bf16.mxu0 0
    %3300 = vmatpush1.bf16.msra.mxu0 0
    %3301 = vmatprep.subr.bf16.mxu0 0
    %3302 = vmatpush1.bf16.msra.mxu0 0
    %3303 = vmatprep.mubr.bf16.mxu0 0
    %3304 = vmatmul.mubr.bf16.gmra.mrb[0].mxu0 %v3260
    %v3305 = vpop.f32.mrb[0].mxu0
    %v3306 = vadd.f32 %v3246, %v3305
    %v3307 = vpop.f32.mrb[0].mxu0
    %v3308 = vpop.f32.mrb[0].mxu0
    %v3309 = vadd.f32 %v3246, %v3308
    %v3310 = vpop.f32.mrb[0].mxu0
    %3311 = vmatprep.mubr.bf16.mxu0 0
    %3312 = vmatmul.mubr.bf16.gmra.mrb[0].mxu0 %v3263
    %v3313 = vpop.f32.mrb[0].mxu0
    %v3314 = vadd.f32 %v3246, %v3313
    %v3315 = vpop.f32.mrb[0].mxu0
    %v3316 = vpop.f32.mrb[0].mxu0
    %v3317 = vadd.f32 %v3246, %v3316
    %v3318 = vpop.f32.mrb[0].mxu0
    %3319 = vmatprep.mubr.bf16.mxu0 0
    %3320 = vmatmul.mubr.bf16.gmra.mrb[0].mxu0 %v3266
    %v3321 = vpop.f32.mrb[0].mxu0
    %v3322 = vadd.f32 %v3246, %v3321
    %v3323 = vpop.f32.mrb[0].mxu0
    %v3324 = vpop.f32.mrb[0].mxu0
    %v3325 = vadd.f32 %v3246, %v3324
    %v3326 = vpop.f32.mrb[0].mxu0
    %3327 = vmatprep.mubr.bf16.mxu0 0
    %3328 = vmatmul.mubr.bf16.gmra.mrb[0].mxu0 %v3269
    %v3329 = vpop.f32.mrb[0].mxu0
    %v3330 = vadd.f32 %v3246, %v3329
    %v3331 = vpop.f32.mrb[0].mxu0
    %v3332 = vpop.f32.mrb[0].mxu0
    %v3333 = vadd.f32 %v3246, %v3332
    %v3334 = vpop.f32.mrb[0].mxu0
    %3335 = vdwg.mxu0
    %vm3336 = vcmask 7168
    %v3337 = vsel %vm3336, %v3306, -inf
    %v3338 = vsel %vm3336, %v3309, -inf
    %v3339 = vsel %vm3336, %v3314, -inf
    %v3340 = vsel %vm3336, %v3317, -inf
    %v3341 = vsel %vm3336, %v3322, -inf
    %v3342 = vmax.f32 %v3337, %v3341
    %v3343 = vsel %vm3336, %v3325, -inf
    %v3344 = vmax.f32 %v3338, %v3343
    %v3345 = vsel %vm3336, %v3330, -inf
    %v3346 = vmax.f32 %v3339, %v3345
    %v3347 = vsel %vm3336, %v3333, -inf
    %v3348 = vmax.f32 %v3340, %v3347
    %v3349 = vmax.f32 %v3342, %v3344
    %v3350 = vmax.f32 %v3346, %v3348
    %v3351 = vmax.f32 %v3349, %v3350
    %v3352 = vrot.slane %v3351, 4
    %v3353 = vmax.f32 %v3351, %v3352
    %v3354 = vrot.slane %v3353, 2
    %v3355 = vmax.f32 %v3353, %v3354
    %v3356 = vrot.slane %v3355, 1
    %v3357 = vmax.f32 %v3355, %v3356
    %v3358 = vsub.f32 %v3306, %v3357
    %v3359 = vsub.f32 %v3309, %v3357
    %v3360 = vsub.f32 %v3314, %v3357
    %v3361 = vsub.f32 %v3317, %v3357
    %v3362 = vsub.f32 %v3322, %v3357
    %v3363 = vsub.f32 %v3325, %v3357
    %v3364 = vsub.f32 %v3330, %v3357
    %v3365 = vsub.f32 %v3333, %v3357
    %v3366 = vmul.f32 %v3358, 1.442695
    %v3367 = vpow.pop %v3366
    %v3368 = vmul.f32 %v3359, 1.442695
    %v3369 = vpow.pop %v3368
    %v3370 = vmul.f32 %v3360, 1.442695
    %v3371 = vpow.pop %v3370
    %v3372 = vmul.f32 %v3361, 1.442695
    %v3373 = vpow.pop %v3372
    %v3374 = vmul.f32 %v3362, 1.442695
    %v3375 = vpow.pop %v3374
    %v3376 = vmul.f32 %v3363, 1.442695
    %v3377 = vpow.pop %v3376
    %v3378 = vmul.f32 %v3364, 1.442695
    %v3379 = vpow.pop %v3378
    %v3380 = vmul.f32 %v3365, 1.442695
    %v3381 = vpow.pop %v3380
    %v3382 = vsel %vm3336, %v3367, 0.0
    %v3383 = vsel %vm3336, %v3369, 0.0
    %v3384 = vadd.f32 %v3382, %v3383
    %v3385 = vsel %vm3336, %v3371, 0.0
    %v3386 = vadd.f32 %v3384, %v3385
    %v3387 = vsel %vm3336, %v3373, 0.0
    %v3388 = vadd.f32 %v3386, %v3387
    %v3389 = vsel %vm3336, %v3375, 0.0
    %v3390 = vadd.f32 %v3388, %v3389
    %v3391 = vsel %vm3336, %v3377, 0.0
    %v3392 = vadd.f32 %v3390, %v3391
    %v3393 = vsel %vm3336, %v3379, 0.0
    %v3394 = vadd.f32 %v3392, %v3393
    %v3395 = vsel %vm3336, %v3381, 0.0
    %v3396 = vadd.f32 %v3394, %v3395
    %v3397 = vrot.slane %v3396, 4
    %v3398 = vadd.f32 %v3396, %v3397
    %v3399 = vrot.slane %v3398, 2
    %v3400 = vadd.f32 %v3398, %v3399
    %v3401 = vrot.slane %v3400, 1
    %v3402 = vadd.f32 %v3400, %v3401
    %v3403 = vrcp.pop %v3402
    %v3404 = vmul.f32 %v3367, %v3403
    %v3405 = vmul.f32 %v3369, %v3403
    %v3406 = vmul.f32 %v3371, %v3403
    %v3407 = vmul.f32 %v3373, %v3403
    %v3408 = vmul.f32 %v3375, %v3403
    %v3409 = vmul.f32 %v3377, %v3403
    %v3410 = vmul.f32 %v3379, %v3403
    %v3411 = vmul.f32 %v3381, %v3403
    %3413 = vset.pattern.permute.xlu0 0
    %3414 = vperm.xlu0 %3413, %v3404
    %v3415 = vpop.permute.xlu0 %3414
    %3418 = vset.pattern.permute.xlu0 0
    %3419 = vperm.xlu0 %3418, %v3405
    %v3420 = vpop.permute.xlu0 %3419
    %3423 = vset.pattern.permute.xlu0 0
    %3424 = vperm.xlu0 %3423, %v3406
    %v3425 = vpop.permute.xlu0 %3424
    %3428 = vset.pattern.permute.xlu0 0
    %3429 = vperm.xlu0 %3428, %v3407
    %v3430 = vpop.permute.xlu0 %3429
    %3433 = vset.pattern.permute.xlu0 0
    %3434 = vperm.xlu0 %3433, %v3408
    %v3435 = vpop.permute.xlu0 %3434
    %3438 = vset.pattern.permute.xlu0 0
    %3439 = vperm.xlu0 %3438, %v3409
    %v3440 = vpop.permute.xlu0 %3439
    %3443 = vset.pattern.permute.xlu0 0
    %3444 = vperm.xlu0 %3443, %v3410
    %v3445 = vpop.permute.xlu0 %3444
    %3448 = vset.pattern.permute.xlu0 0
    %3449 = vperm.xlu0 %3448, %v3411
    %v3450 = vpop.permute.xlu0 %3449
    %v3452 = vmul.f32 %v2106, %v3415
    %v3453 = vmul.f32 %v2108, %v3415
    %v3454 = vmul.f32 %v2252, %v3415
    %v3455 = vmul.f32 %v2254, %v3415
    %v3456 = vmul.f32 %v2398, %v3415
    %v3457 = vmul.f32 %v2400, %v3415
    %v3458 = vmul.f32 %v2544, %v3415
    %v3459 = vmul.f32 %v2546, %v3415
    %v3460 = vmul.f32 %v2110, %v3420
    %v3461 = vmul.f32 %v2112, %v3420
    %v3462 = vmul.f32 %v2256, %v3420
    %v3463 = vmul.f32 %v2258, %v3420
    %v3464 = vmul.f32 %v2402, %v3420
    %v3465 = vmul.f32 %v2404, %v3420
    %v3466 = vmul.f32 %v2548, %v3420
    %v3467 = vmul.f32 %v2550, %v3420
    %v3468 = vmul.f32 %v2116, %v3425
    %v3469 = vmul.f32 %v2118, %v3425
    %v3470 = vmul.f32 %v2262, %v3425
    %v3471 = vmul.f32 %v2264, %v3425
    %v3472 = vmul.f32 %v2408, %v3425
    %v3473 = vmul.f32 %v2410, %v3425
    %v3474 = vmul.f32 %v2554, %v3425
    %v3475 = vmul.f32 %v2556, %v3425
    %v3476 = vmul.f32 %v2120, %v3430
    %v3477 = vmul.f32 %v2122, %v3430
    %v3478 = vmul.f32 %v2266, %v3430
    %v3479 = vmul.f32 %v2268, %v3430
    %v3480 = vmul.f32 %v2412, %v3430
    %v3481 = vmul.f32 %v2414, %v3430
    %v3482 = vmul.f32 %v2558, %v3430
    %v3483 = vmul.f32 %v2560, %v3430
    %v3484 = vmul.f32 %v2126, %v3435
    %v3485 = vmul.f32 %v2128, %v3435
    %v3486 = vmul.f32 %v2272, %v3435
    %v3487 = vmul.f32 %v2274, %v3435
    %v3488 = vmul.f32 %v2418, %v3435
    %v3489 = vmul.f32 %v2420, %v3435
    %v3490 = vmul.f32 %v2564, %v3435
    %v3491 = vmul.f32 %v2566, %v3435
    %v3492 = vmul.f32 %v2130, %v3440
    %v3493 = vmul.f32 %v2132, %v3440
    %v3494 = vmul.f32 %v2276, %v3440
    %v3495 = vmul.f32 %v2278, %v3440
    %v3496 = vmul.f32 %v2422, %v3440
    %v3497 = vmul.f32 %v2424, %v3440
    %v3498 = vmul.f32 %v2568, %v3440
    %v3499 = vmul.f32 %v2570, %v3440
    %v3500 = vmul.f32 %v2136, %v3445
    %v3501 = vmul.f32 %v2138, %v3445
    %v3502 = vmul.f32 %v2282, %v3445
    %v3503 = vmul.f32 %v2284, %v3445
    %v3504 = vmul.f32 %v2428, %v3445
    %v3505 = vmul.f32 %v2430, %v3445
    %v3506 = vmul.f32 %v2574, %v3445
    %v3507 = vmul.f32 %v2576, %v3445
    %v3508 = vmul.f32 %v2140, %v3450
    %v3509 = vmul.f32 %v2142, %v3450
    %v3510 = vmul.f32 %v2286, %v3450
    %v3511 = vmul.f32 %v2288, %v3450
    %v3512 = vmul.f32 %v2432, %v3450
    %v3513 = vmul.f32 %v2434, %v3450
    %v3514 = vmul.f32 %v2578, %v3450
    %v3515 = vmul.f32 %v2580, %v3450
    %s3516 = smul.u32 %s2582, 2
    %s3517 = sshll.u32 %s3516, 4
    %3518 = dma.done %s132, %s3517
    %v3519 = vld [vmem:[#allocation5] sm:$0xff]
    %v3520 = vld [vmem:[#allocation5 + $0x8] sm:$0xff]
    %v3521 = vld [vmem:[#allocation5 + $0x10] sm:$0xff]
    %v3522 = vld [vmem:[#allocation5 + $0x18] sm:$0xff]
    %v3523 = vld [vmem:[#allocation5 + $0x20] sm:$0xff]
    %v3524 = vld [vmem:[#allocation5 + $0x28] sm:$0xff]
    %v3525 = vld [vmem:[#allocation5 + $0x30] sm:$0xff]
    %v3526 = vld [vmem:[#allocation5 + $0x38] sm:$0xff]
    %v3527 = vld [vmem:[#allocation5 + $0x40] sm:$0xff]
    %v3528 = vld [vmem:[#allocation5 + $0x48] sm:$0xff]
    %v3529 = vld [vmem:[#allocation5 + $0x50] sm:$0xff]
    %v3530 = vld [vmem:[#allocation5 + $0x58] sm:$0xff]
    %v3531 = vld [vmem:[#allocation5 + $0x60] sm:$0xff]
    %v3532 = vld [vmem:[#allocation5 + $0x68] sm:$0xff]
    %v3533 = vld [vmem:[#allocation5 + $0x70] sm:$0xff]
    %v3534 = vld [vmem:[#allocation5 + $0x78] sm:$0xff]
    %v3535 = vld [vmem:[#allocation5 + $0x80] sm:$0xff]
    %v3536 = vld [vmem:[#allocation5 + $0x88] sm:$0xff]
    %v3537 = vld [vmem:[#allocation5 + $0x90] sm:$0xff]
    %v3538 = vld [vmem:[#allocation5 + $0x98] sm:$0xff]
    %v3539 = vld [vmem:[#allocation5 + $0xa0] sm:$0xff]
    %v3540 = vld [vmem:[#allocation5 + $0xa8] sm:$0xff]
    %v3541 = vld [vmem:[#allocation5 + $0xb0] sm:$0xff]
    %v3542 = vld [vmem:[#allocation5 + $0xb8] sm:$0xff]
    %v3543 = vld [vmem:[#allocation5 + $0xc0] sm:$0xff]
    %v3544 = vld [vmem:[#allocation5 + $0xc8] sm:$0xff]
    %v3545 = vld [vmem:[#allocation5 + $0xd0] sm:$0xff]
    %v3546 = vld [vmem:[#allocation5 + $0xd8] sm:$0xff]
    %v3547 = vld [vmem:[#allocation5 + $0xe0] sm:$0xff]
    %v3548 = vld [vmem:[#allocation5 + $0xe8] sm:$0xff]
    %v3549 = vld [vmem:[#allocation5 + $0xf0] sm:$0xff]
    %v3550 = vld [vmem:[#allocation5 + $0xf8] sm:$0xff]
    %v3551 = vld [vmem:[#allocation5 + $0x100] sm:$0xff]
    %v3552 = vld [vmem:[#allocation5 + $0x108] sm:$0xff]
    %v3553 = vld [vmem:[#allocation5 + $0x110] sm:$0xff]
    %v3554 = vld [vmem:[#allocation5 + $0x118] sm:$0xff]
    %v3555 = vld [vmem:[#allocation5 + $0x120] sm:$0xff]
    %v3556 = vld [vmem:[#allocation5 + $0x128] sm:$0xff]
    %v3557 = vld [vmem:[#allocation5 + $0x130] sm:$0xff]
    %v3558 = vld [vmem:[#allocation5 + $0x138] sm:$0xff]
    %v3559 = vld [vmem:[#allocation5 + $0x140] sm:$0xff]
    %v3560 = vld [vmem:[#allocation5 + $0x148] sm:$0xff]
    %v3561 = vld [vmem:[#allocation5 + $0x150] sm:$0xff]
    %v3562 = vld [vmem:[#allocation5 + $0x158] sm:$0xff]
    %v3563 = vld [vmem:[#allocation5 + $0x160] sm:$0xff]
    %v3564 = vld [vmem:[#allocation5 + $0x168] sm:$0xff]
    %v3565 = vld [vmem:[#allocation5 + $0x170] sm:$0xff]
    %v3566 = vld [vmem:[#allocation5 + $0x178] sm:$0xff]
    %v3567 = vld [vmem:[#allocation5 + $0x180] sm:$0xff]
    %v3568 = vld [vmem:[#allocation5 + $0x188] sm:$0xff]
    %v3569 = vld [vmem:[#allocation5 + $0x190] sm:$0xff]
    %v3570 = vld [vmem:[#allocation5 + $0x198] sm:$0xff]
    %v3571 = vld [vmem:[#allocation5 + $0x1a0] sm:$0xff]
    %v3572 = vld [vmem:[#allocation5 + $0x1a8] sm:$0xff]
    %v3573 = vld [vmem:[#allocation5 + $0x1b0] sm:$0xff]
    %v3574 = vld [vmem:[#allocation5 + $0x1b8] sm:$0xff]
    %v3575 = vld [vmem:[#allocation5 + $0x1c0] sm:$0xff]
    %v3576 = vld [vmem:[#allocation5 + $0x1c8] sm:$0xff]
    %v3577 = vld [vmem:[#allocation5 + $0x1d0] sm:$0xff]
    %v3578 = vld [vmem:[#allocation5 + $0x1d8] sm:$0xff]
    %v3579 = vld [vmem:[#allocation5 + $0x1e0] sm:$0xff]
    %v3580 = vld [vmem:[#allocation5 + $0x1e8] sm:$0xff]
    %v3581 = vld [vmem:[#allocation5 + $0x1f0] sm:$0xff]
    %v3582 = vld [vmem:[#allocation5 + $0x1f8] sm:$0xff]
    %v3583 = vld [vmem:[#allocation5 + $0x200] sm:$0xff]
    %v3584 = vld [vmem:[#allocation5 + $0x208] sm:$0xff]
    %v3585 = vld [vmem:[#allocation5 + $0x210] sm:$0xff]
    %v3586 = vld [vmem:[#allocation5 + $0x218] sm:$0xff]
    %v3587 = vld [vmem:[#allocation5 + $0x220] sm:$0xff]
    %v3588 = vld [vmem:[#allocation5 + $0x228] sm:$0xff]
    %v3589 = vld [vmem:[#allocation5 + $0x230] sm:$0xff]
    %v3590 = vld [vmem:[#allocation5 + $0x238] sm:$0xff]
    %v3591 = vld [vmem:[#allocation5 + $0x240] sm:$0xff]
    %v3592 = vld [vmem:[#allocation5 + $0x248] sm:$0xff]
    %v3593 = vld [vmem:[#allocation5 + $0x250] sm:$0xff]
    %v3594 = vld [vmem:[#allocation5 + $0x258] sm:$0xff]
    %v3595 = vld [vmem:[#allocation5 + $0x260] sm:$0xff]
    %v3596 = vld [vmem:[#allocation5 + $0x268] sm:$0xff]
    %v3597 = vld [vmem:[#allocation5 + $0x270] sm:$0xff]
    %v3598 = vld [vmem:[#allocation5 + $0x278] sm:$0xff]
    %v3599 = vld [vmem:[#allocation5 + $0x280] sm:$0xff]
    %v3600 = vld [vmem:[#allocation5 + $0x288] sm:$0xff]
    %v3601 = vld [vmem:[#allocation5 + $0x290] sm:$0xff]
    %v3602 = vld [vmem:[#allocation5 + $0x298] sm:$0xff]
    %v3603 = vld [vmem:[#allocation5 + $0x2a0] sm:$0xff]
    %v3604 = vld [vmem:[#allocation5 + $0x2a8] sm:$0xff]
    %v3605 = vld [vmem:[#allocation5 + $0x2b0] sm:$0xff]
    %v3606 = vld [vmem:[#allocation5 + $0x2b8] sm:$0xff]
    %v3607 = vld [vmem:[#allocation5 + $0x2c0] sm:$0xff]
    %v3608 = vld [vmem:[#allocation5 + $0x2c8] sm:$0xff]
    %v3609 = vld [vmem:[#allocation5 + $0x2d0] sm:$0xff]
    %v3610 = vld [vmem:[#allocation5 + $0x2d8] sm:$0xff]
    %v3611 = vld [vmem:[#allocation5 + $0x2e0] sm:$0xff]
    %v3612 = vld [vmem:[#allocation5 + $0x2e8] sm:$0xff]
    %v3613 = vld [vmem:[#allocation5 + $0x2f0] sm:$0xff]
    %v3614 = vld [vmem:[#allocation5 + $0x2f8] sm:$0xff]
    %v3615 = vld [vmem:[#allocation5 + $0x300] sm:$0xff]
    %v3616 = vld [vmem:[#allocation5 + $0x308] sm:$0xff]
    %v3617 = vld [vmem:[#allocation5 + $0x310] sm:$0xff]
    %v3618 = vld [vmem:[#allocation5 + $0x318] sm:$0xff]
    %v3619 = vld [vmem:[#allocation5 + $0x320] sm:$0xff]
    %v3620 = vld [vmem:[#allocation5 + $0x328] sm:$0xff]
    %v3621 = vld [vmem:[#allocation5 + $0x330] sm:$0xff]
    %v3622 = vld [vmem:[#allocation5 + $0x338] sm:$0xff]
    %v3623 = vld [vmem:[#allocation5 + $0x340] sm:$0xff]
    %v3624 = vld [vmem:[#allocation5 + $0x348] sm:$0xff]
    %v3625 = vld [vmem:[#allocation5 + $0x350] sm:$0xff]
    %v3626 = vld [vmem:[#allocation5 + $0x358] sm:$0xff]
    %v3627 = vld [vmem:[#allocation5 + $0x360] sm:$0xff]
    %v3628 = vld [vmem:[#allocation5 + $0x368] sm:$0xff]
    %v3629 = vld [vmem:[#allocation5 + $0x370] sm:$0xff]
    %v3630 = vld [vmem:[#allocation5 + $0x378] sm:$0xff]
    %v3631 = vld [vmem:[#allocation5 + $0x380] sm:$0xff]
    %v3632 = vld [vmem:[#allocation5 + $0x388] sm:$0xff]
    %v3633 = vld [vmem:[#allocation5 + $0x390] sm:$0xff]
    %v3634 = vld [vmem:[#allocation5 + $0x398] sm:$0xff]
    %v3635 = vld [vmem:[#allocation5 + $0x3a0] sm:$0xff]
    %v3636 = vld [vmem:[#allocation5 + $0x3a8] sm:$0xff]
    %v3637 = vld [vmem:[#allocation5 + $0x3b0] sm:$0xff]
    %v3638 = vld [vmem:[#allocation5 + $0x3b8] sm:$0xff]
    %v3639 = vld [vmem:[#allocation5 + $0x3c0] sm:$0xff]
    %v3640 = vld [vmem:[#allocation5 + $0x3c8] sm:$0xff]
    %v3641 = vld [vmem:[#allocation5 + $0x3d0] sm:$0xff]
    %v3642 = vld [vmem:[#allocation5 + $0x3d8] sm:$0xff]
    %v3643 = vld [vmem:[#allocation5 + $0x3e0] sm:$0xff]
    %v3644 = vld [vmem:[#allocation5 + $0x3e8] sm:$0xff]
    %v3645 = vld [vmem:[#allocation5 + $0x3f0] sm:$0xff]
    %v3646 = vld [vmem:[#allocation5 + $0x3f8] sm:$0xff]
    %v3647 = vpack.c.bf16 %v3460, %v3452
    %v3648 = vpack.c.bf16 %v3461, %v3453
    %v3649 = vpack.c.bf16 %v3462, %v3454
    %v3650 = vpack.c.bf16 %v3463, %v3455
    %v3651 = vpack.c.bf16 %v3464, %v3456
    %v3652 = vpack.c.bf16 %v3465, %v3457
    %v3653 = vpack.c.bf16 %v3466, %v3458
    %v3654 = vpack.c.bf16 %v3467, %v3459
    %v3655 = vpack.c.bf16 %v3476, %v3468
    %v3656 = vpack.c.bf16 %v3477, %v3469
    %v3657 = vpack.c.bf16 %v3478, %v3470
    %v3658 = vpack.c.bf16 %v3479, %v3471
    %v3659 = vpack.c.bf16 %v3480, %v3472
    %v3660 = vpack.c.bf16 %v3481, %v3473
    %v3661 = vpack.c.bf16 %v3482, %v3474
    %v3662 = vpack.c.bf16 %v3483, %v3475
    %v3663 = vpack.c.bf16 %v3492, %v3484
    %v3664 = vpack.c.bf16 %v3493, %v3485
    %v3665 = vpack.c.bf16 %v3494, %v3486
    %v3666 = vpack.c.bf16 %v3495, %v3487
    %v3667 = vpack.c.bf16 %v3496, %v3488
    %v3668 = vpack.c.bf16 %v3497, %v3489
    %v3669 = vpack.c.bf16 %v3498, %v3490
    %v3670 = vpack.c.bf16 %v3499, %v3491
    %v3671 = vpack.c.bf16 %v3508, %v3500
    %v3672 = vpack.c.bf16 %v3509, %v3501
    %v3673 = vpack.c.bf16 %v3510, %v3502
    %v3674 = vpack.c.bf16 %v3511, %v3503
    %v3675 = vpack.c.bf16 %v3512, %v3504
    %v3676 = vpack.c.bf16 %v3513, %v3505
    %v3677 = vpack.c.bf16 %v3514, %v3506
    %v3678 = vpack.c.bf16 %v3515, %v3507
    %3679 = vmatprep.subr.bf16.mxu0 %v3520
    %3680 = vmatpush1.bf16.msra.mxu0 %v3519
    %3681 = vmatprep.subr.bf16.mxu0 %v3522
    %3682 = vmatpush1.bf16.msra.mxu0 %v3521
    %3683 = vmatprep.subr.bf16.mxu0 %v3524
    %3684 = vmatpush1.bf16.msra.mxu0 %v3523
    %3685 = vmatprep.subr.bf16.mxu0 %v3526
    %3686 = vmatpush1.bf16.msra.mxu0 %v3525
    %3687 = vmatprep.subr.bf16.mxu0 %v3528
    %3688 = vmatpush1.bf16.msra.mxu0 %v3527
    %3689 = vmatprep.subr.bf16.mxu0 %v3530
    %3690 = vmatpush1.bf16.msra.mxu0 %v3529
    %3691 = vmatprep.subr.bf16.mxu0 %v3532
    %3692 = vmatpush1.bf16.msra.mxu0 %v3531
    %3693 = vmatprep.subr.bf16.mxu0 %v3534
    %3694 = vmatpush1.bf16.msra.mxu0 %v3533
    %3695 = vmatprep.subr.bf16.mxu0 %v3536
    %3696 = vmatpush1.bf16.msra.mxu0 %v3535
    %3697 = vmatprep.subr.bf16.mxu0 %v3538
    %3698 = vmatpush1.bf16.msra.mxu0 %v3537
    %3699 = vmatprep.subr.bf16.mxu0 %v3540
    %3700 = vmatpush1.bf16.msra.mxu0 %v3539
    %3701 = vmatprep.subr.bf16.mxu0 %v3542
    %3702 = vmatpush1.bf16.msra.mxu0 %v3541
    %3703 = vmatprep.subr.bf16.mxu0 %v3544
    %3704 = vmatpush1.bf16.msra.mxu0 %v3543
    %3705 = vmatprep.subr.bf16.mxu0 %v3546
    %3706 = vmatpush1.bf16.msra.mxu0 %v3545
    %3707 = vmatprep.subr.bf16.mxu0 %v3548
    %3708 = vmatpush1.bf16.msra.mxu0 %v3547
    %3709 = vmatprep.subr.bf16.mxu0 %v3550
    %3710 = vmatpush1.bf16.msra.mxu0 %v3549
    %3711 = vmatprep.mubr.bf16.mxu0 %v3648
    %3712 = vmatmul.mubr.bf16.gmra.mrb[0].mxu0 %v3647
    %v3713 = vpop.f32.mrb[0].mxu0
    %v3714 = vadd.f32 0.0, %v3713
    %v3715 = vpop.f32.mrb[0].mxu0
    %v3716 = vadd.f32 0.0, %v3715
    %v3717 = vpop.f32.mrb[0].mxu0
    %v3718 = vadd.f32 0.0, %v3717
    %v3719 = vpop.f32.mrb[0].mxu0
    %v3720 = vadd.f32 0.0, %v3719
    %3721 = vmatprep.mubr.bf16.mxu0 %v3656
    %3722 = vmatmul.mubr.bf16.gmra.mrb[0].mxu0 %v3655
    %v3723 = vpop.f32.mrb[0].mxu0
    %v3724 = vadd.f32 0.0, %v3723
    %v3725 = vpop.f32.mrb[0].mxu0
    %v3726 = vadd.f32 0.0, %v3725
    %v3727 = vpop.f32.mrb[0].mxu0
    %v3728 = vadd.f32 0.0, %v3727
    %v3729 = vpop.f32.mrb[0].mxu0
    %v3730 = vadd.f32 0.0, %v3729
    %3731 = vmatprep.mubr.bf16.mxu0 %v3664
    %3732 = vmatmul.mubr.bf16.gmra.mrb[0].mxu0 %v3663
    %v3733 = vpop.f32.mrb[0].mxu0
    %v3734 = vadd.f32 0.0, %v3733
    %v3735 = vpop.f32.mrb[0].mxu0
    %v3736 = vadd.f32 0.0, %v3735
    %v3737 = vpop.f32.mrb[0].mxu0
    %v3738 = vadd.f32 0.0, %v3737
    %v3739 = vpop.f32.mrb[0].mxu0
    %v3740 = vadd.f32 0.0, %v3739
    %3741 = vmatprep.mubr.bf16.mxu0 %v3672
    %3742 = vmatmul.mubr.bf16.gmra.mrb[0].mxu0 %v3671
    %v3743 = vpop.f32.mrb[0].mxu0
    %v3744 = vadd.f32 0.0, %v3743
    %v3745 = vpop.f32.mrb[0].mxu0
    %v3746 = vadd.f32 0.0, %v3745
    %v3747 = vpop.f32.mrb[0].mxu0
    %v3748 = vadd.f32 0.0, %v3747
    %v3749 = vpop.f32.mrb[0].mxu0
    %v3750 = vadd.f32 0.0, %v3749
    %3751 = vdwg.mxu0
    %3752 = vmatprep.subr.bf16.mxu0 %v3552
    %3753 = vmatpush1.bf16.msra.mxu0 %v3551
    %3754 = vmatprep.subr.bf16.mxu0 %v3554
    %3755 = vmatpush1.bf16.msra.mxu0 %v3553
    %3756 = vmatprep.subr.bf16.mxu0 %v3556
    %3757 = vmatpush1.bf16.msra.mxu0 %v3555
    %3758 = vmatprep.subr.bf16.mxu0 %v3558
    %3759 = vmatpush1.bf16.msra.mxu0 %v3557
    %3760 = vmatprep.subr.bf16.mxu0 %v3560
    %3761 = vmatpush1.bf16.msra.mxu0 %v3559
    %3762 = vmatprep.subr.bf16.mxu0 %v3562
    %3763 = vmatpush1.bf16.msra.mxu0 %v3561
    %3764 = vmatprep.subr.bf16.mxu0 %v3564
    %3765 = vmatpush1.bf16.msra.mxu0 %v3563
    %3766 = vmatprep.subr.bf16.mxu0 %v3566
    %3767 = vmatpush1.bf16.msra.mxu0 %v3565
    %3768 = vmatprep.subr.bf16.mxu0 %v3568
    %3769 = vmatpush1.bf16.msra.mxu0 %v3567
    %3770 = vmatprep.subr.bf16.mxu0 %v3570
    %3771 = vmatpush1.bf16.msra.mxu0 %v3569
    %3772 = vmatprep.subr.bf16.mxu0 %v3572
    %3773 = vmatpush1.bf16.msra.mxu0 %v3571
    %3774 = vmatprep.subr.bf16.mxu0 %v3574
    %3775 = vmatpush1.bf16.msra.mxu0 %v3573
    %3776 = vmatprep.subr.bf16.mxu0 %v3576
    %3777 = vmatpush1.bf16.msra.mxu0 %v3575
    %3778 = vmatprep.subr.bf16.mxu0 %v3578
    %3779 = vmatpush1.bf16.msra.mxu0 %v3577
    %3780 = vmatprep.subr.bf16.mxu0 %v3580
    %3781 = vmatpush1.bf16.msra.mxu0 %v3579
    %3782 = vmatprep.subr.bf16.mxu0 %v3582
    %3783 = vmatpush1.bf16.msra.mxu0 %v3581
    %3784 = vmatprep.mubr.bf16.mxu0 %v3650
    %3785 = vmatmul.mubr.bf16.gmra.mrb[0].mxu0 %v3649
    %v3786 = vpop.f32.mrb[0].mxu0
    %v3787 = vadd.f32 %v3714, %v3786
    %v3788 = vpop.f32.mrb[0].mxu0
    %v3789 = vadd.f32 %v3716, %v3788
    %v3790 = vpop.f32.mrb[0].mxu0
    %v3791 = vadd.f32 %v3718, %v3790
    %v3792 = vpop.f32.mrb[0].mxu0
    %v3793 = vadd.f32 %v3720, %v3792
    %3794 = vmatprep.mubr.bf16.mxu0 %v3658
    %3795 = vmatmul.mubr.bf16.gmra.mrb[0].mxu0 %v3657
    %v3796 = vpop.f32.mrb[0].mxu0
    %v3797 = vadd.f32 %v3724, %v3796
    %v3798 = vpop.f32.mrb[0].mxu0
    %v3799 = vadd.f32 %v3726, %v3798
    %v3800 = vpop.f32.mrb[0].mxu0
    %v3801 = vadd.f32 %v3728, %v3800
    %v3802 = vpop.f32.mrb[0].mxu0
    %v3803 = vadd.f32 %v3730, %v3802
    %3804 = vmatprep.mubr.bf16.mxu0 %v3666
    %3805 = vmatmul.mubr.bf16.gmra.mrb[0].mxu0 %v3665
    %v3806 = vpop.f32.mrb[0].mxu0
    %v3807 = vadd.f32 %v3734, %v3806
    %v3808 = vpop.f32.mrb[0].mxu0
    %v3809 = vadd.f32 %v3736, %v3808
    %v3810 = vpop.f32.mrb[0].mxu0
    %v3811 = vadd.f32 %v3738, %v3810
    %v3812 = vpop.f32.mrb[0].mxu0
    %v3813 = vadd.f32 %v3740, %v3812
    %3814 = vmatprep.mubr.bf16.mxu0 %v3674
    %3815 = vmatmul.mubr.bf16.gmra.mrb[0].mxu0 %v3673
    %v3816 = vpop.f32.mrb[0].mxu0
    %v3817 = vadd.f32 %v3744, %v3816
    %v3818 = vpop.f32.mrb[0].mxu0
    %v3819 = vadd.f32 %v3746, %v3818
    %v3820 = vpop.f32.mrb[0].mxu0
    %v3821 = vadd.f32 %v3748, %v3820
    %v3822 = vpop.f32.mrb[0].mxu0
    %v3823 = vadd.f32 %v3750, %v3822
    %3824 = vdwg.mxu0
    %3825 = vmatprep.subr.bf16.mxu0 %v3584
    %3826 = vmatpush1.bf16.msra.mxu0 %v3583
    %3827 = vmatprep.subr.bf16.mxu0 %v3586
    %3828 = vmatpush1.bf16.msra.mxu0 %v3585
    %3829 = vmatprep.subr.bf16.mxu0 %v3588
    %3830 = vmatpush1.bf16.msra.mxu0 %v3587
    %3831 = vmatprep.subr.bf16.mxu0 %v3590
    %3832 = vmatpush1.bf16.msra.mxu0 %v3589
    %3833 = vmatprep.subr.bf16.mxu0 %v3592
    %3834 = vmatpush1.bf16.msra.mxu0 %v3591
    %3835 = vmatprep.subr.bf16.mxu0 %v3594
    %3836 = vmatpush1.bf16.msra.mxu0 %v3593
    %3837 = vmatprep.subr.bf16.mxu0 %v3596
    %3838 = vmatpush1.bf16.msra.mxu0 %v3595
    %3839 = vmatprep.subr.bf16.mxu0 %v3598
    %3840 = vmatpush1.bf16.msra.mxu0 %v3597
    %3841 = vmatprep.subr.bf16.mxu0 %v3600
    %3842 = vmatpush1.bf16.msra.mxu0 %v3599
    %3843 = vmatprep.subr.bf16.mxu0 %v3602
    %3844 = vmatpush1.bf16.msra.mxu0 %v3601
    %3845 = vmatprep.subr.bf16.mxu0 %v3604
    %3846 = vmatpush1.bf16.msra.mxu0 %v3603
    %3847 = vmatprep.subr.bf16.mxu0 %v3606
    %3848 = vmatpush1.bf16.msra.mxu0 %v3605
    %3849 = vmatprep.subr.bf16.mxu0 %v3608
    %3850 = vmatpush1.bf16.msra.mxu0 %v3607
    %3851 = vmatprep.subr.bf16.mxu0 %v3610
    %3852 = vmatpush1.bf16.msra.mxu0 %v3609
    %3853 = vmatprep.subr.bf16.mxu0 %v3612
    %3854 = vmatpush1.bf16.msra.mxu0 %v3611
    %3855 = vmatprep.subr.bf16.mxu0 %v3614
    %3856 = vmatpush1.bf16.msra.mxu0 %v3613
    %3857 = vmatprep.mubr.bf16.mxu0 %v3652
    %3858 = vmatmul.mubr.bf16.gmra.mrb[0].mxu0 %v3651
    %v3859 = vpop.f32.mrb[0].mxu0
    %v3860 = vadd.f32 %v3787, %v3859
    %v3861 = vpop.f32.mrb[0].mxu0
    %v3862 = vadd.f32 %v3789, %v3861
    %v3863 = vpop.f32.mrb[0].mxu0
    %v3864 = vadd.f32 %v3791, %v3863
    %v3865 = vpop.f32.mrb[0].mxu0
    %v3866 = vadd.f32 %v3793, %v3865
    %3867 = vmatprep.mubr.bf16.mxu0 %v3660
    %3868 = vmatmul.mubr.bf16.gmra.mrb[0].mxu0 %v3659
    %v3869 = vpop.f32.mrb[0].mxu0
    %v3870 = vadd.f32 %v3797, %v3869
    %v3871 = vpop.f32.mrb[0].mxu0
    %v3872 = vadd.f32 %v3799, %v3871
    %v3873 = vpop.f32.mrb[0].mxu0
    %v3874 = vadd.f32 %v3801, %v3873
    %v3875 = vpop.f32.mrb[0].mxu0
    %v3876 = vadd.f32 %v3803, %v3875
    %3877 = vmatprep.mubr.bf16.mxu0 %v3668
    %3878 = vmatmul.mubr.bf16.gmra.mrb[0].mxu0 %v3667
    %v3879 = vpop.f32.mrb[0].mxu0
    %v3880 = vadd.f32 %v3807, %v3879
    %v3881 = vpop.f32.mrb[0].mxu0
    %v3882 = vadd.f32 %v3809, %v3881
    %v3883 = vpop.f32.mrb[0].mxu0
    %v3884 = vadd.f32 %v3811, %v3883
    %v3885 = vpop.f32.mrb[0].mxu0
    %v3886 = vadd.f32 %v3813, %v3885
    %3887 = vmatprep.mubr.bf16.mxu0 %v3676
    %3888 = vmatmul.mubr.bf16.gmra.mrb[0].mxu0 %v3675
    %v3889 = vpop.f32.mrb[0].mxu0
    %v3890 = vadd.f32 %v3817, %v3889
    %v3891 = vpop.f32.mrb[0].mxu0
    %v3892 = vadd.f32 %v3819, %v3891
    %v3893 = vpop.f32.mrb[0].mxu0
    %v3894 = vadd.f32 %v3821, %v3893
    %v3895 = vpop.f32.mrb[0].mxu0
    %v3896 = vadd.f32 %v3823, %v3895
    %3897 = vdwg.mxu0
    %3898 = vmatprep.subr.bf16.mxu0 %v3616
    %3899 = vmatpush1.bf16.msra.mxu0 %v3615
    %3900 = vmatprep.subr.bf16.mxu0 %v3618
    %3901 = vmatpush1.bf16.msra.mxu0 %v3617
    %3902 = vmatprep.subr.bf16.mxu0 %v3620
    %3903 = vmatpush1.bf16.msra.mxu0 %v3619
    %3904 = vmatprep.subr.bf16.mxu0 %v3622
    %3905 = vmatpush1.bf16.msra.mxu0 %v3621
    %3906 = vmatprep.subr.bf16.mxu0 %v3624
    %3907 = vmatpush1.bf16.msra.mxu0 %v3623
    %3908 = vmatprep.subr.bf16.mxu0 %v3626
    %3909 = vmatpush1.bf16.msra.mxu0 %v3625
    %3910 = vmatprep.subr.bf16.mxu0 %v3628
    %3911 = vmatpush1.bf16.msra.mxu0 %v3627
    %3912 = vmatprep.subr.bf16.mxu0 %v3630
    %3913 = vmatpush1.bf16.msra.mxu0 %v3629
    %3914 = vmatprep.subr.bf16.mxu0 %v3632
    %3915 = vmatpush1.bf16.msra.mxu0 %v3631
    %3916 = vmatprep.subr.bf16.mxu0 %v3634
    %3917 = vmatpush1.bf16.msra.mxu0 %v3633
    %3918 = vmatprep.subr.bf16.mxu0 %v3636
    %3919 = vmatpush1.bf16.msra.mxu0 %v3635
    %3920 = vmatprep.subr.bf16.mxu0 %v3638
    %3921 = vmatpush1.bf16.msra.mxu0 %v3637
    %3922 = vmatprep.subr.bf16.mxu0 %v3640
    %3923 = vmatpush1.bf16.msra.mxu0 %v3639
    %3924 = vmatprep.subr.bf16.mxu0 %v3642
    %3925 = vmatpush1.bf16.msra.mxu0 %v3641
    %3926 = vmatprep.subr.bf16.mxu0 %v3644
    %3927 = vmatpush1.bf16.msra.mxu0 %v3643
    %3928 = vmatprep.subr.bf16.mxu0 %v3646
    %3929 = vmatpush1.bf16.msra.mxu0 %v3645
    %3930 = vmatprep.mubr.bf16.mxu0 %v3654
    %3931 = vmatmul.mubr.bf16.gmra.mrb[0].mxu0 %v3653
    %v3932 = vpop.f32.mrb[0].mxu0
    %v3933 = vadd.f32 %v3860, %v3932
    %v3934 = vpop.f32.mrb[0].mxu0
    %v3935 = vadd.f32 %v3862, %v3934
    %v3936 = vpop.f32.mrb[0].mxu0
    %v3937 = vadd.f32 %v3864, %v3936
    %v3938 = vpop.f32.mrb[0].mxu0
    %v3939 = vadd.f32 %v3866, %v3938
    %3940 = vmatprep.mubr.bf16.mxu0 %v3662
    %3941 = vmatmul.mubr.bf16.gmra.mrb[0].mxu0 %v3661
    %v3942 = vpop.f32.mrb[0].mxu0
    %v3943 = vadd.f32 %v3870, %v3942
    %v3944 = vpop.f32.mrb[0].mxu0
    %v3945 = vadd.f32 %v3872, %v3944
    %v3946 = vpop.f32.mrb[0].mxu0
    %v3947 = vadd.f32 %v3874, %v3946
    %v3948 = vpop.f32.mrb[0].mxu0
    %v3949 = vadd.f32 %v3876, %v3948
    %3950 = vmatprep.mubr.bf16.mxu0 %v3670
    %3951 = vmatmul.mubr.bf16.gmra.mrb[0].mxu0 %v3669
    %v3952 = vpop.f32.mrb[0].mxu0
    %v3953 = vadd.f32 %v3880, %v3952
    %v3954 = vpop.f32.mrb[0].mxu0
    %v3955 = vadd.f32 %v3882, %v3954
    %v3956 = vpop.f32.mrb[0].mxu0
    %v3957 = vadd.f32 %v3884, %v3956
    %v3958 = vpop.f32.mrb[0].mxu0
    %v3959 = vadd.f32 %v3886, %v3958
    %3960 = vmatprep.mubr.bf16.mxu0 %v3678
    %3961 = vmatmul.mubr.bf16.gmra.mrb[0].mxu0 %v3677
    %v3962 = vpop.f32.mrb[0].mxu0
    %v3963 = vadd.f32 %v3890, %v3962
    %v3964 = vpop.f32.mrb[0].mxu0
    %v3965 = vadd.f32 %v3892, %v3964
    %v3966 = vpop.f32.mrb[0].mxu0
    %v3967 = vadd.f32 %v3894, %v3966
    %v3968 = vpop.f32.mrb[0].mxu0
    %v3969 = vadd.f32 %v3896, %v3968
    %3970 = vdwg.mxu0
    %v3971 = vld [vmem:[%s1] sm:$0xff]
    %v3972 = vld [vmem:[%s1 + $0x8] sm:$0xff]
    %v3973 = vld [vmem:[%s1 + $0x10] sm:$0xff]
    %v3974 = vld [vmem:[%s1 + $0x18] sm:$0xff]
    %v3975 = vld [vmem:[%s1 + $0x20] sm:$0xff]
    %v3976 = vld [vmem:[%s1 + $0x28] sm:$0xff]
    %v3977 = vld [vmem:[%s1 + $0x30] sm:$0xff]
    %v3978 = vld [vmem:[%s1 + $0x38] sm:$0xff]
    %v3979 = vlaneseq
    %v3980 = vand.u32 %v3979, 127
    %3981 = vset.pattern.permute.xlu0 0
    %3982 = vperm.xlu0 %3981, %v3971
    %v3983 = vpop.permute.xlu0 %3982
    %3984 = vset.pattern.permute.xlu0 0
    %3985 = vperm.xlu0 %3984, %v3972
    %v3986 = vpop.permute.xlu0 %3985
    %3987 = vset.pattern.permute.xlu0 0
    %3988 = vperm.xlu0 %3987, %v3973
    %v3989 = vpop.permute.xlu0 %3988
    %3990 = vset.pattern.permute.xlu0 0
    %3991 = vperm.xlu0 %3990, %v3974
    %v3992 = vpop.permute.xlu0 %3991
    %3993 = vset.pattern.permute.xlu0 0
    %3994 = vperm.xlu0 %3993, %v3975
    %v3995 = vpop.permute.xlu0 %3994
    %3996 = vset.pattern.permute.xlu0 0
    %3997 = vperm.xlu0 %3996, %v3976
    %v3998 = vpop.permute.xlu0 %3997
    %3999 = vset.pattern.permute.xlu0 0
    %4000 = vperm.xlu0 %3999, %v3977
    %v4001 = vpop.permute.xlu0 %4000
    %4002 = vset.pattern.permute.xlu0 0
    %4003 = vperm.xlu0 %4002, %v3978
    %v4004 = vpop.permute.xlu0 %4003
    %vm4005 = vcmp.eq.s32.totalorder %v3980, %v3983
    %vm4006 = vcmp.eq.s32.totalorder %v3980, %v3986
    %vm4007 = vcmp.eq.s32.totalorder %v3980, %v3989
    %vm4008 = vcmp.eq.s32.totalorder %v3980, %v3992
    %vm4009 = vcmp.eq.s32.totalorder %v3980, %v3995
    %vm4010 = vcmp.eq.s32.totalorder %v3980, %v3998
    %vm4011 = vcmp.eq.s32.totalorder %v3980, %v4001
    %vm4012 = vcmp.eq.s32.totalorder %v3980, %v4004
    %v4013 = vsel %vm4005, 1, 0
    %v4014 = vsel %vm4006, 1, 0
    %v4015 = vsel %vm4007, 1, 0
    %v4016 = vsel %vm4008, 1, 0
    %v4017 = vsel %vm4009, 1, 0
    %v4018 = vsel %vm4010, 1, 0
    %v4019 = vsel %vm4011, 1, 0
    %v4020 = vsel %vm4012, 1, 0
    %v4021 = vcvt.s32.f32 %v4013
    %v4022 = vcvt.s32.f32 %v4014
    %v4023 = vcvt.s32.f32 %v4015
    %v4024 = vcvt.s32.f32 %v4016
    %v4025 = vcvt.s32.f32 %v4017
    %v4026 = vcvt.s32.f32 %v4018
    %v4027 = vcvt.s32.f32 %v4019
    %v4028 = vcvt.s32.f32 %v4020
    %v4029 = vld [vmem:[#allocation7 + $0x1b0] sm:$0xff]
    %v4030 = vld [vmem:[#allocation7 + $0x1b8] sm:$0xff]
    %v4031 = vld [vmem:[#allocation7 + $0x1c0] sm:$0xff]
    %v4032 = vld [vmem:[#allocation7 + $0x1c8] sm:$0xff]
    %v4033 = vld [vmem:[#allocation7 + $0x1d0] sm:$0xff]
    %v4034 = vld [vmem:[#allocation7 + $0x1d8] sm:$0xff]
    %v4035 = vld [vmem:[#allocation7 + $0x1e0] sm:$0xff]
    %v4036 = vld [vmem:[#allocation7 + $0x1e8] sm:$0xff]
    %v4037 = vld [vmem:[#allocation7 + $0x1f0] sm:$0xff]
    %v4038 = vld [vmem:[#allocation7 + $0x1f8] sm:$0xff]
    %v4039 = vld [vmem:[#allocation7 + $0x200] sm:$0xff]
    %v4040 = vld [vmem:[#allocation7 + $0x208] sm:$0xff]
    %v4041 = vld [vmem:[#allocation7 + $0x210] sm:$0xff]
    %v4042 = vld [vmem:[#allocation7 + $0x218] sm:$0xff]
    %v4043 = vld [vmem:[#allocation7 + $0x220] sm:$0xff]
    %v4044 = vld [vmem:[#allocation7 + $0x228] sm:$0xff]
    %v4061 = vunpack.c.l.b16 %v4029
    %v4062 = vunpack.c.h.b16 %v4029
    %v4063 = vunpack.c.l.b16 %v4030
    %v4064 = vunpack.c.h.b16 %v4030
    %v4065 = vunpack.c.l.b16 %v4031
    %v4066 = vunpack.c.h.b16 %v4031
    %v4067 = vunpack.c.l.b16 %v4032
    %v4068 = vunpack.c.h.b16 %v4032
    %v4069 = vunpack.c.l.b16 %v4033
    %v4070 = vunpack.c.h.b16 %v4033
    %v4071 = vunpack.c.l.b16 %v4034
    %v4072 = vunpack.c.h.b16 %v4034
    %v4073 = vunpack.c.l.b16 %v4035
    %v4074 = vunpack.c.h.b16 %v4035
    %v4075 = vunpack.c.l.b16 %v4036
    %v4076 = vunpack.c.h.b16 %v4036
    %v4077 = vunpack.c.l.b16 %v4037
    %v4078 = vunpack.c.h.b16 %v4037
    %v4079 = vunpack.c.l.b16 %v4038
    %v4080 = vunpack.c.h.b16 %v4038
    %v4081 = vunpack.c.l.b16 %v4039
    %v4082 = vunpack.c.h.b16 %v4039
    %v4083 = vunpack.c.l.b16 %v4040
    %v4084 = vunpack.c.h.b16 %v4040
    %v4085 = vunpack.c.l.b16 %v4041
    %v4086 = vunpack.c.h.b16 %v4041
    %v4087 = vunpack.c.l.b16 %v4042
    %v4088 = vunpack.c.h.b16 %v4042
    %v4089 = vunpack.c.l.b16 %v4043
    %v4090 = vunpack.c.h.b16 %v4043
    %v4091 = vunpack.c.l.b16 %v4044
    %v4092 = vunpack.c.h.b16 %v4044
    %v4093 = vpack.c.b16 %v4063, %v4061
    %v4094 = vpack.c.b16 %v4064, %v4062
    %v4095 = vpack.c.b16 %v4067, %v4065
    %v4096 = vpack.c.b16 %v4068, %v4066
    %v4097 = vpack.c.b16 %v4071, %v4069
    %v4098 = vpack.c.b16 %v4072, %v4070
    %v4099 = vpack.c.b16 %v4075, %v4073
    %v4100 = vpack.c.b16 %v4076, %v4074
    %v4101 = vpack.c.b16 %v4079, %v4077
    %v4102 = vpack.c.b16 %v4080, %v4078
    %v4103 = vpack.c.b16 %v4083, %v4081
    %v4104 = vpack.c.b16 %v4084, %v4082
    %v4105 = vpack.c.b16 %v4087, %v4085
    %v4106 = vpack.c.b16 %v4088, %v4086
    %v4107 = vpack.c.b16 %v4091, %v4089
    %v4108 = vpack.c.b16 %v4092, %v4090
    %4125 = vmatprep.subr.bf16.mxu0 %v4094
    %4126 = vmatpush1.bf16.msra.mxu0 %v4093
    %4127 = vmatprep.subr.bf16.mxu0 %v4096
    %4128 = vmatpush1.bf16.msra.mxu0 %v4095
    %4129 = vmatprep.subr.bf16.mxu0 %v4098
    %4130 = vmatpush1.bf16.msra.mxu0 %v4097
    %4131 = vmatprep.subr.bf16.mxu0 %v4100
    %4132 = vmatpush1.bf16.msra.mxu0 %v4099
    %4133 = vmatprep.subr.bf16.mxu0 %v4102
    %4134 = vmatpush1.bf16.msra.mxu0 %v4101
    %4135 = vmatprep.subr.bf16.mxu0 %v4104
    %4136 = vmatpush1.bf16.msra.mxu0 %v4103
    %4137 = vmatprep.subr.bf16.mxu0 %v4106
    %4138 = vmatpush1.bf16.msra.mxu0 %v4105
    %4139 = vmatprep.subr.bf16.mxu0 %v4108
    %4140 = vmatpush1.bf16.msra.mxu0 %v4107
    %4141 = vmatprep.subr.bf16.mxu0 0
    %4142 = vmatpush1.bf16.msra.mxu0 0
    %4143 = vmatprep.subr.bf16.mxu0 0
    %4144 = vmatpush1.bf16.msra.mxu0 0
    %4145 = vmatprep.subr.bf16.mxu0 0
    %4146 = vmatpush1.bf16.msra.mxu0 0
    %4147 = vmatprep.subr.bf16.mxu0 0
    %4148 = vmatpush1.bf16.msra.mxu0 0
    %4149 = vmatprep.subr.bf16.mxu0 0
    %4150 = vmatpush1.bf16.msra.mxu0 0
    %4151 = vmatprep.subr.bf16.mxu0 0
    %4152 = vmatpush1.bf16.msra.mxu0 0
    %4153 = vmatprep.subr.bf16.mxu0 0
    %4154 = vmatpush1.bf16.msra.mxu0 0
    %4155 = vmatprep.subr.bf16.mxu0 0
    %4156 = vmatpush1.bf16.msra.mxu0 0
    %4157 = vmatprep.mubr.bf16.mxu0 0
    %4158 = vmatmul.mubr.bf16.gmra.mrb[0].mxu0 %v757
    %v4159 = vpop.f32.mrb[0].mxu0
    %v4160 = vadd.f32 0.0, %v4159
    %v4161 = vpop.f32.mrb[0].mxu0
    %v4162 = vadd.f32 0.0, %v4161
    %v4163 = vpop.f32.mrb[0].mxu0
    %v4164 = vadd.f32 0.0, %v4163
    %v4165 = vpop.f32.mrb[0].mxu0
    %v4166 = vadd.f32 0.0, %v4165
    %4167 = vmatprep.mubr.bf16.mxu0 0
    %4168 = vmatmul.mubr.bf16.gmra.mrb[0].mxu0 %v758
    %v4169 = vpop.f32.mrb[0].mxu0
    %v4170 = vadd.f32 0.0, %v4169
    %v4171 = vpop.f32.mrb[0].mxu0
    %v4172 = vadd.f32 0.0, %v4171
    %v4173 = vpop.f32.mrb[0].mxu0
    %v4174 = vadd.f32 0.0, %v4173
    %v4175 = vpop.f32.mrb[0].mxu0
    %v4176 = vadd.f32 0.0, %v4175
    %4177 = vmatprep.mubr.bf16.mxu0 0
    %4178 = vmatmul.mubr.bf16.gmra.mrb[0].mxu0 %v759
    %v4179 = vpop.f32.mrb[0].mxu0
    %v4180 = vadd.f32 0.0, %v4179
    %v4181 = vpop.f32.mrb[0].mxu0
    %v4182 = vadd.f32 0.0, %v4181
    %v4183 = vpop.f32.mrb[0].mxu0
    %v4184 = vadd.f32 0.0, %v4183
    %v4185 = vpop.f32.mrb[0].mxu0
    %v4186 = vadd.f32 0.0, %v4185
    %4187 = vmatprep.mubr.bf16.mxu0 0
    %4188 = vmatmul.mubr.bf16.gmra.mrb[0].mxu0 %v760
    %v4189 = vpop.f32.mrb[0].mxu0
    %v4190 = vadd.f32 0.0, %v4189
    %v4191 = vpop.f32.mrb[0].mxu0
    %v4192 = vadd.f32 0.0, %v4191
    %v4193 = vpop.f32.mrb[0].mxu0
    %v4194 = vadd.f32 0.0, %v4193
    %v4195 = vpop.f32.mrb[0].mxu0
    %v4196 = vadd.f32 0.0, %v4195
    %4197 = vdwg.mxu0
    %v4199 = vsel %vm262, %v4021, 0
    %v4202 = vsel %vm262, %v4022, 0
    %v4205 = vsel %vm262, %v4023, 0
    %v4208 = vsel %vm262, %v4024, 0
    %v4211 = vsel %vm262, %v4025, 0
    %v4214 = vsel %vm262, %v4026, 0
    %v4217 = vsel %vm262, %v4027, 0
    %v4220 = vsel %vm262, %v4028, 0
    %4222 = vmatprep.subr.mxu0 %v3935
    %4223 = vmatpush1.msra.mxu0 %v3933
    %4224 = vmatprep.subr.mxu0 %v3939
    %4225 = vmatpush1.msra.mxu0 %v3937
    %4226 = vmatprep.subr.mxu0 %v3945
    %4227 = vmatpush1.msra.mxu0 %v3943
    %4228 = vmatprep.subr.mxu0 %v3949
    %4229 = vmatpush1.msra.mxu0 %v3947
    %4230 = vmatprep.subr.mxu0 %v3955
    %4231 = vmatpush1.msra.mxu0 %v3953
    %4232 = vmatprep.subr.mxu0 %v3959
    %4233 = vmatpush1.msra.mxu0 %v3957
    %4234 = vmatprep.subr.mxu0 %v3965
    %4235 = vmatpush1.msra.mxu0 %v3963
    %4236 = vmatprep.subr.mxu0 %v3969
    %4237 = vmatpush1.msra.mxu0 %v3967
    %4238 = vmatprep.subr.mxu0 0.0
    %4239 = vmatpush1.msra.mxu0 0.0
    %4240 = vmatprep.subr.mxu0 0.0
    %4241 = vmatpush1.msra.mxu0 0.0
    %4242 = vmatprep.subr.mxu0 0.0
    %4243 = vmatpush1.msra.mxu0 0.0
    %4244 = vmatprep.subr.mxu0 0.0
    %4245 = vmatpush1.msra.mxu0 0.0
    %4246 = vmatprep.subr.mxu0 0.0
    %4247 = vmatpush1.msra.mxu0 0.0
    %4248 = vmatprep.subr.mxu0 0.0
    %4249 = vmatpush1.msra.mxu0 0.0
    %4250 = vmatprep.subr.mxu0 0.0
    %4251 = vmatpush1.msra.mxu0 0.0
    %4252 = vmatprep.subr.mxu0 0.0
    %4253 = vmatpush1.msra.mxu0 0.0
    %4254 = vmatprep.subr.mxu0 0.0
    %4255 = vmatpush1.msra.mxu0 0.0
    %4256 = vmatprep.subr.mxu0 0.0
    %4257 = vmatpush1.msra.mxu0 0.0
    %4258 = vmatprep.subr.mxu0 0.0
    %4259 = vmatpush1.msra.mxu0 0.0
    %4260 = vmatprep.subr.mxu0 0.0
    %4261 = vmatpush1.msra.mxu0 0.0
    %4262 = vmatprep.subr.mxu0 0.0
    %4263 = vmatpush1.msra.mxu0 0.0
    %4264 = vmatprep.subr.mxu0 0.0
    %4265 = vmatpush1.msra.mxu0 0.0
    %4266 = vmatprep.subr.mxu0 0.0
    %4267 = vmatpush1.msra.mxu0 0.0
    %4268 = vmatprep.subr.mxu0 0.0
    %4269 = vmatpush1.msra.mxu0 0.0
    %4270 = vmatprep.subr.mxu0 0.0
    %4271 = vmatpush1.msra.mxu0 0.0
    %4272 = vmatprep.subr.mxu0 0.0
    %4273 = vmatpush1.msra.mxu0 0.0
    %4274 = vmatprep.subr.mxu0 0.0
    %4275 = vmatpush1.msra.mxu0 0.0
    %4276 = vmatprep.subr.mxu0 0.0
    %4277 = vmatpush1.msra.mxu0 0.0
    %4278 = vmatprep.subr.mxu0 0.0
    %4279 = vmatpush1.msra.mxu0 0.0
    %4280 = vmatprep.subr.mxu0 0.0
    %4281 = vmatpush1.msra.mxu0 0.0
    %4282 = vmatprep.subr.mxu0 0.0
    %4283 = vmatpush1.msra.mxu0 0.0
    %4284 = vmatprep.subr.mxu0 0.0
    %4285 = vmatpush1.msra.mxu0 0.0
    %4286 = vmatprep.mubr.f32.mxu0 0.0
    %4287 = vmatmul.mubr.f32.gmra.mrb[0].mxu0 %v4199
    %v4288 = vpop.f32.mrb[0].mxu0
    %v4289 = vadd.f32 %v4160, %v4288
    %v4290 = vpop.f32.mrb[0].mxu0
    %v4291 = vadd.f32 %v4162, %v4290
    %4292 = vmatprep.mubr.f32.mxu0 0.0
    %4293 = vmatmul.mubr.f32.gmra.mrb[0].mxu0 %v4202
    %v4294 = vpop.f32.mrb[0].mxu0
    %v4295 = vadd.f32 %v4164, %v4294
    %v4296 = vpop.f32.mrb[0].mxu0
    %v4297 = vadd.f32 %v4166, %v4296
    %4298 = vmatprep.mubr.f32.mxu0 0.0
    %4299 = vmatmul.mubr.f32.gmra.mrb[0].mxu0 %v4205
    %v4300 = vpop.f32.mrb[0].mxu0
    %v4301 = vadd.f32 %v4170, %v4300
    %v4302 = vpop.f32.mrb[0].mxu0
    %v4303 = vadd.f32 %v4172, %v4302
    %4304 = vmatprep.mubr.f32.mxu0 0.0
    %4305 = vmatmul.mubr.f32.gmra.mrb[0].mxu0 %v4208
    %v4306 = vpop.f32.mrb[0].mxu0
    %v4307 = vadd.f32 %v4174, %v4306
    %v4308 = vpop.f32.mrb[0].mxu0
    %v4309 = vadd.f32 %v4176, %v4308
    %4310 = vmatprep.mubr.f32.mxu0 0.0
    %4311 = vmatmul.mubr.f32.gmra.mrb[0].mxu0 %v4211
    %v4312 = vpop.f32.mrb[0].mxu0
    %v4313 = vadd.f32 %v4180, %v4312
    %v4314 = vpop.f32.mrb[0].mxu0
    %v4315 = vadd.f32 %v4182, %v4314
    %4316 = vmatprep.mubr.f32.mxu0 0.0
    %4317 = vmatmul.mubr.f32.gmra.mrb[0].mxu0 %v4214
    %v4318 = vpop.f32.mrb[0].mxu0
    %v4319 = vadd.f32 %v4184, %v4318
    %v4320 = vpop.f32.mrb[0].mxu0
    %v4321 = vadd.f32 %v4186, %v4320
    %4322 = vmatprep.mubr.f32.mxu0 0.0
    %4323 = vmatmul.mubr.f32.gmra.mrb[0].mxu0 %v4217
    %v4324 = vpop.f32.mrb[0].mxu0
    %v4325 = vadd.f32 %v4190, %v4324
    %v4326 = vpop.f32.mrb[0].mxu0
    %v4327 = vadd.f32 %v4192, %v4326
    %4328 = vmatprep.mubr.f32.mxu0 0.0
    %4329 = vmatmul.mubr.f32.gmra.mrb[0].mxu0 %v4220
    %v4330 = vpop.f32.mrb[0].mxu0
    %v4331 = vadd.f32 %v4194, %v4330
    %v4332 = vpop.f32.mrb[0].mxu0
    %v4333 = vadd.f32 %v4196, %v4332
    %4334 = vdwg.mxu0
    %v4335 = vadd.f32 %v4289, %v4295
    %v4336 = vadd.f32 %v4335, %v4301
    %v4337 = vadd.f32 %v4336, %v4307
    %v4338 = vadd.f32 %v4337, %v4313
    %v4339 = vadd.f32 %v4338, %v4319
    %v4340 = vadd.f32 %v4339, %v4325
    %v4341 = vadd.f32 %v4340, %v4331
    %v4342 = vrot.slane %v4341, 4
    %v4343 = vadd.f32 %v4341, %v4342
    %v4344 = vrot.slane %v4343, 2
    %v4345 = vadd.f32 %v4343, %v4344
    %v4346 = vrot.slane %v4345, 1
    %v4347 = vadd.f32 %v4345, %v4346
    %v4348 = vadd.f32 %v4291, %v4297
    %v4349 = vadd.f32 %v4348, %v4303
    %v4350 = vadd.f32 %v4349, %v4309
    %v4351 = vadd.f32 %v4350, %v4315
    %v4352 = vadd.f32 %v4351, %v4321
    %v4353 = vadd.f32 %v4352, %v4327
    %v4354 = vadd.f32 %v4353, %v4333
    %v4355 = vrot.slane %v4354, 4
    %v4356 = vadd.f32 %v4354, %v4355
    %v4357 = vrot.slane %v4356, 2
    %v4358 = vadd.f32 %v4356, %v4357
    %v4359 = vrot.slane %v4358, 1
    %v4360 = vadd.f32 %v4358, %v4359
    %v4361 = vmul.f32 %v4347, %v284
    %v4362 = vmul.f32 %v4360, %v284
    %v4363 = vsub.f32 %v4289, %v4361
    %v4364 = vsub.f32 %v4291, %v4362
    %v4365 = vsub.f32 %v4295, %v4361
    %v4366 = vsub.f32 %v4297, %v4362
    %v4367 = vsub.f32 %v4301, %v4361
    %v4368 = vsub.f32 %v4303, %v4362
    %v4369 = vsub.f32 %v4307, %v4361
    %v4370 = vsub.f32 %v4309, %v4362
    %v4371 = vsub.f32 %v4313, %v4361
    %v4372 = vsub.f32 %v4315, %v4362
    %v4373 = vsub.f32 %v4319, %v4361
    %v4374 = vsub.f32 %v4321, %v4362
    %v4375 = vsub.f32 %v4325, %v4361
    %v4376 = vsub.f32 %v4327, %v4362
    %v4377 = vsub.f32 %v4331, %v4361
    %v4378 = vsub.f32 %v4333, %v4362
    %v4379 = vmul.f32 %v4363, %v4363
    %v4380 = vmul.f32 %v4364, %v4364
    %v4381 = vmul.f32 %v4365, %v4365
    %v4382 = vmul.f32 %v4366, %v4366
    %v4383 = vmul.f32 %v4367, %v4367
    %v4384 = vmul.f32 %v4368, %v4368
    %v4385 = vmul.f32 %v4369, %v4369
    %v4386 = vmul.f32 %v4370, %v4370
    %v4387 = vmul.f32 %v4371, %v4371
    %v4388 = vmul.f32 %v4372, %v4372
    %v4389 = vmul.f32 %v4373, %v4373
    %v4390 = vmul.f32 %v4374, %v4374
    %v4391 = vmul.f32 %v4375, %v4375
    %v4392 = vmul.f32 %v4376, %v4376
    %v4393 = vmul.f32 %v4377, %v4377
    %v4394 = vmul.f32 %v4378, %v4378
    %v4395 = vadd.f32 %v4379, %v4381
    %v4396 = vadd.f32 %v4395, %v4383
    %v4397 = vadd.f32 %v4396, %v4385
    %v4398 = vadd.f32 %v4397, %v4387
    %v4399 = vadd.f32 %v4398, %v4389
    %v4400 = vadd.f32 %v4399, %v4391
    %v4401 = vadd.f32 %v4400, %v4393
    %v4402 = vrot.slane %v4401, 4
    %v4403 = vadd.f32 %v4401, %v4402
    %v4404 = vrot.slane %v4403, 2
    %v4405 = vadd.f32 %v4403, %v4404
    %v4406 = vrot.slane %v4405, 1
    %v4407 = vadd.f32 %v4405, %v4406
    %v4408 = vadd.f32 %v4380, %v4382
    %v4409 = vadd.f32 %v4408, %v4384
    %v4410 = vadd.f32 %v4409, %v4386
    %v4411 = vadd.f32 %v4410, %v4388
    %v4412 = vadd.f32 %v4411, %v4390
    %v4413 = vadd.f32 %v4412, %v4392
    %v4414 = vadd.f32 %v4413, %v4394
    %v4415 = vrot.slane %v4414, 4
    %v4416 = vadd.f32 %v4414, %v4415
    %v4417 = vrot.slane %v4416, 2
    %v4418 = vadd.f32 %v4416, %v4417
    %v4419 = vrot.slane %v4418, 1
    %v4420 = vadd.f32 %v4418, %v4419
    %v4421 = vmul.f32 %v4407, %v284
    %v4422 = vmul.f32 %v4420, %v284
    %s4423 = scalar_lea.vmem [#allocation9], 128
    %v4424 = vld [vmem:[%s4423] ss:$8 sm:$0x3]
    %v4425 = vadd.f32 %v4421, 1e-05
    %v4426 = vadd.f32 %v4422, 1e-05
    %v4427 = vrsqrt.pop %v4425
    %v4428 = vrsqrt.pop %v4426
    %v4431 = vcombine.low %v4427, %v4428
    %v4433 = vunpack.c.l.s4 1966171168
    %v4434 = vunpack.c.0.s8 %v4433
    %v4435 = vlaneseq
    %v4436 = vshrl.u32 %v4435, 7
    %v4437 = vsub.s32 %v4434, %v4436
    %v4438 = vrot.slane %v4431, %v4437
    %v4440 = vunpack.c.l.s4 1966171168
    %v4441 = vunpack.c.0.s8 %v4440
    %v4442 = vlaneseq
    %v4443 = vshrl.u32 %v4442, 7
    %v4444 = vsub.s32 %v4441, %v4443
    %v4445 = vrot.slane %v4438, %v4444
    %v4447 = vmul.f32 %v4424, %v4445
    %v4449 = vlaneseq
    %v4450 = vshrl.u32 %v4449, 7
    %v4451 = vsub.s32 0, %v4450
    %v4452 = vrot.slane %v4447, %v4451
    %v4453 = vlaneseq
    %v4454 = vshrl.u32 %v4453, 7
    %v4455 = vsub.s32 1, %v4454
    %v4456 = vrot.slane %v4447, %v4455
    %v4459 = vmul.f32 %v4363, %v4452
    %v4460 = vmul.f32 %v4364, %v4456
    %v4461 = vmul.f32 %v4365, %v4452
    %v4462 = vmul.f32 %v4366, %v4456
    %v4463 = vmul.f32 %v4367, %v4452
    %v4464 = vmul.f32 %v4368, %v4456
    %v4465 = vmul.f32 %v4369, %v4452
    %v4466 = vmul.f32 %v4370, %v4456
    %v4467 = vmul.f32 %v4371, %v4452
    %v4468 = vmul.f32 %v4372, %v4456
    %v4469 = vmul.f32 %v4373, %v4452
    %v4470 = vmul.f32 %v4374, %v4456
    %v4471 = vmul.f32 %v4375, %v4452
    %v4472 = vmul.f32 %v4376, %v4456
    %v4473 = vmul.f32 %v4377, %v4452
    %v4474 = vmul.f32 %v4378, %v4456
    %s4475 = scalar_lea.vmem [#allocation9], 129
    %v4476 = vld [vmem:[%s4475] ss:$8 sm:$0x3]
    %v4478 = vlaneseq
    %v4479 = vshrl.u32 %v4478, 7
    %v4480 = vsub.s32 0, %v4479
    %v4481 = vrot.slane %v4476, %v4480
    %v4482 = vlaneseq
    %v4483 = vshrl.u32 %v4482, 7
    %v4484 = vsub.s32 1, %v4483
    %v4485 = vrot.slane %v4476, %v4484
    %v4488 = vadd.f32 %v4459, %v4481
    %v4489 = vadd.f32 %v4460, %v4485
    %v4490 = vadd.f32 %v4461, %v4481
    %v4491 = vadd.f32 %v4462, %v4485
    %v4492 = vadd.f32 %v4463, %v4481
    %v4493 = vadd.f32 %v4464, %v4485
    %v4494 = vadd.f32 %v4465, %v4481
    %v4495 = vadd.f32 %v4466, %v4485
    %v4496 = vadd.f32 %v4467, %v4481
    %v4497 = vadd.f32 %v4468, %v4485
    %v4498 = vadd.f32 %v4469, %v4481
    %v4499 = vadd.f32 %v4470, %v4485
    %v4500 = vadd.f32 %v4471, %v4481
    %v4501 = vadd.f32 %v4472, %v4485
    %v4502 = vadd.f32 %v4473, %v4481
    %v4503 = vadd.f32 %v4474, %v4485
    %v4504 = vmax.f32 %v4488, 0.0
    %v4505 = vmax.f32 %v4489, 0.0
    %v4506 = vmax.f32 %v4490, 0.0
    %v4507 = vmax.f32 %v4491, 0.0
    %v4508 = vmax.f32 %v4492, 0.0
    %v4509 = vmax.f32 %v4493, 0.0
    %v4510 = vmax.f32 %v4494, 0.0
    %v4511 = vmax.f32 %v4495, 0.0
    %v4512 = vmax.f32 %v4496, 0.0
    %v4513 = vmax.f32 %v4497, 0.0
    %v4514 = vmax.f32 %v4498, 0.0
    %v4515 = vmax.f32 %v4499, 0.0
    %v4516 = vmax.f32 %v4500, 0.0
    %v4517 = vmax.f32 %v4501, 0.0
    %v4518 = vmax.f32 %v4502, 0.0
    %v4519 = vmax.f32 %v4503, 0.0
    %v4520 = vld [vmem:[#allocation7 + $0x230] sm:$0xf]
    %v4521 = vld [vmem:[#allocation7 + $0x238] sm:$0xf]
    %v4522 = vld [vmem:[#allocation7 + $0x240] sm:$0xf]
    %v4523 = vld [vmem:[#allocation7 + $0x248] sm:$0xf]
    %v4524 = vld [vmem:[#allocation7 + $0x250] sm:$0xf]
    %v4525 = vld [vmem:[#allocation7 + $0x258] sm:$0xf]
    %v4526 = vld [vmem:[#allocation7 + $0x260] sm:$0xf]
    %v4527 = vld [vmem:[#allocation7 + $0x268] sm:$0xf]
    %v4528 = vld [vmem:[#allocation7 + $0x270] sm:$0xf]
    %v4529 = vld [vmem:[#allocation7 + $0x278] sm:$0xf]
    %v4530 = vld [vmem:[#allocation7 + $0x280] sm:$0xf]
    %v4531 = vld [vmem:[#allocation7 + $0x288] sm:$0xf]
    %v4532 = vld [vmem:[#allocation7 + $0x290] sm:$0xf]
    %v4533 = vld [vmem:[#allocation7 + $0x298] sm:$0xf]
    %v4534 = vld [vmem:[#allocation7 + $0x2a0] sm:$0xf]
    %v4535 = vld [vmem:[#allocation7 + $0x2a8] sm:$0xf]
    %v4536 = vld [vmem:[#allocation7 + $0x2b0] sm:$0xf]
    %v4537 = vld [vmem:[#allocation7 + $0x2b8] sm:$0xf]
    %v4538 = vld [vmem:[#allocation7 + $0x2c0] sm:$0xf]
    %v4539 = vld [vmem:[#allocation7 + $0x2c8] sm:$0xf]
    %v4540 = vld [vmem:[#allocation7 + $0x2d0] sm:$0xf]
    %v4541 = vld [vmem:[#allocation7 + $0x2d8] sm:$0xf]
    %v4542 = vld [vmem:[#allocation7 + $0x2e0] sm:$0xf]
    %v4543 = vld [vmem:[#allocation7 + $0x2e8] sm:$0xf]
    %v4544 = vld [vmem:[#allocation7 + $0x2f0] sm:$0xf]
    %v4545 = vld [vmem:[#allocation7 + $0x2f8] sm:$0xf]
    %v4546 = vld [vmem:[#allocation7 + $0x300] sm:$0xf]
    %v4547 = vld [vmem:[#allocation7 + $0x308] sm:$0xf]
    %v4548 = vld [vmem:[#allocation7 + $0x310] sm:$0xf]
    %v4549 = vld [vmem:[#allocation7 + $0x318] sm:$0xf]
    %v4550 = vld [vmem:[#allocation7 + $0x320] sm:$0xf]
    %v4551 = vld [vmem:[#allocation7 + $0x328] sm:$0xf]
    %v4552 = vpack.c.bf16 %v4506, %v4504
    %v4553 = vpack.c.bf16 %v4507, %v4505
    %v4554 = vpack.c.bf16 %v4510, %v4508
    %v4555 = vpack.c.bf16 %v4511, %v4509
    %v4556 = vpack.c.bf16 %v4514, %v4512
    %v4557 = vpack.c.bf16 %v4515, %v4513
    %v4558 = vpack.c.bf16 %v4518, %v4516
    %v4559 = vpack.c.bf16 %v4519, %v4517
    %v4592 = vunpack.c.l.b16 %v4520
    %v4593 = vunpack.c.l.b16 %v4521
    %v4594 = vunpack.c.l.b16 %v4522
    %v4595 = vunpack.c.l.b16 %v4523
    %v4596 = vunpack.c.l.b16 %v4524
    %v4597 = vunpack.c.l.b16 %v4525
    %v4598 = vunpack.c.l.b16 %v4526
    %v4599 = vunpack.c.l.b16 %v4527
    %v4600 = vunpack.c.l.b16 %v4528
    %v4601 = vunpack.c.l.b16 %v4529
    %v4602 = vunpack.c.l.b16 %v4530
    %v4603 = vunpack.c.l.b16 %v4531
    %v4604 = vunpack.c.l.b16 %v4532
    %v4605 = vunpack.c.l.b16 %v4533
    %v4606 = vunpack.c.l.b16 %v4534
    %v4607 = vunpack.c.l.b16 %v4535
    %v4608 = vunpack.c.l.b16 %v4536
    %v4609 = vunpack.c.l.b16 %v4537
    %v4610 = vunpack.c.l.b16 %v4538
    %v4611 = vunpack.c.l.b16 %v4539
    %v4612 = vunpack.c.l.b16 %v4540
    %v4613 = vunpack.c.l.b16 %v4541
    %v4614 = vunpack.c.l.b16 %v4542
    %v4615 = vunpack.c.l.b16 %v4543
    %v4616 = vunpack.c.l.b16 %v4544
    %v4617 = vunpack.c.l.b16 %v4545
    %v4618 = vunpack.c.l.b16 %v4546
    %v4619 = vunpack.c.l.b16 %v4547
    %v4620 = vunpack.c.l.b16 %v4548
    %v4621 = vunpack.c.l.b16 %v4549
    %v4622 = vunpack.c.l.b16 %v4550
    %v4623 = vunpack.c.l.b16 %v4551
    %v4624 = vpack.c.b16 %v4593, %v4592
    %v4625 = vpack.c.b16 %v4595, %v4594
    %v4626 = vpack.c.b16 %v4597, %v4596
    %v4627 = vpack.c.b16 %v4599, %v4598
    %v4628 = vpack.c.b16 %v4601, %v4600
    %v4629 = vpack.c.b16 %v4603, %v4602
    %v4630 = vpack.c.b16 %v4605, %v4604
    %v4631 = vpack.c.b16 %v4607, %v4606
    %v4632 = vpack.c.b16 %v4609, %v4608
    %v4633 = vpack.c.b16 %v4611, %v4610
    %v4634 = vpack.c.b16 %v4613, %v4612
    %v4635 = vpack.c.b16 %v4615, %v4614
    %v4636 = vpack.c.b16 %v4617, %v4616
    %v4637 = vpack.c.b16 %v4619, %v4618
    %v4638 = vpack.c.b16 %v4621, %v4620
    %v4639 = vpack.c.b16 %v4623, %v4622
    %4656 = vmatprep.subr.bf16.mxu0 0
    %4657 = vmatpush1.bf16.msra.mxu0 %v4624
    %4658 = vmatprep.subr.bf16.mxu0 0
    %4659 = vmatpush1.bf16.msra.mxu0 %v4625
    %4660 = vmatprep.subr.bf16.mxu0 0
    %4661 = vmatpush1.bf16.msra.mxu0 %v4626
    %4662 = vmatprep.subr.bf16.mxu0 0
    %4663 = vmatpush1.bf16.msra.mxu0 %v4627
    %4664 = vmatprep.subr.bf16.mxu0 0
    %4665 = vmatpush1.bf16.msra.mxu0 %v4628
    %4666 = vmatprep.subr.bf16.mxu0 0
    %4667 = vmatpush1.bf16.msra.mxu0 %v4629
    %4668 = vmatprep.subr.bf16.mxu0 0
    %4669 = vmatpush1.bf16.msra.mxu0 %v4630
    %4670 = vmatprep.subr.bf16.mxu0 0
    %4671 = vmatpush1.bf16.msra.mxu0 %v4631
    %4672 = vmatprep.subr.bf16.mxu0 0
    %4673 = vmatpush1.bf16.msra.mxu0 %v4632
    %4674 = vmatprep.subr.bf16.mxu0 0
    %4675 = vmatpush1.bf16.msra.mxu0 %v4633
    %4676 = vmatprep.subr.bf16.mxu0 0
    %4677 = vmatpush1.bf16.msra.mxu0 %v4634
    %4678 = vmatprep.subr.bf16.mxu0 0
    %4679 = vmatpush1.bf16.msra.mxu0 %v4635
    %4680 = vmatprep.subr.bf16.mxu0 0
    %4681 = vmatpush1.bf16.msra.mxu0 %v4636
    %4682 = vmatprep.subr.bf16.mxu0 0
    %4683 = vmatpush1.bf16.msra.mxu0 %v4637
    %4684 = vmatprep.subr.bf16.mxu0 0
    %4685 = vmatpush1.bf16.msra.mxu0 %v4638
    %4686 = vmatprep.subr.bf16.mxu0 0
    %4687 = vmatpush1.bf16.msra.mxu0 %v4639
    %4688 = vmatprep.mubr.bf16.mxu0 %v4553
    %4689 = vmatmul.mubr.bf16.gmra.mrb[0].mxu0 %v4552
    %v4690 = vpop.f32.mrb[0].mxu0
    %v4691 = vadd.f32 0.0, %v4690
    %v4692 = vpop.f32.mrb[0].mxu0
    %v4693 = vpop.f32.mrb[0].mxu0
    %v4694 = vadd.f32 0.0, %v4693
    %v4695 = vpop.f32.mrb[0].mxu0
    %4696 = vmatprep.mubr.bf16.mxu0 %v4555
    %4697 = vmatmul.mubr.bf16.gmra.mrb[0].mxu0 %v4554
    %v4698 = vpop.f32.mrb[0].mxu0
    %v4699 = vadd.f32 0.0, %v4698
    %v4700 = vpop.f32.mrb[0].mxu0
    %v4701 = vpop.f32.mrb[0].mxu0
    %v4702 = vadd.f32 0.0, %v4701
    %v4703 = vpop.f32.mrb[0].mxu0
    %4704 = vmatprep.mubr.bf16.mxu0 %v4557
    %4705 = vmatmul.mubr.bf16.gmra.mrb[0].mxu0 %v4556
    %v4706 = vpop.f32.mrb[0].mxu0
    %v4707 = vadd.f32 0.0, %v4706
    %v4708 = vpop.f32.mrb[0].mxu0
    %v4709 = vpop.f32.mrb[0].mxu0
    %v4710 = vadd.f32 0.0, %v4709
    %v4711 = vpop.f32.mrb[0].mxu0
    %4712 = vmatprep.mubr.bf16.mxu0 %v4559
    %4713 = vmatmul.mubr.bf16.gmra.mrb[0].mxu0 %v4558
    %v4714 = vpop.f32.mrb[0].mxu0
    %v4715 = vadd.f32 0.0, %v4714
    %v4716 = vpop.f32.mrb[0].mxu0
    %v4717 = vpop.f32.mrb[0].mxu0
    %v4718 = vadd.f32 0.0, %v4717
    %v4719 = vpop.f32.mrb[0].mxu0
    %4720 = vdwg.mxu0
    %v4721 = vadd.f32 %v4691, %v4694
    %v4722 = vadd.f32 %v4721, %v4699
    %v4723 = vadd.f32 %v4722, %v4702
    %v4724 = vadd.f32 %v4723, %v4707
    %v4725 = vadd.f32 %v4724, %v4710
    %v4726 = vadd.f32 %v4725, %v4715
    %v4727 = vadd.f32 %v4726, %v4718
    %v4728 = vrot.slane %v4727, 4
    %v4729 = vadd.f32 %v4727, %v4728
    %v4730 = vrot.slane %v4729, 2
    %v4731 = vadd.f32 %v4729, %v4730
    %v4732 = vrot.slane %v4731, 1
    %v4733 = vadd.f32 %v4731, %v4732
    %v4734 = vmul.f32 %v4733, %v284
    %v4735 = vsub.f32 %v4691, %v4734
    %v4736 = vsub.f32 %v4694, %v4734
    %v4737 = vsub.f32 %v4699, %v4734
    %v4738 = vsub.f32 %v4702, %v4734
    %v4739 = vsub.f32 %v4707, %v4734
    %v4740 = vsub.f32 %v4710, %v4734
    %v4741 = vsub.f32 %v4715, %v4734
    %v4742 = vsub.f32 %v4718, %v4734
    %v4743 = vmul.f32 %v4735, %v4735
    %v4744 = vmul.f32 %v4736, %v4736
    %v4745 = vmul.f32 %v4737, %v4737
    %v4746 = vmul.f32 %v4738, %v4738
    %v4747 = vmul.f32 %v4739, %v4739
    %v4748 = vmul.f32 %v4740, %v4740
    %v4749 = vmul.f32 %v4741, %v4741
    %v4750 = vmul.f32 %v4742, %v4742
    %v4751 = vadd.f32 %v4743, %v4744
    %v4752 = vadd.f32 %v4751, %v4745
    %v4753 = vadd.f32 %v4752, %v4746
    %v4754 = vadd.f32 %v4753, %v4747
    %v4755 = vadd.f32 %v4754, %v4748
    %v4756 = vadd.f32 %v4755, %v4749
    %v4757 = vadd.f32 %v4756, %v4750
    %v4758 = vrot.slane %v4757, 4
    %v4759 = vadd.f32 %v4757, %v4758
    %v4760 = vrot.slane %v4759, 2
    %v4761 = vadd.f32 %v4759, %v4760
    %v4762 = vrot.slane %v4761, 1
    %v4763 = vadd.f32 %v4761, %v4762
    %v4764 = vmul.f32 %v4763, %v284
    %v4765 = vld [vmem:[#allocation9 + $0x82] ss:$0 sm:$0xff]
    %v4766 = vadd.f32 %v4764, 1e-05
    %v4767 = vrsqrt.pop %v4766
    %v4768 = vmul.f32 %v4765, %v4767
    %v4769 = vmul.f32 %v4735, %v4768
    %v4770 = vmul.f32 %v4736, %v4768
    %v4771 = vmul.f32 %v4737, %v4768
    %v4772 = vmul.f32 %v4738, %v4768
    %v4773 = vmul.f32 %v4739, %v4768
    %v4774 = vmul.f32 %v4740, %v4768
    %v4775 = vmul.f32 %v4741, %v4768
    %v4776 = vmul.f32 %v4742, %v4768
    %v4777 = vld [vmem:[#allocation9 + $0x83] ss:$0 sm:$0xff]
    %v4778 = vadd.f32 %v4769, %v4777
    %v4779 = vadd.f32 %v4770, %v4777
    %v4780 = vadd.f32 %v4771, %v4777
    %v4781 = vadd.f32 %v4772, %v4777
    %v4782 = vadd.f32 %v4773, %v4777
    %v4783 = vadd.f32 %v4774, %v4777
    %v4784 = vadd.f32 %v4775, %v4777
    %v4785 = vadd.f32 %v4776, %v4777
    %v4786 = vmax.f32 %v4778, 0.0
    %v4787 = vmax.f32 %v4779, 0.0
    %v4788 = vmax.f32 %v4780, 0.0
    %v4789 = vmax.f32 %v4781, 0.0
    %v4790 = vmax.f32 %v4782, 0.0
    %v4791 = vmax.f32 %v4783, 0.0
    %v4792 = vmax.f32 %v4784, 0.0
    %v4793 = vmax.f32 %v4785, 0.0
    %v4794 = vld [vmem:[#allocation7 + $0x330] sm:$0xf]
    %v4795 = vld [vmem:[#allocation7 + $0x338] sm:$0xf]
    %v4796 = vld [vmem:[#allocation7 + $0x340] sm:$0xf]
    %v4797 = vld [vmem:[#allocation7 + $0x348] sm:$0xf]
    %v4798 = vld [vmem:[#allocation7 + $0x350] sm:$0xf]
    %v4799 = vld [vmem:[#allocation7 + $0x358] sm:$0xf]
    %v4800 = vld [vmem:[#allocation7 + $0x360] sm:$0xf]
    %v4801 = vld [vmem:[#allocation7 + $0x368] sm:$0xf]
    %v4802 = vld [vmem:[#allocation7 + $0x370] sm:$0xf]
    %v4803 = vld [vmem:[#allocation7 + $0x378] sm:$0xf]
    %v4804 = vld [vmem:[#allocation7 + $0x380] sm:$0xf]
    %v4805 = vld [vmem:[#allocation7 + $0x388] sm:$0xf]
    %v4806 = vld [vmem:[#allocation7 + $0x390] sm:$0xf]
    %v4807 = vld [vmem:[#allocation7 + $0x398] sm:$0xf]
    %v4808 = vld [vmem:[#allocation7 + $0x3a0] sm:$0xf]
    %v4809 = vld [vmem:[#allocation7 + $0x3a8] sm:$0xf]
    %v4810 = vpack.c.bf16 %v4787, %v4786
    %v4811 = vpack.c.bf16 %v4789, %v4788
    %v4812 = vpack.c.bf16 %v4791, %v4790
    %v4813 = vpack.c.bf16 %v4793, %v4792
    %v4830 = vunpack.c.l.b16 %v4794
    %v4831 = vunpack.c.l.b16 %v4795
    %v4832 = vunpack.c.l.b16 %v4796
    %v4833 = vunpack.c.l.b16 %v4797
    %v4834 = vunpack.c.l.b16 %v4798
    %v4835 = vunpack.c.l.b16 %v4799
    %v4836 = vunpack.c.l.b16 %v4800
    %v4837 = vunpack.c.l.b16 %v4801
    %v4838 = vunpack.c.l.b16 %v4802
    %v4839 = vunpack.c.l.b16 %v4803
    %v4840 = vunpack.c.l.b16 %v4804
    %v4841 = vunpack.c.l.b16 %v4805
    %v4842 = vunpack.c.l.b16 %v4806
    %v4843 = vunpack.c.l.b16 %v4807
    %v4844 = vunpack.c.l.b16 %v4808
    %v4845 = vunpack.c.l.b16 %v4809
    %v4846 = vpack.c.b16 %v4831, %v4830
    %v4847 = vpack.c.b16 %v4833, %v4832
    %v4848 = vpack.c.b16 %v4835, %v4834
    %v4849 = vpack.c.b16 %v4837, %v4836
    %v4850 = vpack.c.b16 %v4839, %v4838
    %v4851 = vpack.c.b16 %v4841, %v4840
    %v4852 = vpack.c.b16 %v4843, %v4842
    %v4853 = vpack.c.b16 %v4845, %v4844
    %4862 = vmatprep.subr.bf16.mxu0 0
    %4863 = vmatpush1.bf16.msra.mxu0 %v4846
    %4864 = vmatprep.subr.bf16.mxu0 0
    %4865 = vmatpush1.bf16.msra.mxu0 %v4847
    %4866 = vmatprep.subr.bf16.mxu0 0
    %4867 = vmatpush1.bf16.msra.mxu0 %v4848
    %4868 = vmatprep.subr.bf16.mxu0 0
    %4869 = vmatpush1.bf16.msra.mxu0 %v4849
    %4870 = vmatprep.subr.bf16.mxu0 0
    %4871 = vmatpush1.bf16.msra.mxu0 %v4850
    %4872 = vmatprep.subr.bf16.mxu0 0
    %4873 = vmatpush1.bf16.msra.mxu0 %v4851
    %4874 = vmatprep.subr.bf16.mxu0 0
    %4875 = vmatpush1.bf16.msra.mxu0 %v4852
    %4876 = vmatprep.subr.bf16.mxu0 0
    %4877 = vmatpush1.bf16.msra.mxu0 %v4853
    %4878 = vmatprep.subr.bf16.mxu0 0
    %4879 = vmatpush1.bf16.msra.mxu0 0
    %4880 = vmatprep.subr.bf16.mxu0 0
    %4881 = vmatpush1.bf16.msra.mxu0 0
    %4882 = vmatprep.subr.bf16.mxu0 0
    %4883 = vmatpush1.bf16.msra.mxu0 0
    %4884 = vmatprep.subr.bf16.mxu0 0
    %4885 = vmatpush1.bf16.msra.mxu0 0
    %4886 = vmatprep.subr.bf16.mxu0 0
    %4887 = vmatpush1.bf16.msra.mxu0 0
    %4888 = vmatprep.subr.bf16.mxu0 0
    %4889 = vmatpush1.bf16.msra.mxu0 0
    %4890 = vmatprep.subr.bf16.mxu0 0
    %4891 = vmatpush1.bf16.msra.mxu0 0
    %4892 = vmatprep.subr.bf16.mxu0 0
    %4893 = vmatpush1.bf16.msra.mxu0 0
    %4894 = vmatprep.mubr.bf16.mxu0 0
    %4895 = vmatmul.mubr.bf16.gmra.mrb[0].mxu0 %v4810
    %v4896 = vpop.f32.mrb[0].mxu0
    %v4897 = vadd.f32 0.0, %v4896
    %v4898 = vpop.f32.mrb[0].mxu0
    %v4899 = vpop.f32.mrb[0].mxu0
    %v4900 = vadd.f32 0.0, %v4899
    %v4901 = vpop.f32.mrb[0].mxu0
    %4902 = vmatprep.mubr.bf16.mxu0 0
    %4903 = vmatmul.mubr.bf16.gmra.mrb[0].mxu0 %v4811
    %v4904 = vpop.f32.mrb[0].mxu0
    %v4905 = vadd.f32 0.0, %v4904
    %v4906 = vpop.f32.mrb[0].mxu0
    %v4907 = vpop.f32.mrb[0].mxu0
    %v4908 = vadd.f32 0.0, %v4907
    %v4909 = vpop.f32.mrb[0].mxu0
    %4910 = vmatprep.mubr.bf16.mxu0 0
    %4911 = vmatmul.mubr.bf16.gmra.mrb[0].mxu0 %v4812
    %v4912 = vpop.f32.mrb[0].mxu0
    %v4913 = vadd.f32 0.0, %v4912
    %v4914 = vpop.f32.mrb[0].mxu0
    %v4915 = vpop.f32.mrb[0].mxu0
    %v4916 = vadd.f32 0.0, %v4915
    %v4917 = vpop.f32.mrb[0].mxu0
    %4918 = vmatprep.mubr.bf16.mxu0 0
    %4919 = vmatmul.mubr.bf16.gmra.mrb[0].mxu0 %v4813
    %v4920 = vpop.f32.mrb[0].mxu0
    %v4921 = vadd.f32 0.0, %v4920
    %v4922 = vpop.f32.mrb[0].mxu0
    %v4923 = vpop.f32.mrb[0].mxu0
    %v4924 = vadd.f32 0.0, %v4923
    %v4925 = vpop.f32.mrb[0].mxu0
    %4926 = vdwg.mxu0
    %v4927 = vsel %vm3148, %v4897, 0.0
    %v4928 = vsel %vm3148, %v4900, 0.0
    %v4929 = vadd.f32 %v4927, %v4928
    %v4930 = vsel %vm3148, %v4905, 0.0
    %v4931 = vadd.f32 %v4929, %v4930
    %v4932 = vsel %vm3148, %v4908, 0.0
    %v4933 = vadd.f32 %v4931, %v4932
    %v4934 = vsel %vm3148, %v4913, 0.0
    %v4935 = vadd.f32 %v4933, %v4934
    %v4936 = vsel %vm3148, %v4916, 0.0
    %v4937 = vadd.f32 %v4935, %v4936
    %v4938 = vsel %vm3148, %v4921, 0.0
    %v4939 = vadd.f32 %v4937, %v4938
    %v4940 = vsel %vm3148, %v4924, 0.0
    %v4941 = vadd.f32 %v4939, %v4940
    %v4942 = vrot.slane %v4941, 4
    %v4943 = vadd.f32 %v4941, %v4942
    %v4944 = vrot.slane %v4943, 2
    %v4945 = vadd.f32 %v4943, %v4944
    %v4946 = vrot.slane %v4945, 1
    %v4947 = vadd.f32 %v4945, %v4946
    %v4948 = vmul.f32 %v4947, %v284
    %v4949 = vsub.f32 %v4897, %v4948
    %v4950 = vsub.f32 %v4900, %v4948
    %v4951 = vsub.f32 %v4905, %v4948
    %v4952 = vsub.f32 %v4908, %v4948
    %v4953 = vsub.f32 %v4913, %v4948
    %v4954 = vsub.f32 %v4916, %v4948
    %v4955 = vsub.f32 %v4921, %v4948
    %v4956 = vsub.f32 %v4924, %v4948
    %v4957 = vmul.f32 %v4949, %v4949
    %v4958 = vmul.f32 %v4950, %v4950
    %v4959 = vmul.f32 %v4951, %v4951
    %v4960 = vmul.f32 %v4952, %v4952
    %v4961 = vmul.f32 %v4953, %v4953
    %v4962 = vmul.f32 %v4954, %v4954
    %v4963 = vmul.f32 %v4955, %v4955
    %v4964 = vmul.f32 %v4956, %v4956
    %v4965 = vsel %vm3148, %v4957, 0.0
    %v4966 = vsel %vm3148, %v4958, 0.0
    %v4967 = vadd.f32 %v4965, %v4966
    %v4968 = vsel %vm3148, %v4959, 0.0
    %v4969 = vadd.f32 %v4967, %v4968
    %v4970 = vsel %vm3148, %v4960, 0.0
    %v4971 = vadd.f32 %v4969, %v4970
    %v4972 = vsel %vm3148, %v4961, 0.0
    %v4973 = vadd.f32 %v4971, %v4972
    %v4974 = vsel %vm3148, %v4962, 0.0
    %v4975 = vadd.f32 %v4973, %v4974
    %v4976 = vsel %vm3148, %v4963, 0.0
    %v4977 = vadd.f32 %v4975, %v4976
    %v4978 = vsel %vm3148, %v4964, 0.0
    %v4979 = vadd.f32 %v4977, %v4978
    %v4980 = vrot.slane %v4979, 4
    %v4981 = vadd.f32 %v4979, %v4980
    %v4982 = vrot.slane %v4981, 2
    %v4983 = vadd.f32 %v4981, %v4982
    %v4984 = vrot.slane %v4983, 1
    %v4985 = vadd.f32 %v4983, %v4984
    %v4986 = vmul.f32 %v4985, %v284
    %v4987 = vld [vmem:[#allocation9 + $0x84] ss:$0 sm:$0xff]
    %v4988 = vadd.f32 %v4986, 1e-05
    %v4989 = vrsqrt.pop %v4988
    %v4990 = vmul.f32 %v4987, %v4989
    %v4991 = vmul.f32 %v4949, %v4990
    %v4992 = vmul.f32 %v4950, %v4990
    %v4993 = vmul.f32 %v4951, %v4990
    %v4994 = vmul.f32 %v4952, %v4990
    %v4995 = vmul.f32 %v4953, %v4990
    %v4996 = vmul.f32 %v4954, %v4990
    %v4997 = vmul.f32 %v4955, %v4990
    %v4998 = vmul.f32 %v4956, %v4990
    %v4999 = vld [vmem:[#allocation9 + $0x85] ss:$0 sm:$0xff]
    %v5000 = vadd.f32 %v4991, %v4999
    %v5001 = vadd.f32 %v4992, %v4999
    %v5002 = vadd.f32 %v4993, %v4999
    %v5003 = vadd.f32 %v4994, %v4999
    %v5004 = vadd.f32 %v4995, %v4999
    %v5005 = vadd.f32 %v4996, %v4999
    %v5006 = vadd.f32 %v4997, %v4999
    %v5007 = vadd.f32 %v4998, %v4999
    %v5008 = vmax.f32 %v5000, 0.0
    %v5009 = vmax.f32 %v5001, 0.0
    %v5010 = vmax.f32 %v5002, 0.0
    %v5011 = vmax.f32 %v5003, 0.0
    %v5012 = vmax.f32 %v5004, 0.0
    %v5013 = vmax.f32 %v5005, 0.0
    %v5014 = vmax.f32 %v5006, 0.0
    %v5015 = vmax.f32 %v5007, 0.0
    %v5016 = vld [vmem:[#allocation7 + $0x3b0] sm:$0xf]
    %v5017 = vld [vmem:[#allocation7 + $0x3b8] sm:$0xf]
    %v5018 = vld [vmem:[#allocation7 + $0x3c0] sm:$0xf]
    %v5019 = vld [vmem:[#allocation7 + $0x3c8] sm:$0xf]
    %v5020 = vpack.c.bf16 %v5009, %v5008
    %v5021 = vpack.c.bf16 %v5011, %v5010
    %v5022 = vpack.c.bf16 %v5013, %v5012
    %v5023 = vpack.c.bf16 %v5015, %v5014
    %v5024 = vld [vmem:[#allocation9 + $0x86] ss:$0 sm:$0xff]
    %v5029 = vunpack.c.l.b16 %v5016
    %v5030 = vunpack.c.l.b16 %v5017
    %v5031 = vunpack.c.l.b16 %v5018
    %v5032 = vunpack.c.l.b16 %v5019
    %v5033 = vpack.c.b16 %v5030, %v5029
    %v5034 = vpack.c.b16 %v5032, %v5031
    %v5038 = vsel %vm3148, %v5020, 0
    %v5041 = vsel %vm3148, %v5021, 0
    %v5044 = vsel %vm3148, %v5022, 0
    %v5047 = vsel %vm3148, %v5023, 0
    %5049 = vmatprep.subr.bf16.mxu0 0
    %5050 = vmatpush1.bf16.msra.mxu0 %v5033
    %5051 = vmatprep.subr.bf16.mxu0 0
    %5052 = vmatpush1.bf16.msra.mxu0 %v5034
    %5053 = vmatprep.subr.bf16.mxu0 0
    %5054 = vmatpush1.bf16.msra.mxu0 0
    %5055 = vmatprep.subr.bf16.mxu0 0
    %5056 = vmatpush1.bf16.msra.mxu0 0
    %5057 = vmatprep.subr.bf16.mxu0 0
    %5058 = vmatpush1.bf16.msra.mxu0 0
    %5059 = vmatprep.subr.bf16.mxu0 0
    %5060 = vmatpush1.bf16.msra.mxu0 0
    %5061 = vmatprep.subr.bf16.mxu0 0
    %5062 = vmatpush1.bf16.msra.mxu0 0
    %5063 = vmatprep.subr.bf16.mxu0 0
    %5064 = vmatpush1.bf16.msra.mxu0 0
    %5065 = vmatprep.subr.bf16.mxu0 0
    %5066 = vmatpush1.bf16.msra.mxu0 0
    %5067 = vmatprep.subr.bf16.mxu0 0
    %5068 = vmatpush1.bf16.msra.mxu0 0
    %5069 = vmatprep.subr.bf16.mxu0 0
    %5070 = vmatpush1.bf16.msra.mxu0 0
    %5071 = vmatprep.subr.bf16.mxu0 0
    %5072 = vmatpush1.bf16.msra.mxu0 0
    %5073 = vmatprep.subr.bf16.mxu0 0
    %5074 = vmatpush1.bf16.msra.mxu0 0
    %5075 = vmatprep.subr.bf16.mxu0 0
    %5076 = vmatpush1.bf16.msra.mxu0 0
    %5077 = vmatprep.subr.bf16.mxu0 0
    %5078 = vmatpush1.bf16.msra.mxu0 0
    %5079 = vmatprep.subr.bf16.mxu0 0
    %5080 = vmatpush1.bf16.msra.mxu0 0
    %5081 = vmatprep.mubr.bf16.mxu0 0
    %5082 = vmatmul.mubr.bf16.gmra.mrb[0].mxu0 %v5038
    %v5083 = vpop.f32.mrb[0].mxu0
    %v5084 = vadd.f32 %v5024, %v5083
    %v5085 = vpop.f32.mrb[0].mxu0
    %v5086 = vpop.f32.mrb[0].mxu0
    %v5087 = vadd.f32 %v5024, %v5086
    %v5088 = vpop.f32.mrb[0].mxu0
    %5089 = vmatprep.mubr.bf16.mxu0 0
    %5090 = vmatmul.mubr.bf16.gmra.mrb[0].mxu0 %v5041
    %v5091 = vpop.f32.mrb[0].mxu0
    %v5092 = vadd.f32 %v5024, %v5091
    %v5093 = vpop.f32.mrb[0].mxu0
    %v5094 = vpop.f32.mrb[0].mxu0
    %v5095 = vadd.f32 %v5024, %v5094
    %v5096 = vpop.f32.mrb[0].mxu0
    %5097 = vmatprep.mubr.bf16.mxu0 0
    %5098 = vmatmul.mubr.bf16.gmra.mrb[0].mxu0 %v5044
    %v5099 = vpop.f32.mrb[0].mxu0
    %v5100 = vadd.f32 %v5024, %v5099
    %v5101 = vpop.f32.mrb[0].mxu0
    %v5102 = vpop.f32.mrb[0].mxu0
    %v5103 = vadd.f32 %v5024, %v5102
    %v5104 = vpop.f32.mrb[0].mxu0
    %5105 = vmatprep.mubr.bf16.mxu0 0
    %5106 = vmatmul.mubr.bf16.gmra.mrb[0].mxu0 %v5047
    %v5107 = vpop.f32.mrb[0].mxu0
    %v5108 = vadd.f32 %v5024, %v5107
    %v5109 = vpop.f32.mrb[0].mxu0
    %v5110 = vpop.f32.mrb[0].mxu0
    %v5111 = vadd.f32 %v5024, %v5110
    %v5112 = vpop.f32.mrb[0].mxu0
    %5113 = vdwg.mxu0
    %v5114 = vxor.u32 %v5084, 2147483648
    %v5115 = vxor.u32 %v5087, 2147483648
    %v5116 = vxor.u32 %v5092, 2147483648
    %v5117 = vxor.u32 %v5095, 2147483648
    %v5118 = vxor.u32 %v5100, 2147483648
    %v5119 = vxor.u32 %v5103, 2147483648
    %v5120 = vxor.u32 %v5108, 2147483648
    %v5121 = vxor.u32 %v5111, 2147483648
    %v5122 = vmul.f32 %v5114, 1.442695
    %v5123 = vpow.pop %v5122
    %v5124 = vmul.f32 %v5115, 1.442695
    %v5125 = vpow.pop %v5124
    %v5126 = vmul.f32 %v5116, 1.442695
    %v5127 = vpow.pop %v5126
    %v5128 = vmul.f32 %v5117, 1.442695
    %v5129 = vpow.pop %v5128
    %v5130 = vmul.f32 %v5118, 1.442695
    %v5131 = vpow.pop %v5130
    %v5132 = vmul.f32 %v5119, 1.442695
    %v5133 = vpow.pop %v5132
    %v5134 = vmul.f32 %v5120, 1.442695
    %v5135 = vpow.pop %v5134
    %v5136 = vmul.f32 %v5121, 1.442695
    %v5137 = vpow.pop %v5136
    %v5138 = vadd.f32 %v5123, 1.0
    %v5139 = vadd.f32 %v5125, 1.0
    %v5140 = vadd.f32 %v5127, 1.0
    %v5141 = vadd.f32 %v5129, 1.0
    %v5142 = vadd.f32 %v5131, 1.0
    %v5143 = vadd.f32 %v5133, 1.0
    %v5144 = vadd.f32 %v5135, 1.0
    %v5145 = vadd.f32 %v5137, 1.0
    %v5146 = vrcp.pop %v5138
    %v5147 = vmul.f32 1.0, %v5146
    %v5148 = vrcp.pop %v5139
    %v5149 = vmul.f32 1.0, %v5148
    %v5150 = vrcp.pop %v5140
    %v5151 = vmul.f32 1.0, %v5150
    %v5152 = vrcp.pop %v5141
    %v5153 = vmul.f32 1.0, %v5152
    %v5154 = vrcp.pop %v5142
    %v5155 = vmul.f32 1.0, %v5154
    %v5156 = vrcp.pop %v5143
    %v5157 = vmul.f32 1.0, %v5156
    %v5158 = vrcp.pop %v5144
    %v5159 = vmul.f32 1.0, %v5158
    %v5160 = vrcp.pop %v5145
    %v5161 = vmul.f32 1.0, %v5160
    %vm5162 = vcmask 23552
    %5163 = vst.msk [vmem:[%s8] sm:$0xff] %vm5162, %v5147
    %5164 = vst.msk [vmem:[%s8 + $0x8] sm:$0xff] %vm5162, %v5149
    %5165 = vst.msk [vmem:[%s8 + $0x10] sm:$0xff] %vm5162, %v5151
    %5166 = vst.msk [vmem:[%s8 + $0x18] sm:$0xff] %vm5162, %v5153
    %5167 = vst.msk [vmem:[%s8 + $0x20] sm:$0xff] %vm5162, %v5155
    %5168 = vst.msk [vmem:[%s8 + $0x28] sm:$0xff] %vm5162, %v5157
    %5169 = vst.msk [vmem:[%s8 + $0x30] sm:$0xff] %vm5162, %v5159
    %5170 = vst.msk [vmem:[%s8 + $0x38] sm:$0xff] %vm5162, %v5161
    // Predicated region
    $region30: #{tpu_custom_call.1} parent=1 // pred_check
      _
    $region31: #{tpu_custom_call.1} parent=1 // pred_check_branch
      %5172 = sbr.rel (0) target = $region33
    $region32: #{tpu_custom_call.1} parent=1 // pred_region
      _
    $region33: #{tpu_custom_call.1} parent=1 // pred_fallthru
      _
    // Predicated region
    $region34: #{tpu_custom_call.1} parent=1 // pred_check
      _
    $region35: #{tpu_custom_call.1} parent=1 // pred_check_branch
      %5174 = sbr.rel (0) target = $region37
    $region36: #{tpu_custom_call.1} parent=1 // pred_region
      _
    $region37: #{tpu_custom_call.1} parent=1 // pred_fallthru
      _
    %5175 = vsyncpa [#allocation8], 1
    %5176 = vsyncpa [#allocation10], 1
  %5177 = vsyncmov [#allocation6]
  %s5178 = vpop.sfrf %5177
  %p5179 = scmp.eq.s32.totalorder %s5178, 0
  %p5180 = pneg %p5179
  %5182 = shalt.err (%p5180)
  %s5183 = scalar_lea.sflag [#allocation6], 1
  %5184 = vsyncmov %s5183
  %s5185 = vpop.sfrf %5184
  %p5186 = scmp.eq.s32.totalorder %s5185, 0
  %p5187 = pneg %p5186
  %5189 = shalt.err (%p5187)
  %s5190 = scalar_lea.sflag [#allocation6], 2
  %5191 = vsyncmov %s5190
  %s5192 = vpop.sfrf %5191
  %p5193 = scmp.eq.s32.totalorder %s5192, 0
  %p5194 = pneg %p5193
  %5196 = shalt.err (%p5194)
  %s5197 = scalar_lea.sflag [#allocation6], 3
  %5198 = vsyncmov %s5197
  %s5199 = vpop.sfrf %5198
  %p5200 = scmp.eq.s32.totalorder %s5199, 0
  %p5201 = pneg %p5200
  %5203 = shalt.err (%p5201)

</llo_original>
